<compile_context>
chip_gen: v6e
topology: v6e:2x2x1
jax: 0.10.0
libtpu: 0.0.40
codegen_flags: <defaults>
</compile_context>

<pallas_src>
import functools

import jax
import jax.numpy as jnp
from jax.experimental import pallas as pl
from jax.experimental.pallas import tpu as pltpu

LANE = 128  # lane-dense padding target for the final output slab


def _full_spec(shape):
    # Whole-array block (tiny shapes); block == full dims satisfies the (8,128) rule.
    return pl.BlockSpec(shape, lambda i: (0,) * len(shape))


def _sage_layer(x, w_ih_ref, w_hh_ref, b_ref, w_self_ref, w_neigh_ref, bias_ref, shifts):
    """One DGL SAGEConv(aggregator_type='lstm') layer, fully inside the kernel body.

    x          : (N, D)     destination-node features (== LSTM inputs, pre-gather)
    w_ih_ref   : (4, D, D)  per-gate LSTM input->hidden weights (gate order i, f, g, o)
    w_hh_ref   : (4, D, D)  per-gate LSTM hidden->hidden weights
    b_ref      : (4, 1, D)  per-gate combined LSTM bias (b_ih + b_hh)
    w_self_ref : (D, O)     fc_self weight (pre-transposed)
    w_neigh_ref: (D, O)     fc_neigh weight (pre-transposed)
    bias_ref   : (1, O)     SAGEConv bias
    shifts     : tuple[int] circulant graph: in-neighbor t of node n is (n + shifts[t]) % N
    """
    N, D = x.shape
    # Hoisted input path (per gate): the row gather commutes with the right-matmul and
    # the broadcast bias add, so roll(x @ W + b) == x[neighbors] @ W + b.
    xg = [jnp.dot(x, w_ih_ref[g], preferred_element_type=jnp.float32) + b_ref[g]
          for g in range(4)]                                            # 4 x (N, D)

    h = jnp.zeros((N, D), jnp.float32)
    c = jnp.zeros((N, D), jnp.float32)
    for t, s in enumerate(shifts):        # K small & static -> unrolled time loop
        shift = (-s) % N                  # dst n <- src (n + s) % N  (jnp.roll semantics)
        if shift == 0:
            pre = list(xg)
        else:
            pre = [pltpu.roll(xg[g], shift, 0) for g in range(4)]      # XLU sublane roll
        if t > 0:                         # h == 0 on the first step; skip the dead dots
            pre = [pre[g] + jnp.dot(h, w_hh_ref[g], preferred_element_type=jnp.float32)
                   for g in range(4)]
        i_t = jax.nn.sigmoid(pre[0])      # elementwise/EUP math stays f32 (v5e-safe)
        f_t = jax.nn.sigmoid(pre[1])
        g_t = jnp.tanh(pre[2])
        o_t = jax.nn.sigmoid(pre[3])
        c = f_t * c + i_t * g_t
        h = o_t * jnp.tanh(c)

    # rst = fc_self(x) + fc_neigh(h_neigh) + bias  -- two accumulating matmuls, no concat.
    return (jnp.dot(x, w_self_ref[...], preferred_element_type=jnp.float32)
            + jnp.dot(h, w_neigh_ref[...], preferred_element_type=jnp.float32)
            + bias_ref[...])


def net_kernel(x_ref,
               w_ih0, w_hh0, b0, w_self0, w_neigh0, bias0,
               w_ih1, w_hh1, b1, w_self1, w_neigh1, bias1,
               lin_w, lin_b,
               out_ref, *, shifts):
    """Entire Net forward (conv0 -> conv1 -> linear) in one kernel invocation."""
    h = _sage_layer(x_ref[...], w_ih0, w_hh0, b0, w_self0, w_neigh0, bias0, shifts)
    h = _sage_layer(h, w_ih1, w_hh1, b1, w_self1, w_neigh1, bias1, shifts)
    # Final linear into a 128-lane-padded slab -> unmasked lane-dense stores.
    out_ref[...] = (jnp.dot(h, lin_w[...], preferred_element_type=jnp.float32)
                    + lin_b[...]).astype(out_ref.dtype)


def net_forward(x, shifts, params):
    N, in_dim = x.shape
    hidden = params["lin_w_pad"].shape[0]
    c_pad = params["lin_w_pad"].shape[1]
    n_classes = params["n_classes"]
    c0, c1 = params["conv0"], params["conv1"]
    args = (x,
            c0["w_ih"], c0["w_hh"], c0["b"], c0["w_self"], c0["w_neigh"], c0["bias"],
            c1["w_ih"], c1["w_hh"], c1["b"], c1["w_self"], c1["w_neigh"], c1["bias"],
            params["lin_w_pad"], params["lin_b_pad"])

    # Rough cost hint so XLA schedules around the fused call (advisory only).
    K = len(shifts)
    flops = 0
    for d_in, d_out in ((in_dim, hidden), (hidden, hidden)):
        flops += 4 * 2 * N * d_in * d_in                 # hoisted x @ W_ih (per gate)
        flops += (K - 1) * 4 * 2 * N * d_in * d_in       # h @ W_hh (per gate per step)
        flops += 2 * 2 * N * d_in * d_out                # fc_self + fc_neigh
    flops += 2 * N * hidden * c_pad                      # final linear
    transcendentals = 2 * K * 5 * N * hidden             # 3 sigmoid + 2 tanh per step
    bytes_accessed = sum(int(a.size) * 4 for a in args) + N * c_pad * 4

    out_pad = pl.pallas_call(
        functools.partial(net_kernel, shifts=tuple(int(s) for s in shifts)),
        grid=(1,),
        in_specs=[_full_spec(a.shape) for a in args],
        out_specs=_full_spec((N, c_pad)),
        out_shape=jax.ShapeDtypeStruct((N, c_pad), jnp.float32),
        compiler_params=pltpu.CompilerParams(dimension_semantics=("arbitrary",)),
        cost_estimate=pl.CostEstimate(flops=flops, transcendentals=transcendentals,
                                      bytes_accessed=bytes_accessed),
    )(*args)
    return out_pad[:, :n_classes]


def init_sage_params(key, in_dim, out_dim):
    ks = jax.random.split(key, 6)
    s = 0.1
    return {
        # PyTorch LSTM weights are (4H, in); stored pre-transposed and split per gate
        # as (4, in, H) so the kernel indexes gates on the leading (free) axis.
        "w_ih": jax.random.normal(ks[0], (4, in_dim, in_dim), jnp.float32) * s,
        "w_hh": jax.random.normal(ks[1], (4, in_dim, in_dim), jnp.float32) * s,
        "b":   (jax.random.normal(ks[2], (4, 1, in_dim), jnp.float32) * s
                + jax.random.normal(ks[3], (4, 1, in_dim), jnp.float32) * s),  # b_ih + b_hh
        # nn.Linear weights are (out, in); stored pre-transposed as (in, out).
        "w_self":  jax.random.normal(ks[4], (in_dim, out_dim), jnp.float32) * s,
        "w_neigh": jax.random.normal(ks[5], (in_dim, out_dim), jnp.float32) * s,
        "bias": jnp.zeros((1, out_dim), jnp.float32),   # DGL inits SAGEConv bias to zeros
    }


def init_net_params(key, in_dim, hidden_dim, n_classes):
    k0, k1, k2, k3 = jax.random.split(key, 4)
    lin_w = jax.random.normal(k2, (hidden_dim, n_classes), jnp.float32) * 0.1
    lin_b = jax.random.normal(k3, (1, n_classes), jnp.float32) * 0.1
    # Zero-pad the final linear to a 128-lane output slab (lane-dense stores in-kernel).
    c_pad = ((n_classes + LANE - 1) // LANE) * LANE
    lin_w_pad = jnp.zeros((hidden_dim, c_pad), jnp.float32).at[:, :n_classes].set(lin_w)
    lin_b_pad = jnp.zeros((1, c_pad), jnp.float32).at[:, :n_classes].set(lin_b)
    return {
        "conv0": init_sage_params(k0, in_dim, hidden_dim),
        "conv1": init_sage_params(k1, hidden_dim, hidden_dim),
        "lin_w": lin_w, "lin_b": lin_b,                  # unpadded, for the JAX reference
        "lin_w_pad": lin_w_pad, "lin_b_pad": lin_b_pad,
        "n_classes": n_classes,
    }


# ------------------------- pure-JAX reference (no Pallas) -------------------------

def _sage_layer_ref(x, neighbors, p):
    N, D = x.shape
    h = jnp.zeros((N, D), jnp.float32)
    c = jnp.zeros((N, D), jnp.float32)
    for t in range(neighbors.shape[1]):
        xt = x[neighbors[:, t]]                           # (N, D) neighbor features
        pre = [xt @ p["w_ih"][g] + h @ p["w_hh"][g] + p["b"][g] for g in range(4)]
        i_t = jax.nn.sigmoid(pre[0]); f_t = jax.nn.sigmoid(pre[1])
        g_t = jnp.tanh(pre[2]);       o_t = jax.nn.sigmoid(pre[3])
        c = f_t * c + i_t * g_t
        h = o_t * jnp.tanh(c)                             # last hidden state = h_neigh
    return x @ p["w_self"] + h @ p["w_neigh"] + p["bias"]


def net_reference(x, neighbors, params):
    h = _sage_layer_ref(x, neighbors, params["conv0"])
    h = _sage_layer_ref(h, neighbors, params["conv1"])
    return h @ params["lin_w"] + params["lin_b"]


if __name__ == "__main__":
    IN_DIM, HIDDEN, N_CLASSES = 32, 32, 8
    N_NODES, K_NEIGH = 16, 4

    key = jax.random.PRNGKey(0)
    k_feat, k_param = jax.random.split(key)

    # g.ndata['p'] : node features
    x = jax.random.normal(k_feat, (N_NODES, IN_DIM), jnp.float32)
    # Fixed-degree circulant graph: node n's in-neighbors are n+1 .. n+K (mod N).
    shifts = tuple(range(1, K_NEIGH + 1))
    neighbors = (jnp.arange(N_NODES)[:, None]
                 + jnp.asarray(shifts, jnp.int32)[None, :]) % N_NODES

    params = init_net_params(k_param, IN_DIM, HIDDEN, N_CLASSES)

    out = jax.block_until_ready(net_forward(x, shifts, params))
    assert out.shape == (N_NODES, N_CLASSES) and out.dtype == jnp.float32

    ref = jax.block_until_ready(net_reference(x, neighbors, params))
    max_err = float(jnp.max(jnp.abs(out - ref)))
    assert jnp.allclose(out, ref, atol=1e-4, rtol=1e-4), (
        f"kernel/reference mismatch: max abs err {max_err:.3e}")
    print("KERNEL_OK")
</pallas_src>

<mosaic_0001>
module attributes {stable_mosaic.version = 11 : i64} {
  func.func @net_kernel(%arg0: i32, %arg1: memref<16x32xf32, #tpu.memory_space<vmem>>, %arg2: memref<4x32x32xf32, #tpu.memory_space<vmem>>, %arg3: memref<4x32x32xf32, #tpu.memory_space<vmem>>, %arg4: memref<4x1x32xf32, #tpu.memory_space<vmem>>, %arg5: memref<32x32xf32, #tpu.memory_space<vmem>>, %arg6: memref<32x32xf32, #tpu.memory_space<vmem>>, %arg7: memref<1x32xf32, #tpu.memory_space<vmem>>, %arg8: memref<4x32x32xf32, #tpu.memory_space<vmem>>, %arg9: memref<4x32x32xf32, #tpu.memory_space<vmem>>, %arg10: memref<4x1x32xf32, #tpu.memory_space<vmem>>, %arg11: memref<32x32xf32, #tpu.memory_space<vmem>>, %arg12: memref<32x32xf32, #tpu.memory_space<vmem>>, %arg13: memref<1x32xf32, #tpu.memory_space<vmem>>, %arg14: memref<32x128xf32, #tpu.memory_space<vmem>>, %arg15: memref<1x128xf32, #tpu.memory_space<vmem>>, %arg16: memref<16x128xf32, #tpu.memory_space<vmem>>) attributes {dimension_semantics = [#tpu.dimension_semantics<arbitrary>], iteration_bounds = array<i64: 1>, scalar_prefetch = 0 : i64, scratch_operands = 0 : i64, tpu.core_type = #tpu.core_type<tc>, window_params = [{pipeline_mode = #tpu.pipeline_mode<synchronous>, transform_indices = @transform_0, window_bounds = array<i64: 16, 32>}, {pipeline_mode = #tpu.pipeline_mode<synchronous>, transform_indices = @transform_1, window_bounds = array<i64: 4, 32, 32>}, {pipeline_mode = #tpu.pipeline_mode<synchronous>, transform_indices = @transform_2, window_bounds = array<i64: 4, 32, 32>}, {pipeline_mode = #tpu.pipeline_mode<synchronous>, transform_indices = @transform_3, window_bounds = array<i64: 4, 1, 32>}, {pipeline_mode = #tpu.pipeline_mode<synchronous>, transform_indices = @transform_4, window_bounds = array<i64: 32, 32>}, {pipeline_mode = #tpu.pipeline_mode<synchronous>, transform_indices = @transform_5, window_bounds = array<i64: 32, 32>}, {pipeline_mode = #tpu.pipeline_mode<synchronous>, transform_indices = @transform_6, window_bounds = array<i64: 1, 32>}, {pipeline_mode = #tpu.pipeline_mode<synchronous>, transform_indices = @transform_7, window_bounds = array<i64: 4, 32, 32>}, {pipeline_mode = #tpu.pipeline_mode<synchronous>, transform_indices = @transform_8, window_bounds = array<i64: 4, 32, 32>}, {pipeline_mode = #tpu.pipeline_mode<synchronous>, transform_indices = @transform_9, window_bounds = array<i64: 4, 1, 32>}, {pipeline_mode = #tpu.pipeline_mode<synchronous>, transform_indices = @transform_10, window_bounds = array<i64: 32, 32>}, {pipeline_mode = #tpu.pipeline_mode<synchronous>, transform_indices = @transform_11, window_bounds = array<i64: 32, 32>}, {pipeline_mode = #tpu.pipeline_mode<synchronous>, transform_indices = @transform_12, window_bounds = array<i64: 1, 32>}, {pipeline_mode = #tpu.pipeline_mode<synchronous>, transform_indices = @transform_13, window_bounds = array<i64: 32, 128>}, {pipeline_mode = #tpu.pipeline_mode<synchronous>, transform_indices = @transform_14, window_bounds = array<i64: 1, 128>}, {pipeline_mode = #tpu.pipeline_mode<synchronous>, transform_indices = @transform_15, window_bounds = array<i64: 16, 128>}]} {
    %c0 = arith.constant 0 : index
    %c0_0 = arith.constant 0 : index
    %0 = vector.load %arg1[%c0, %c0_0] : memref<16x32xf32, #tpu.memory_space<vmem>>, vector<16x32xf32>
    %c0_1 = arith.constant 0 : index
    %c0_2 = arith.constant 0 : index
    %c0_3 = arith.constant 0 : index
    %1 = vector.load %arg2[%c0_1, %c0_2, %c0_3] : memref<4x32x32xf32, #tpu.memory_space<vmem>>, vector<1x32x32xf32>
    %2 = vector.shape_cast %1 : vector<1x32x32xf32> to vector<32x32xf32>
    %cst = arith.constant dense<0.000000e+00> : vector<16x32xf32>
    %3 = tpu.matmul %0, %2, %cst {dimension_numbers = #tpu.dot_dimension_numbers<[1], [0], [0], [1], [0, 0, 1, 1], [], []>} : vector<16x32xf32>, vector<32x32xf32>, vector<16x32xf32> -> vector<16x32xf32>
    %c0_4 = arith.constant 0 : index
    %c0_5 = arith.constant 0 : index
    %c0_6 = arith.constant 0 : index
    %4 = vector.load %arg4[%c0_4, %c0_5, %c0_6] : memref<4x1x32xf32, #tpu.memory_space<vmem>>, vector<1x1x32xf32>
    %5 = vector.shape_cast %4 : vector<1x1x32xf32> to vector<1x32xf32>
    %6 = vector.broadcast %5 : vector<1x32xf32> to vector<16x32xf32>
    %7 = arith.addf %3, %6 : vector<16x32xf32>
    %c1 = arith.constant 1 : index
    %c0_7 = arith.constant 0 : index
    %c0_8 = arith.constant 0 : index
    %8 = vector.load %arg2[%c1, %c0_7, %c0_8] : memref<4x32x32xf32, #tpu.memory_space<vmem>>, vector<1x32x32xf32>
    %9 = vector.shape_cast %8 : vector<1x32x32xf32> to vector<32x32xf32>
    %cst_9 = arith.constant dense<0.000000e+00> : vector<16x32xf32>
    %10 = tpu.matmul %0, %9, %cst_9 {dimension_numbers = #tpu.dot_dimension_numbers<[1], [0], [0], [1], [0, 0, 1, 1], [], []>} : vector<16x32xf32>, vector<32x32xf32>, vector<16x32xf32> -> vector<16x32xf32>
    %c1_10 = arith.constant 1 : index
    %c0_11 = arith.constant 0 : index
    %c0_12 = arith.constant 0 : index
    %11 = vector.load %arg4[%c1_10, %c0_11, %c0_12] : memref<4x1x32xf32, #tpu.memory_space<vmem>>, vector<1x1x32xf32>
    %12 = vector.shape_cast %11 : vector<1x1x32xf32> to vector<1x32xf32>
    %13 = vector.broadcast %12 : vector<1x32xf32> to vector<16x32xf32>
    %14 = arith.addf %10, %13 : vector<16x32xf32>
    %c2 = arith.constant 2 : index
    %c0_13 = arith.constant 0 : index
    %c0_14 = arith.constant 0 : index
    %15 = vector.load %arg2[%c2, %c0_13, %c0_14] : memref<4x32x32xf32, #tpu.memory_space<vmem>>, vector<1x32x32xf32>
    %16 = vector.shape_cast %15 : vector<1x32x32xf32> to vector<32x32xf32>
    %cst_15 = arith.constant dense<0.000000e+00> : vector<16x32xf32>
    %17 = tpu.matmul %0, %16, %cst_15 {dimension_numbers = #tpu.dot_dimension_numbers<[1], [0], [0], [1], [0, 0, 1, 1], [], []>} : vector<16x32xf32>, vector<32x32xf32>, vector<16x32xf32> -> vector<16x32xf32>
    %c2_16 = arith.constant 2 : index
    %c0_17 = arith.constant 0 : index
    %c0_18 = arith.constant 0 : index
    %18 = vector.load %arg4[%c2_16, %c0_17, %c0_18] : memref<4x1x32xf32, #tpu.memory_space<vmem>>, vector<1x1x32xf32>
    %19 = vector.shape_cast %18 : vector<1x1x32xf32> to vector<1x32xf32>
    %20 = vector.broadcast %19 : vector<1x32xf32> to vector<16x32xf32>
    %21 = arith.addf %17, %20 : vector<16x32xf32>
    %c3 = arith.constant 3 : index
    %c0_19 = arith.constant 0 : index
    %c0_20 = arith.constant 0 : index
    %22 = vector.load %arg2[%c3, %c0_19, %c0_20] : memref<4x32x32xf32, #tpu.memory_space<vmem>>, vector<1x32x32xf32>
    %23 = vector.shape_cast %22 : vector<1x32x32xf32> to vector<32x32xf32>
    %cst_21 = arith.constant dense<0.000000e+00> : vector<16x32xf32>
    %24 = tpu.matmul %0, %23, %cst_21 {dimension_numbers = #tpu.dot_dimension_numbers<[1], [0], [0], [1], [0, 0, 1, 1], [], []>} : vector<16x32xf32>, vector<32x32xf32>, vector<16x32xf32> -> vector<16x32xf32>
    %c3_22 = arith.constant 3 : index
    %c0_23 = arith.constant 0 : index
    %c0_24 = arith.constant 0 : index
    %25 = vector.load %arg4[%c3_22, %c0_23, %c0_24] : memref<4x1x32xf32, #tpu.memory_space<vmem>>, vector<1x1x32xf32>
    %26 = vector.shape_cast %25 : vector<1x1x32xf32> to vector<1x32xf32>
    %27 = vector.broadcast %26 : vector<1x32xf32> to vector<16x32xf32>
    %28 = arith.addf %24, %27 : vector<16x32xf32>
    %cst_25 = arith.constant 0.000000e+00 : f32
    %29 = vector.broadcast %cst_25 : f32 to vector<16x32xf32>
    %c15_i32 = arith.constant 15 : i32
    %30 = tpu.dynamic_rotate %7 by %c15_i32 dim 0 : vector<16x32xf32>, i32 -> vector<16x32xf32>
    %c15_i32_26 = arith.constant 15 : i32
    %31 = tpu.dynamic_rotate %14 by %c15_i32_26 dim 0 : vector<16x32xf32>, i32 -> vector<16x32xf32>
    %c15_i32_27 = arith.constant 15 : i32
    %32 = tpu.dynamic_rotate %21 by %c15_i32_27 dim 0 : vector<16x32xf32>, i32 -> vector<16x32xf32>
    %c15_i32_28 = arith.constant 15 : i32
    %33 = tpu.dynamic_rotate %28 by %c15_i32_28 dim 0 : vector<16x32xf32>, i32 -> vector<16x32xf32>
    %34 = arith.negf %30 : vector<16x32xf32>
    %35 = math.exp %34 : vector<16x32xf32>
    %cst_29 = arith.constant 1.000000e+00 : f32
    %36 = vector.broadcast %cst_29 : f32 to vector<16x32xf32>
    %37 = arith.addf %36, %35 : vector<16x32xf32>
    %38 = arith.divf %36, %37 : vector<16x32xf32>
    %39 = arith.negf %31 : vector<16x32xf32>
    %40 = math.exp %39 : vector<16x32xf32>
    %cst_30 = arith.constant 1.000000e+00 : f32
    %41 = vector.broadcast %cst_30 : f32 to vector<16x32xf32>
    %42 = arith.addf %41, %40 : vector<16x32xf32>
    %43 = arith.divf %41, %42 : vector<16x32xf32>
    %44 = math.tanh %32 : vector<16x32xf32>
    %45 = arith.negf %33 : vector<16x32xf32>
    %46 = math.exp %45 : vector<16x32xf32>
    %cst_31 = arith.constant 1.000000e+00 : f32
    %47 = vector.broadcast %cst_31 : f32 to vector<16x32xf32>
    %48 = arith.addf %47, %46 : vector<16x32xf32>
    %49 = arith.divf %47, %48 : vector<16x32xf32>
    %50 = arith.mulf %43, %29 : vector<16x32xf32>
    %51 = arith.mulf %38, %44 : vector<16x32xf32>
    %52 = arith.addf %50, %51 : vector<16x32xf32>
    %53 = math.tanh %52 : vector<16x32xf32>
    %54 = arith.mulf %49, %53 : vector<16x32xf32>
    %c14_i32 = arith.constant 14 : i32
    %55 = tpu.dynamic_rotate %7 by %c14_i32 dim 0 : vector<16x32xf32>, i32 -> vector<16x32xf32>
    %c14_i32_32 = arith.constant 14 : i32
    %56 = tpu.dynamic_rotate %14 by %c14_i32_32 dim 0 : vector<16x32xf32>, i32 -> vector<16x32xf32>
    %c14_i32_33 = arith.constant 14 : i32
    %57 = tpu.dynamic_rotate %21 by %c14_i32_33 dim 0 : vector<16x32xf32>, i32 -> vector<16x32xf32>
    %c14_i32_34 = arith.constant 14 : i32
    %58 = tpu.dynamic_rotate %28 by %c14_i32_34 dim 0 : vector<16x32xf32>, i32 -> vector<16x32xf32>
    %c0_35 = arith.constant 0 : index
    %c0_36 = arith.constant 0 : index
    %c0_37 = arith.constant 0 : index
    %59 = vector.load %arg3[%c0_35, %c0_36, %c0_37] : memref<4x32x32xf32, #tpu.memory_space<vmem>>, vector<1x32x32xf32>
    %60 = vector.shape_cast %59 : vector<1x32x32xf32> to vector<32x32xf32>
    %cst_38 = arith.constant dense<0.000000e+00> : vector<16x32xf32>
    %61 = tpu.matmul %54, %60, %cst_38 {dimension_numbers = #tpu.dot_dimension_numbers<[1], [0], [0], [1], [0, 0, 1, 1], [], []>} : vector<16x32xf32>, vector<32x32xf32>, vector<16x32xf32> -> vector<16x32xf32>
    %62 = arith.addf %55, %61 : vector<16x32xf32>
    %c1_39 = arith.constant 1 : index
    %c0_40 = arith.constant 0 : index
    %c0_41 = arith.constant 0 : index
    %63 = vector.load %arg3[%c1_39, %c0_40, %c0_41] : memref<4x32x32xf32, #tpu.memory_space<vmem>>, vector<1x32x32xf32>
    %64 = vector.shape_cast %63 : vector<1x32x32xf32> to vector<32x32xf32>
    %cst_42 = arith.constant dense<0.000000e+00> : vector<16x32xf32>
    %65 = tpu.matmul %54, %64, %cst_42 {dimension_numbers = #tpu.dot_dimension_numbers<[1], [0], [0], [1], [0, 0, 1, 1], [], []>} : vector<16x32xf32>, vector<32x32xf32>, vector<16x32xf32> -> vector<16x32xf32>
    %66 = arith.addf %56, %65 : vector<16x32xf32>
    %c2_43 = arith.constant 2 : index
    %c0_44 = arith.constant 0 : index
    %c0_45 = arith.constant 0 : index
    %67 = vector.load %arg3[%c2_43, %c0_44, %c0_45] : memref<4x32x32xf32, #tpu.memory_space<vmem>>, vector<1x32x32xf32>
    %68 = vector.shape_cast %67 : vector<1x32x32xf32> to vector<32x32xf32>
    %cst_46 = arith.constant dense<0.000000e+00> : vector<16x32xf32>
    %69 = tpu.matmul %54, %68, %cst_46 {dimension_numbers = #tpu.dot_dimension_numbers<[1], [0], [0], [1], [0, 0, 1, 1], [], []>} : vector<16x32xf32>, vector<32x32xf32>, vector<16x32xf32> -> vector<16x32xf32>
    %70 = arith.addf %57, %69 : vector<16x32xf32>
    %c3_47 = arith.constant 3 : index
    %c0_48 = arith.constant 0 : index
    %c0_49 = arith.constant 0 : index
    %71 = vector.load %arg3[%c3_47, %c0_48, %c0_49] : memref<4x32x32xf32, #tpu.memory_space<vmem>>, vector<1x32x32xf32>
    %72 = vector.shape_cast %71 : vector<1x32x32xf32> to vector<32x32xf32>
    %cst_50 = arith.constant dense<0.000000e+00> : vector<16x32xf32>
    %73 = tpu.matmul %54, %72, %cst_50 {dimension_numbers = #tpu.dot_dimension_numbers<[1], [0], [0], [1], [0, 0, 1, 1], [], []>} : vector<16x32xf32>, vector<32x32xf32>, vector<16x32xf32> -> vector<16x32xf32>
    %74 = arith.addf %58, %73 : vector<16x32xf32>
    %75 = arith.negf %62 : vector<16x32xf32>
    %76 = math.exp %75 : vector<16x32xf32>
    %cst_51 = arith.constant 1.000000e+00 : f32
    %77 = vector.broadcast %cst_51 : f32 to vector<16x32xf32>
    %78 = arith.addf %77, %76 : vector<16x32xf32>
    %79 = arith.divf %77, %78 : vector<16x32xf32>
    %80 = arith.negf %66 : vector<16x32xf32>
    %81 = math.exp %80 : vector<16x32xf32>
    %cst_52 = arith.constant 1.000000e+00 : f32
    %82 = vector.broadcast %cst_52 : f32 to vector<16x32xf32>
    %83 = arith.addf %82, %81 : vector<16x32xf32>
    %84 = arith.divf %82, %83 : vector<16x32xf32>
    %85 = math.tanh %70 : vector<16x32xf32>
    %86 = arith.negf %74 : vector<16x32xf32>
    %87 = math.exp %86 : vector<16x32xf32>
    %cst_53 = arith.constant 1.000000e+00 : f32
    %88 = vector.broadcast %cst_53 : f32 to vector<16x32xf32>
    %89 = arith.addf %88, %87 : vector<16x32xf32>
    %90 = arith.divf %88, %89 : vector<16x32xf32>
    %91 = arith.mulf %84, %52 : vector<16x32xf32>
    %92 = arith.mulf %79, %85 : vector<16x32xf32>
    %93 = arith.addf %91, %92 : vector<16x32xf32>
    %94 = math.tanh %93 : vector<16x32xf32>
    %95 = arith.mulf %90, %94 : vector<16x32xf32>
    %c13_i32 = arith.constant 13 : i32
    %96 = tpu.dynamic_rotate %7 by %c13_i32 dim 0 : vector<16x32xf32>, i32 -> vector<16x32xf32>
    %c13_i32_54 = arith.constant 13 : i32
    %97 = tpu.dynamic_rotate %14 by %c13_i32_54 dim 0 : vector<16x32xf32>, i32 -> vector<16x32xf32>
    %c13_i32_55 = arith.constant 13 : i32
    %98 = tpu.dynamic_rotate %21 by %c13_i32_55 dim 0 : vector<16x32xf32>, i32 -> vector<16x32xf32>
    %c13_i32_56 = arith.constant 13 : i32
    %99 = tpu.dynamic_rotate %28 by %c13_i32_56 dim 0 : vector<16x32xf32>, i32 -> vector<16x32xf32>
    %c0_57 = arith.constant 0 : index
    %c0_58 = arith.constant 0 : index
    %c0_59 = arith.constant 0 : index
    %100 = vector.load %arg3[%c0_57, %c0_58, %c0_59] : memref<4x32x32xf32, #tpu.memory_space<vmem>>, vector<1x32x32xf32>
    %101 = vector.shape_cast %100 : vector<1x32x32xf32> to vector<32x32xf32>
    %cst_60 = arith.constant dense<0.000000e+00> : vector<16x32xf32>
    %102 = tpu.matmul %95, %101, %cst_60 {dimension_numbers = #tpu.dot_dimension_numbers<[1], [0], [0], [1], [0, 0, 1, 1], [], []>} : vector<16x32xf32>, vector<32x32xf32>, vector<16x32xf32> -> vector<16x32xf32>
    %103 = arith.addf %96, %102 : vector<16x32xf32>
    %c1_61 = arith.constant 1 : index
    %c0_62 = arith.constant 0 : index
    %c0_63 = arith.constant 0 : index
    %104 = vector.load %arg3[%c1_61, %c0_62, %c0_63] : memref<4x32x32xf32, #tpu.memory_space<vmem>>, vector<1x32x32xf32>
    %105 = vector.shape_cast %104 : vector<1x32x32xf32> to vector<32x32xf32>
    %cst_64 = arith.constant dense<0.000000e+00> : vector<16x32xf32>
    %106 = tpu.matmul %95, %105, %cst_64 {dimension_numbers = #tpu.dot_dimension_numbers<[1], [0], [0], [1], [0, 0, 1, 1], [], []>} : vector<16x32xf32>, vector<32x32xf32>, vector<16x32xf32> -> vector<16x32xf32>
    %107 = arith.addf %97, %106 : vector<16x32xf32>
    %c2_65 = arith.constant 2 : index
    %c0_66 = arith.constant 0 : index
    %c0_67 = arith.constant 0 : index
    %108 = vector.load %arg3[%c2_65, %c0_66, %c0_67] : memref<4x32x32xf32, #tpu.memory_space<vmem>>, vector<1x32x32xf32>
    %109 = vector.shape_cast %108 : vector<1x32x32xf32> to vector<32x32xf32>
    %cst_68 = arith.constant dense<0.000000e+00> : vector<16x32xf32>
    %110 = tpu.matmul %95, %109, %cst_68 {dimension_numbers = #tpu.dot_dimension_numbers<[1], [0], [0], [1], [0, 0, 1, 1], [], []>} : vector<16x32xf32>, vector<32x32xf32>, vector<16x32xf32> -> vector<16x32xf32>
    %111 = arith.addf %98, %110 : vector<16x32xf32>
    %c3_69 = arith.constant 3 : index
    %c0_70 = arith.constant 0 : index
    %c0_71 = arith.constant 0 : index
    %112 = vector.load %arg3[%c3_69, %c0_70, %c0_71] : memref<4x32x32xf32, #tpu.memory_space<vmem>>, vector<1x32x32xf32>
    %113 = vector.shape_cast %112 : vector<1x32x32xf32> to vector<32x32xf32>
    %cst_72 = arith.constant dense<0.000000e+00> : vector<16x32xf32>
    %114 = tpu.matmul %95, %113, %cst_72 {dimension_numbers = #tpu.dot_dimension_numbers<[1], [0], [0], [1], [0, 0, 1, 1], [], []>} : vector<16x32xf32>, vector<32x32xf32>, vector<16x32xf32> -> vector<16x32xf32>
    %115 = arith.addf %99, %114 : vector<16x32xf32>
    %116 = arith.negf %103 : vector<16x32xf32>
    %117 = math.exp %116 : vector<16x32xf32>
    %cst_73 = arith.constant 1.000000e+00 : f32
    %118 = vector.broadcast %cst_73 : f32 to vector<16x32xf32>
    %119 = arith.addf %118, %117 : vector<16x32xf32>
    %120 = arith.divf %118, %119 : vector<16x32xf32>
    %121 = arith.negf %107 : vector<16x32xf32>
    %122 = math.exp %121 : vector<16x32xf32>
    %cst_74 = arith.constant 1.000000e+00 : f32
    %123 = vector.broadcast %cst_74 : f32 to vector<16x32xf32>
    %124 = arith.addf %123, %122 : vector<16x32xf32>
    %125 = arith.divf %123, %124 : vector<16x32xf32>
    %126 = math.tanh %111 : vector<16x32xf32>
    %127 = arith.negf %115 : vector<16x32xf32>
    %128 = math.exp %127 : vector<16x32xf32>
    %cst_75 = arith.constant 1.000000e+00 : f32
    %129 = vector.broadcast %cst_75 : f32 to vector<16x32xf32>
    %130 = arith.addf %129, %128 : vector<16x32xf32>
    %131 = arith.divf %129, %130 : vector<16x32xf32>
    %132 = arith.mulf %125, %93 : vector<16x32xf32>
    %133 = arith.mulf %120, %126 : vector<16x32xf32>
    %134 = arith.addf %132, %133 : vector<16x32xf32>
    %135 = math.tanh %134 : vector<16x32xf32>
    %136 = arith.mulf %131, %135 : vector<16x32xf32>
    %c12_i32 = arith.constant 12 : i32
    %137 = tpu.dynamic_rotate %7 by %c12_i32 dim 0 : vector<16x32xf32>, i32 -> vector<16x32xf32>
    %c12_i32_76 = arith.constant 12 : i32
    %138 = tpu.dynamic_rotate %14 by %c12_i32_76 dim 0 : vector<16x32xf32>, i32 -> vector<16x32xf32>
    %c12_i32_77 = arith.constant 12 : i32
    %139 = tpu.dynamic_rotate %21 by %c12_i32_77 dim 0 : vector<16x32xf32>, i32 -> vector<16x32xf32>
    %c12_i32_78 = arith.constant 12 : i32
    %140 = tpu.dynamic_rotate %28 by %c12_i32_78 dim 0 : vector<16x32xf32>, i32 -> vector<16x32xf32>
    %c0_79 = arith.constant 0 : index
    %c0_80 = arith.constant 0 : index
    %c0_81 = arith.constant 0 : index
    %141 = vector.load %arg3[%c0_79, %c0_80, %c0_81] : memref<4x32x32xf32, #tpu.memory_space<vmem>>, vector<1x32x32xf32>
    %142 = vector.shape_cast %141 : vector<1x32x32xf32> to vector<32x32xf32>
    %cst_82 = arith.constant dense<0.000000e+00> : vector<16x32xf32>
    %143 = tpu.matmul %136, %142, %cst_82 {dimension_numbers = #tpu.dot_dimension_numbers<[1], [0], [0], [1], [0, 0, 1, 1], [], []>} : vector<16x32xf32>, vector<32x32xf32>, vector<16x32xf32> -> vector<16x32xf32>
    %144 = arith.addf %137, %143 : vector<16x32xf32>
    %c1_83 = arith.constant 1 : index
    %c0_84 = arith.constant 0 : index
    %c0_85 = arith.constant 0 : index
    %145 = vector.load %arg3[%c1_83, %c0_84, %c0_85] : memref<4x32x32xf32, #tpu.memory_space<vmem>>, vector<1x32x32xf32>
    %146 = vector.shape_cast %145 : vector<1x32x32xf32> to vector<32x32xf32>
    %cst_86 = arith.constant dense<0.000000e+00> : vector<16x32xf32>
    %147 = tpu.matmul %136, %146, %cst_86 {dimension_numbers = #tpu.dot_dimension_numbers<[1], [0], [0], [1], [0, 0, 1, 1], [], []>} : vector<16x32xf32>, vector<32x32xf32>, vector<16x32xf32> -> vector<16x32xf32>
    %148 = arith.addf %138, %147 : vector<16x32xf32>
    %c2_87 = arith.constant 2 : index
    %c0_88 = arith.constant 0 : index
    %c0_89 = arith.constant 0 : index
    %149 = vector.load %arg3[%c2_87, %c0_88, %c0_89] : memref<4x32x32xf32, #tpu.memory_space<vmem>>, vector<1x32x32xf32>
    %150 = vector.shape_cast %149 : vector<1x32x32xf32> to vector<32x32xf32>
    %cst_90 = arith.constant dense<0.000000e+00> : vector<16x32xf32>
    %151 = tpu.matmul %136, %150, %cst_90 {dimension_numbers = #tpu.dot_dimension_numbers<[1], [0], [0], [1], [0, 0, 1, 1], [], []>} : vector<16x32xf32>, vector<32x32xf32>, vector<16x32xf32> -> vector<16x32xf32>
    %152 = arith.addf %139, %151 : vector<16x32xf32>
    %c3_91 = arith.constant 3 : index
    %c0_92 = arith.constant 0 : index
    %c0_93 = arith.constant 0 : index
    %153 = vector.load %arg3[%c3_91, %c0_92, %c0_93] : memref<4x32x32xf32, #tpu.memory_space<vmem>>, vector<1x32x32xf32>
    %154 = vector.shape_cast %153 : vector<1x32x32xf32> to vector<32x32xf32>
    %cst_94 = arith.constant dense<0.000000e+00> : vector<16x32xf32>
    %155 = tpu.matmul %136, %154, %cst_94 {dimension_numbers = #tpu.dot_dimension_numbers<[1], [0], [0], [1], [0, 0, 1, 1], [], []>} : vector<16x32xf32>, vector<32x32xf32>, vector<16x32xf32> -> vector<16x32xf32>
    %156 = arith.addf %140, %155 : vector<16x32xf32>
    %157 = arith.negf %144 : vector<16x32xf32>
    %158 = math.exp %157 : vector<16x32xf32>
    %cst_95 = arith.constant 1.000000e+00 : f32
    %159 = vector.broadcast %cst_95 : f32 to vector<16x32xf32>
    %160 = arith.addf %159, %158 : vector<16x32xf32>
    %161 = arith.divf %159, %160 : vector<16x32xf32>
    %162 = arith.negf %148 : vector<16x32xf32>
    %163 = math.exp %162 : vector<16x32xf32>
    %cst_96 = arith.constant 1.000000e+00 : f32
    %164 = vector.broadcast %cst_96 : f32 to vector<16x32xf32>
    %165 = arith.addf %164, %163 : vector<16x32xf32>
    %166 = arith.divf %164, %165 : vector<16x32xf32>
    %167 = math.tanh %152 : vector<16x32xf32>
    %168 = arith.negf %156 : vector<16x32xf32>
    %169 = math.exp %168 : vector<16x32xf32>
    %cst_97 = arith.constant 1.000000e+00 : f32
    %170 = vector.broadcast %cst_97 : f32 to vector<16x32xf32>
    %171 = arith.addf %170, %169 : vector<16x32xf32>
    %172 = arith.divf %170, %171 : vector<16x32xf32>
    %173 = arith.mulf %166, %134 : vector<16x32xf32>
    %174 = arith.mulf %161, %167 : vector<16x32xf32>
    %175 = arith.addf %173, %174 : vector<16x32xf32>
    %176 = math.tanh %175 : vector<16x32xf32>
    %177 = arith.mulf %172, %176 : vector<16x32xf32>
    %c0_98 = arith.constant 0 : index
    %c0_99 = arith.constant 0 : index
    %178 = vector.load %arg5[%c0_98, %c0_99] : memref<32x32xf32, #tpu.memory_space<vmem>>, vector<32x32xf32>
    %cst_100 = arith.constant dense<0.000000e+00> : vector<16x32xf32>
    %179 = tpu.matmul %0, %178, %cst_100 {dimension_numbers = #tpu.dot_dimension_numbers<[1], [0], [0], [1], [0, 0, 1, 1], [], []>} : vector<16x32xf32>, vector<32x32xf32>, vector<16x32xf32> -> vector<16x32xf32>
    %c0_101 = arith.constant 0 : index
    %c0_102 = arith.constant 0 : index
    %180 = vector.load %arg6[%c0_101, %c0_102] : memref<32x32xf32, #tpu.memory_space<vmem>>, vector<32x32xf32>
    %cst_103 = arith.constant dense<0.000000e+00> : vector<16x32xf32>
    %181 = tpu.matmul %177, %180, %cst_103 {dimension_numbers = #tpu.dot_dimension_numbers<[1], [0], [0], [1], [0, 0, 1, 1], [], []>} : vector<16x32xf32>, vector<32x32xf32>, vector<16x32xf32> -> vector<16x32xf32>
    %182 = arith.addf %179, %181 : vector<16x32xf32>
    %c0_104 = arith.constant 0 : index
    %c0_105 = arith.constant 0 : index
    %183 = vector.load %arg7[%c0_104, %c0_105] : memref<1x32xf32, #tpu.memory_space<vmem>>, vector<1x32xf32>
    %184 = vector.broadcast %183 : vector<1x32xf32> to vector<16x32xf32>
    %185 = arith.addf %182, %184 : vector<16x32xf32>
    %c0_106 = arith.constant 0 : index
    %c0_107 = arith.constant 0 : index
    %c0_108 = arith.constant 0 : index
    %186 = vector.load %arg8[%c0_106, %c0_107, %c0_108] : memref<4x32x32xf32, #tpu.memory_space<vmem>>, vector<1x32x32xf32>
    %187 = vector.shape_cast %186 : vector<1x32x32xf32> to vector<32x32xf32>
    %cst_109 = arith.constant dense<0.000000e+00> : vector<16x32xf32>
    %188 = tpu.matmul %185, %187, %cst_109 {dimension_numbers = #tpu.dot_dimension_numbers<[1], [0], [0], [1], [0, 0, 1, 1], [], []>} : vector<16x32xf32>, vector<32x32xf32>, vector<16x32xf32> -> vector<16x32xf32>
    %c0_110 = arith.constant 0 : index
    %c0_111 = arith.constant 0 : index
    %c0_112 = arith.constant 0 : index
    %189 = vector.load %arg10[%c0_110, %c0_111, %c0_112] : memref<4x1x32xf32, #tpu.memory_space<vmem>>, vector<1x1x32xf32>
    %190 = vector.shape_cast %189 : vector<1x1x32xf32> to vector<1x32xf32>
    %191 = vector.broadcast %190 : vector<1x32xf32> to vector<16x32xf32>
    %192 = arith.addf %188, %191 : vector<16x32xf32>
    %c1_113 = arith.constant 1 : index
    %c0_114 = arith.constant 0 : index
    %c0_115 = arith.constant 0 : index
    %193 = vector.load %arg8[%c1_113, %c0_114, %c0_115] : memref<4x32x32xf32, #tpu.memory_space<vmem>>, vector<1x32x32xf32>
    %194 = vector.shape_cast %193 : vector<1x32x32xf32> to vector<32x32xf32>
    %cst_116 = arith.constant dense<0.000000e+00> : vector<16x32xf32>
    %195 = tpu.matmul %185, %194, %cst_116 {dimension_numbers = #tpu.dot_dimension_numbers<[1], [0], [0], [1], [0, 0, 1, 1], [], []>} : vector<16x32xf32>, vector<32x32xf32>, vector<16x32xf32> -> vector<16x32xf32>
    %c1_117 = arith.constant 1 : index
    %c0_118 = arith.constant 0 : index
    %c0_119 = arith.constant 0 : index
    %196 = vector.load %arg10[%c1_117, %c0_118, %c0_119] : memref<4x1x32xf32, #tpu.memory_space<vmem>>, vector<1x1x32xf32>
    %197 = vector.shape_cast %196 : vector<1x1x32xf32> to vector<1x32xf32>
    %198 = vector.broadcast %197 : vector<1x32xf32> to vector<16x32xf32>
    %199 = arith.addf %195, %198 : vector<16x32xf32>
    %c2_120 = arith.constant 2 : index
    %c0_121 = arith.constant 0 : index
    %c0_122 = arith.constant 0 : index
    %200 = vector.load %arg8[%c2_120, %c0_121, %c0_122] : memref<4x32x32xf32, #tpu.memory_space<vmem>>, vector<1x32x32xf32>
    %201 = vector.shape_cast %200 : vector<1x32x32xf32> to vector<32x32xf32>
    %cst_123 = arith.constant dense<0.000000e+00> : vector<16x32xf32>
    %202 = tpu.matmul %185, %201, %cst_123 {dimension_numbers = #tpu.dot_dimension_numbers<[1], [0], [0], [1], [0, 0, 1, 1], [], []>} : vector<16x32xf32>, vector<32x32xf32>, vector<16x32xf32> -> vector<16x32xf32>
    %c2_124 = arith.constant 2 : index
    %c0_125 = arith.constant 0 : index
    %c0_126 = arith.constant 0 : index
    %203 = vector.load %arg10[%c2_124, %c0_125, %c0_126] : memref<4x1x32xf32, #tpu.memory_space<vmem>>, vector<1x1x32xf32>
    %204 = vector.shape_cast %203 : vector<1x1x32xf32> to vector<1x32xf32>
    %205 = vector.broadcast %204 : vector<1x32xf32> to vector<16x32xf32>
    %206 = arith.addf %202, %205 : vector<16x32xf32>
    %c3_127 = arith.constant 3 : index
    %c0_128 = arith.constant 0 : index
    %c0_129 = arith.constant 0 : index
    %207 = vector.load %arg8[%c3_127, %c0_128, %c0_129] : memref<4x32x32xf32, #tpu.memory_space<vmem>>, vector<1x32x32xf32>
    %208 = vector.shape_cast %207 : vector<1x32x32xf32> to vector<32x32xf32>
    %cst_130 = arith.constant dense<0.000000e+00> : vector<16x32xf32>
    %209 = tpu.matmul %185, %208, %cst_130 {dimension_numbers = #tpu.dot_dimension_numbers<[1], [0], [0], [1], [0, 0, 1, 1], [], []>} : vector<16x32xf32>, vector<32x32xf32>, vector<16x32xf32> -> vector<16x32xf32>
    %c3_131 = arith.constant 3 : index
    %c0_132 = arith.constant 0 : index
    %c0_133 = arith.constant 0 : index
    %210 = vector.load %arg10[%c3_131, %c0_132, %c0_133] : memref<4x1x32xf32, #tpu.memory_space<vmem>>, vector<1x1x32xf32>
    %211 = vector.shape_cast %210 : vector<1x1x32xf32> to vector<1x32xf32>
    %212 = vector.broadcast %211 : vector<1x32xf32> to vector<16x32xf32>
    %213 = arith.addf %209, %212 : vector<16x32xf32>
    %cst_134 = arith.constant 0.000000e+00 : f32
    %214 = vector.broadcast %cst_134 : f32 to vector<16x32xf32>
    %c15_i32_135 = arith.constant 15 : i32
    %215 = tpu.dynamic_rotate %192 by %c15_i32_135 dim 0 : vector<16x32xf32>, i32 -> vector<16x32xf32>
    %c15_i32_136 = arith.constant 15 : i32
    %216 = tpu.dynamic_rotate %199 by %c15_i32_136 dim 0 : vector<16x32xf32>, i32 -> vector<16x32xf32>
    %c15_i32_137 = arith.constant 15 : i32
    %217 = tpu.dynamic_rotate %206 by %c15_i32_137 dim 0 : vector<16x32xf32>, i32 -> vector<16x32xf32>
    %c15_i32_138 = arith.constant 15 : i32
    %218 = tpu.dynamic_rotate %213 by %c15_i32_138 dim 0 : vector<16x32xf32>, i32 -> vector<16x32xf32>
    %219 = arith.negf %215 : vector<16x32xf32>
    %220 = math.exp %219 : vector<16x32xf32>
    %cst_139 = arith.constant 1.000000e+00 : f32
    %221 = vector.broadcast %cst_139 : f32 to vector<16x32xf32>
    %222 = arith.addf %221, %220 : vector<16x32xf32>
    %223 = arith.divf %221, %222 : vector<16x32xf32>
    %224 = arith.negf %216 : vector<16x32xf32>
    %225 = math.exp %224 : vector<16x32xf32>
    %cst_140 = arith.constant 1.000000e+00 : f32
    %226 = vector.broadcast %cst_140 : f32 to vector<16x32xf32>
    %227 = arith.addf %226, %225 : vector<16x32xf32>
    %228 = arith.divf %226, %227 : vector<16x32xf32>
    %229 = math.tanh %217 : vector<16x32xf32>
    %230 = arith.negf %218 : vector<16x32xf32>
    %231 = math.exp %230 : vector<16x32xf32>
    %cst_141 = arith.constant 1.000000e+00 : f32
    %232 = vector.broadcast %cst_141 : f32 to vector<16x32xf32>
    %233 = arith.addf %232, %231 : vector<16x32xf32>
    %234 = arith.divf %232, %233 : vector<16x32xf32>
    %235 = arith.mulf %228, %214 : vector<16x32xf32>
    %236 = arith.mulf %223, %229 : vector<16x32xf32>
    %237 = arith.addf %235, %236 : vector<16x32xf32>
    %238 = math.tanh %237 : vector<16x32xf32>
    %239 = arith.mulf %234, %238 : vector<16x32xf32>
    %c14_i32_142 = arith.constant 14 : i32
    %240 = tpu.dynamic_rotate %192 by %c14_i32_142 dim 0 : vector<16x32xf32>, i32 -> vector<16x32xf32>
    %c14_i32_143 = arith.constant 14 : i32
    %241 = tpu.dynamic_rotate %199 by %c14_i32_143 dim 0 : vector<16x32xf32>, i32 -> vector<16x32xf32>
    %c14_i32_144 = arith.constant 14 : i32
    %242 = tpu.dynamic_rotate %206 by %c14_i32_144 dim 0 : vector<16x32xf32>, i32 -> vector<16x32xf32>
    %c14_i32_145 = arith.constant 14 : i32
    %243 = tpu.dynamic_rotate %213 by %c14_i32_145 dim 0 : vector<16x32xf32>, i32 -> vector<16x32xf32>
    %c0_146 = arith.constant 0 : index
    %c0_147 = arith.constant 0 : index
    %c0_148 = arith.constant 0 : index
    %244 = vector.load %arg9[%c0_146, %c0_147, %c0_148] : memref<4x32x32xf32, #tpu.memory_space<vmem>>, vector<1x32x32xf32>
    %245 = vector.shape_cast %244 : vector<1x32x32xf32> to vector<32x32xf32>
    %cst_149 = arith.constant dense<0.000000e+00> : vector<16x32xf32>
    %246 = tpu.matmul %239, %245, %cst_149 {dimension_numbers = #tpu.dot_dimension_numbers<[1], [0], [0], [1], [0, 0, 1, 1], [], []>} : vector<16x32xf32>, vector<32x32xf32>, vector<16x32xf32> -> vector<16x32xf32>
    %247 = arith.addf %240, %246 : vector<16x32xf32>
    %c1_150 = arith.constant 1 : index
    %c0_151 = arith.constant 0 : index
    %c0_152 = arith.constant 0 : index
    %248 = vector.load %arg9[%c1_150, %c0_151, %c0_152] : memref<4x32x32xf32, #tpu.memory_space<vmem>>, vector<1x32x32xf32>
    %249 = vector.shape_cast %248 : vector<1x32x32xf32> to vector<32x32xf32>
    %cst_153 = arith.constant dense<0.000000e+00> : vector<16x32xf32>
    %250 = tpu.matmul %239, %249, %cst_153 {dimension_numbers = #tpu.dot_dimension_numbers<[1], [0], [0], [1], [0, 0, 1, 1], [], []>} : vector<16x32xf32>, vector<32x32xf32>, vector<16x32xf32> -> vector<16x32xf32>
    %251 = arith.addf %241, %250 : vector<16x32xf32>
    %c2_154 = arith.constant 2 : index
    %c0_155 = arith.constant 0 : index
    %c0_156 = arith.constant 0 : index
    %252 = vector.load %arg9[%c2_154, %c0_155, %c0_156] : memref<4x32x32xf32, #tpu.memory_space<vmem>>, vector<1x32x32xf32>
    %253 = vector.shape_cast %252 : vector<1x32x32xf32> to vector<32x32xf32>
    %cst_157 = arith.constant dense<0.000000e+00> : vector<16x32xf32>
    %254 = tpu.matmul %239, %253, %cst_157 {dimension_numbers = #tpu.dot_dimension_numbers<[1], [0], [0], [1], [0, 0, 1, 1], [], []>} : vector<16x32xf32>, vector<32x32xf32>, vector<16x32xf32> -> vector<16x32xf32>
    %255 = arith.addf %242, %254 : vector<16x32xf32>
    %c3_158 = arith.constant 3 : index
    %c0_159 = arith.constant 0 : index
    %c0_160 = arith.constant 0 : index
    %256 = vector.load %arg9[%c3_158, %c0_159, %c0_160] : memref<4x32x32xf32, #tpu.memory_space<vmem>>, vector<1x32x32xf32>
    %257 = vector.shape_cast %256 : vector<1x32x32xf32> to vector<32x32xf32>
    %cst_161 = arith.constant dense<0.000000e+00> : vector<16x32xf32>
    %258 = tpu.matmul %239, %257, %cst_161 {dimension_numbers = #tpu.dot_dimension_numbers<[1], [0], [0], [1], [0, 0, 1, 1], [], []>} : vector<16x32xf32>, vector<32x32xf32>, vector<16x32xf32> -> vector<16x32xf32>
    %259 = arith.addf %243, %258 : vector<16x32xf32>
    %260 = arith.negf %247 : vector<16x32xf32>
    %261 = math.exp %260 : vector<16x32xf32>
    %cst_162 = arith.constant 1.000000e+00 : f32
    %262 = vector.broadcast %cst_162 : f32 to vector<16x32xf32>
    %263 = arith.addf %262, %261 : vector<16x32xf32>
    %264 = arith.divf %262, %263 : vector<16x32xf32>
    %265 = arith.negf %251 : vector<16x32xf32>
    %266 = math.exp %265 : vector<16x32xf32>
    %cst_163 = arith.constant 1.000000e+00 : f32
    %267 = vector.broadcast %cst_163 : f32 to vector<16x32xf32>
    %268 = arith.addf %267, %266 : vector<16x32xf32>
    %269 = arith.divf %267, %268 : vector<16x32xf32>
    %270 = math.tanh %255 : vector<16x32xf32>
    %271 = arith.negf %259 : vector<16x32xf32>
    %272 = math.exp %271 : vector<16x32xf32>
    %cst_164 = arith.constant 1.000000e+00 : f32
    %273 = vector.broadcast %cst_164 : f32 to vector<16x32xf32>
    %274 = arith.addf %273, %272 : vector<16x32xf32>
    %275 = arith.divf %273, %274 : vector<16x32xf32>
    %276 = arith.mulf %269, %237 : vector<16x32xf32>
    %277 = arith.mulf %264, %270 : vector<16x32xf32>
    %278 = arith.addf %276, %277 : vector<16x32xf32>
    %279 = math.tanh %278 : vector<16x32xf32>
    %280 = arith.mulf %275, %279 : vector<16x32xf32>
    %c13_i32_165 = arith.constant 13 : i32
    %281 = tpu.dynamic_rotate %192 by %c13_i32_165 dim 0 : vector<16x32xf32>, i32 -> vector<16x32xf32>
    %c13_i32_166 = arith.constant 13 : i32
    %282 = tpu.dynamic_rotate %199 by %c13_i32_166 dim 0 : vector<16x32xf32>, i32 -> vector<16x32xf32>
    %c13_i32_167 = arith.constant 13 : i32
    %283 = tpu.dynamic_rotate %206 by %c13_i32_167 dim 0 : vector<16x32xf32>, i32 -> vector<16x32xf32>
    %c13_i32_168 = arith.constant 13 : i32
    %284 = tpu.dynamic_rotate %213 by %c13_i32_168 dim 0 : vector<16x32xf32>, i32 -> vector<16x32xf32>
    %c0_169 = arith.constant 0 : index
    %c0_170 = arith.constant 0 : index
    %c0_171 = arith.constant 0 : index
    %285 = vector.load %arg9[%c0_169, %c0_170, %c0_171] : memref<4x32x32xf32, #tpu.memory_space<vmem>>, vector<1x32x32xf32>
    %286 = vector.shape_cast %285 : vector<1x32x32xf32> to vector<32x32xf32>
    %cst_172 = arith.constant dense<0.000000e+00> : vector<16x32xf32>
    %287 = tpu.matmul %280, %286, %cst_172 {dimension_numbers = #tpu.dot_dimension_numbers<[1], [0], [0], [1], [0, 0, 1, 1], [], []>} : vector<16x32xf32>, vector<32x32xf32>, vector<16x32xf32> -> vector<16x32xf32>
    %288 = arith.addf %281, %287 : vector<16x32xf32>
    %c1_173 = arith.constant 1 : index
    %c0_174 = arith.constant 0 : index
    %c0_175 = arith.constant 0 : index
    %289 = vector.load %arg9[%c1_173, %c0_174, %c0_175] : memref<4x32x32xf32, #tpu.memory_space<vmem>>, vector<1x32x32xf32>
    %290 = vector.shape_cast %289 : vector<1x32x32xf32> to vector<32x32xf32>
    %cst_176 = arith.constant dense<0.000000e+00> : vector<16x32xf32>
    %291 = tpu.matmul %280, %290, %cst_176 {dimension_numbers = #tpu.dot_dimension_numbers<[1], [0], [0], [1], [0, 0, 1, 1], [], []>} : vector<16x32xf32>, vector<32x32xf32>, vector<16x32xf32> -> vector<16x32xf32>
    %292 = arith.addf %282, %291 : vector<16x32xf32>
    %c2_177 = arith.constant 2 : index
    %c0_178 = arith.constant 0 : index
    %c0_179 = arith.constant 0 : index
    %293 = vector.load %arg9[%c2_177, %c0_178, %c0_179] : memref<4x32x32xf32, #tpu.memory_space<vmem>>, vector<1x32x32xf32>
    %294 = vector.shape_cast %293 : vector<1x32x32xf32> to vector<32x32xf32>
    %cst_180 = arith.constant dense<0.000000e+00> : vector<16x32xf32>
    %295 = tpu.matmul %280, %294, %cst_180 {dimension_numbers = #tpu.dot_dimension_numbers<[1], [0], [0], [1], [0, 0, 1, 1], [], []>} : vector<16x32xf32>, vector<32x32xf32>, vector<16x32xf32> -> vector<16x32xf32>
    %296 = arith.addf %283, %295 : vector<16x32xf32>
    %c3_181 = arith.constant 3 : index
    %c0_182 = arith.constant 0 : index
    %c0_183 = arith.constant 0 : index
    %297 = vector.load %arg9[%c3_181, %c0_182, %c0_183] : memref<4x32x32xf32, #tpu.memory_space<vmem>>, vector<1x32x32xf32>
    %298 = vector.shape_cast %297 : vector<1x32x32xf32> to vector<32x32xf32>
    %cst_184 = arith.constant dense<0.000000e+00> : vector<16x32xf32>
    %299 = tpu.matmul %280, %298, %cst_184 {dimension_numbers = #tpu.dot_dimension_numbers<[1], [0], [0], [1], [0, 0, 1, 1], [], []>} : vector<16x32xf32>, vector<32x32xf32>, vector<16x32xf32> -> vector<16x32xf32>
    %300 = arith.addf %284, %299 : vector<16x32xf32>
    %301 = arith.negf %288 : vector<16x32xf32>
    %302 = math.exp %301 : vector<16x32xf32>
    %cst_185 = arith.constant 1.000000e+00 : f32
    %303 = vector.broadcast %cst_185 : f32 to vector<16x32xf32>
    %304 = arith.addf %303, %302 : vector<16x32xf32>
    %305 = arith.divf %303, %304 : vector<16x32xf32>
    %306 = arith.negf %292 : vector<16x32xf32>
    %307 = math.exp %306 : vector<16x32xf32>
    %cst_186 = arith.constant 1.000000e+00 : f32
    %308 = vector.broadcast %cst_186 : f32 to vector<16x32xf32>
    %309 = arith.addf %308, %307 : vector<16x32xf32>
    %310 = arith.divf %308, %309 : vector<16x32xf32>
    %311 = math.tanh %296 : vector<16x32xf32>
    %312 = arith.negf %300 : vector<16x32xf32>
    %313 = math.exp %312 : vector<16x32xf32>
    %cst_187 = arith.constant 1.000000e+00 : f32
    %314 = vector.broadcast %cst_187 : f32 to vector<16x32xf32>
    %315 = arith.addf %314, %313 : vector<16x32xf32>
    %316 = arith.divf %314, %315 : vector<16x32xf32>
    %317 = arith.mulf %310, %278 : vector<16x32xf32>
    %318 = arith.mulf %305, %311 : vector<16x32xf32>
    %319 = arith.addf %317, %318 : vector<16x32xf32>
    %320 = math.tanh %319 : vector<16x32xf32>
    %321 = arith.mulf %316, %320 : vector<16x32xf32>
    %c12_i32_188 = arith.constant 12 : i32
    %322 = tpu.dynamic_rotate %192 by %c12_i32_188 dim 0 : vector<16x32xf32>, i32 -> vector<16x32xf32>
    %c12_i32_189 = arith.constant 12 : i32
    %323 = tpu.dynamic_rotate %199 by %c12_i32_189 dim 0 : vector<16x32xf32>, i32 -> vector<16x32xf32>
    %c12_i32_190 = arith.constant 12 : i32
    %324 = tpu.dynamic_rotate %206 by %c12_i32_190 dim 0 : vector<16x32xf32>, i32 -> vector<16x32xf32>
    %c12_i32_191 = arith.constant 12 : i32
    %325 = tpu.dynamic_rotate %213 by %c12_i32_191 dim 0 : vector<16x32xf32>, i32 -> vector<16x32xf32>
    %c0_192 = arith.constant 0 : index
    %c0_193 = arith.constant 0 : index
    %c0_194 = arith.constant 0 : index
    %326 = vector.load %arg9[%c0_192, %c0_193, %c0_194] : memref<4x32x32xf32, #tpu.memory_space<vmem>>, vector<1x32x32xf32>
    %327 = vector.shape_cast %326 : vector<1x32x32xf32> to vector<32x32xf32>
    %cst_195 = arith.constant dense<0.000000e+00> : vector<16x32xf32>
    %328 = tpu.matmul %321, %327, %cst_195 {dimension_numbers = #tpu.dot_dimension_numbers<[1], [0], [0], [1], [0, 0, 1, 1], [], []>} : vector<16x32xf32>, vector<32x32xf32>, vector<16x32xf32> -> vector<16x32xf32>
    %329 = arith.addf %322, %328 : vector<16x32xf32>
    %c1_196 = arith.constant 1 : index
    %c0_197 = arith.constant 0 : index
    %c0_198 = arith.constant 0 : index
    %330 = vector.load %arg9[%c1_196, %c0_197, %c0_198] : memref<4x32x32xf32, #tpu.memory_space<vmem>>, vector<1x32x32xf32>
    %331 = vector.shape_cast %330 : vector<1x32x32xf32> to vector<32x32xf32>
    %cst_199 = arith.constant dense<0.000000e+00> : vector<16x32xf32>
    %332 = tpu.matmul %321, %331, %cst_199 {dimension_numbers = #tpu.dot_dimension_numbers<[1], [0], [0], [1], [0, 0, 1, 1], [], []>} : vector<16x32xf32>, vector<32x32xf32>, vector<16x32xf32> -> vector<16x32xf32>
    %333 = arith.addf %323, %332 : vector<16x32xf32>
    %c2_200 = arith.constant 2 : index
    %c0_201 = arith.constant 0 : index
    %c0_202 = arith.constant 0 : index
    %334 = vector.load %arg9[%c2_200, %c0_201, %c0_202] : memref<4x32x32xf32, #tpu.memory_space<vmem>>, vector<1x32x32xf32>
    %335 = vector.shape_cast %334 : vector<1x32x32xf32> to vector<32x32xf32>
    %cst_203 = arith.constant dense<0.000000e+00> : vector<16x32xf32>
    %336 = tpu.matmul %321, %335, %cst_203 {dimension_numbers = #tpu.dot_dimension_numbers<[1], [0], [0], [1], [0, 0, 1, 1], [], []>} : vector<16x32xf32>, vector<32x32xf32>, vector<16x32xf32> -> vector<16x32xf32>
    %337 = arith.addf %324, %336 : vector<16x32xf32>
    %c3_204 = arith.constant 3 : index
    %c0_205 = arith.constant 0 : index
    %c0_206 = arith.constant 0 : index
    %338 = vector.load %arg9[%c3_204, %c0_205, %c0_206] : memref<4x32x32xf32, #tpu.memory_space<vmem>>, vector<1x32x32xf32>
    %339 = vector.shape_cast %338 : vector<1x32x32xf32> to vector<32x32xf32>
    %cst_207 = arith.constant dense<0.000000e+00> : vector<16x32xf32>
    %340 = tpu.matmul %321, %339, %cst_207 {dimension_numbers = #tpu.dot_dimension_numbers<[1], [0], [0], [1], [0, 0, 1, 1], [], []>} : vector<16x32xf32>, vector<32x32xf32>, vector<16x32xf32> -> vector<16x32xf32>
    %341 = arith.addf %325, %340 : vector<16x32xf32>
    %342 = arith.negf %329 : vector<16x32xf32>
    %343 = math.exp %342 : vector<16x32xf32>
    %cst_208 = arith.constant 1.000000e+00 : f32
    %344 = vector.broadcast %cst_208 : f32 to vector<16x32xf32>
    %345 = arith.addf %344, %343 : vector<16x32xf32>
    %346 = arith.divf %344, %345 : vector<16x32xf32>
    %347 = arith.negf %333 : vector<16x32xf32>
    %348 = math.exp %347 : vector<16x32xf32>
    %cst_209 = arith.constant 1.000000e+00 : f32
    %349 = vector.broadcast %cst_209 : f32 to vector<16x32xf32>
    %350 = arith.addf %349, %348 : vector<16x32xf32>
    %351 = arith.divf %349, %350 : vector<16x32xf32>
    %352 = math.tanh %337 : vector<16x32xf32>
    %353 = arith.negf %341 : vector<16x32xf32>
    %354 = math.exp %353 : vector<16x32xf32>
    %cst_210 = arith.constant 1.000000e+00 : f32
    %355 = vector.broadcast %cst_210 : f32 to vector<16x32xf32>
    %356 = arith.addf %355, %354 : vector<16x32xf32>
    %357 = arith.divf %355, %356 : vector<16x32xf32>
    %358 = arith.mulf %351, %319 : vector<16x32xf32>
    %359 = arith.mulf %346, %352 : vector<16x32xf32>
    %360 = arith.addf %358, %359 : vector<16x32xf32>
    %361 = math.tanh %360 : vector<16x32xf32>
    %362 = arith.mulf %357, %361 : vector<16x32xf32>
    %c0_211 = arith.constant 0 : index
    %c0_212 = arith.constant 0 : index
    %363 = vector.load %arg11[%c0_211, %c0_212] : memref<32x32xf32, #tpu.memory_space<vmem>>, vector<32x32xf32>
    %cst_213 = arith.constant dense<0.000000e+00> : vector<16x32xf32>
    %364 = tpu.matmul %185, %363, %cst_213 {dimension_numbers = #tpu.dot_dimension_numbers<[1], [0], [0], [1], [0, 0, 1, 1], [], []>} : vector<16x32xf32>, vector<32x32xf32>, vector<16x32xf32> -> vector<16x32xf32>
    %c0_214 = arith.constant 0 : index
    %c0_215 = arith.constant 0 : index
    %365 = vector.load %arg12[%c0_214, %c0_215] : memref<32x32xf32, #tpu.memory_space<vmem>>, vector<32x32xf32>
    %cst_216 = arith.constant dense<0.000000e+00> : vector<16x32xf32>
    %366 = tpu.matmul %362, %365, %cst_216 {dimension_numbers = #tpu.dot_dimension_numbers<[1], [0], [0], [1], [0, 0, 1, 1], [], []>} : vector<16x32xf32>, vector<32x32xf32>, vector<16x32xf32> -> vector<16x32xf32>
    %367 = arith.addf %364, %366 : vector<16x32xf32>
    %c0_217 = arith.constant 0 : index
    %c0_218 = arith.constant 0 : index
    %368 = vector.load %arg13[%c0_217, %c0_218] : memref<1x32xf32, #tpu.memory_space<vmem>>, vector<1x32xf32>
    %369 = vector.broadcast %368 : vector<1x32xf32> to vector<16x32xf32>
    %370 = arith.addf %367, %369 : vector<16x32xf32>
    %c0_219 = arith.constant 0 : index
    %c0_220 = arith.constant 0 : index
    %371 = vector.load %arg14[%c0_219, %c0_220] : memref<32x128xf32, #tpu.memory_space<vmem>>, vector<32x128xf32>
    %cst_221 = arith.constant dense<0.000000e+00> : vector<16x128xf32>
    %372 = tpu.matmul %370, %371, %cst_221 {dimension_numbers = #tpu.dot_dimension_numbers<[1], [0], [0], [1], [0, 0, 1, 1], [], []>} : vector<16x32xf32>, vector<32x128xf32>, vector<16x128xf32> -> vector<16x128xf32>
    %c0_222 = arith.constant 0 : index
    %c0_223 = arith.constant 0 : index
    %373 = vector.load %arg15[%c0_222, %c0_223] : memref<1x128xf32, #tpu.memory_space<vmem>>, vector<1x128xf32>
    %374 = vector.broadcast %373 : vector<1x128xf32> to vector<16x128xf32>
    %375 = arith.addf %372, %374 : vector<16x128xf32>
    %c0_224 = arith.constant 0 : index
    %c0_225 = arith.constant 0 : index
    %376 = vector.load %arg16[%c0_224, %c0_225] : memref<16x128xf32, #tpu.memory_space<vmem>>, vector<16x128xf32>
    tpu.vector_store %arg16[%c0_224, %c0_225], %375 {strides = array<i32>} : memref<16x128xf32, #tpu.memory_space<vmem>>, vector<16x128xf32>,
    return
  }
  func.func @transform_0(%arg0: i32) -> (i32, i32) {
    %c0_i32 = arith.constant 0 : i32
    %c0_i32_0 = arith.constant 0 : i32
    %c0_i32_1 = arith.constant 0 : i32
    return %c0_i32, %c0_i32_0 : i32, i32
  }
  func.func @transform_1(%arg0: i32) -> (i32, i32, i32) {
    %c0_i32 = arith.constant 0 : i32
    %c0_i32_0 = arith.constant 0 : i32
    %c0_i32_1 = arith.constant 0 : i32
    %c0_i32_2 = arith.constant 0 : i32
    return %c0_i32, %c0_i32_0, %c0_i32_1 : i32, i32, i32
  }
  func.func @transform_2(%arg0: i32) -> (i32, i32, i32) {
    %c0_i32 = arith.constant 0 : i32
    %c0_i32_0 = arith.constant 0 : i32
    %c0_i32_1 = arith.constant 0 : i32
    %c0_i32_2 = arith.constant 0 : i32
    return %c0_i32, %c0_i32_0, %c0_i32_1 : i32, i32, i32
  }
  func.func @transform_3(%arg0: i32) -> (i32, i32, i32) {
    %c0_i32 = arith.constant 0 : i32
    %c0_i32_0 = arith.constant 0 : i32
    %c0_i32_1 = arith.constant 0 : i32
    %c0_i32_2 = arith.constant 0 : i32
    return %c0_i32, %c0_i32_0, %c0_i32_1 : i32, i32, i32
  }
  func.func @transform_4(%arg0: i32) -> (i32, i32) {
    %c0_i32 = arith.constant 0 : i32
    %c0_i32_0 = arith.constant 0 : i32
    %c0_i32_1 = arith.constant 0 : i32
    return %c0_i32, %c0_i32_0 : i32, i32
  }
  func.func @transform_5(%arg0: i32) -> (i32, i32) {
    %c0_i32 = arith.constant 0 : i32
    %c0_i32_0 = arith.constant 0 : i32
    %c0_i32_1 = arith.constant 0 : i32
    return %c0_i32, %c0_i32_0 : i32, i32
  }
  func.func @transform_6(%arg0: i32) -> (i32, i32) {
    %c0_i32 = arith.constant 0 : i32
    %c0_i32_0 = arith.constant 0 : i32
    %c0_i32_1 = arith.constant 0 : i32
    return %c0_i32, %c0_i32_0 : i32, i32
  }
  func.func @transform_7(%arg0: i32) -> (i32, i32, i32) {
    %c0_i32 = arith.constant 0 : i32
    %c0_i32_0 = arith.constant 0 : i32
    %c0_i32_1 = arith.constant 0 : i32
    %c0_i32_2 = arith.constant 0 : i32
    return %c0_i32, %c0_i32_0, %c0_i32_1 : i32, i32, i32
  }
  func.func @transform_8(%arg0: i32) -> (i32, i32, i32) {
    %c0_i32 = arith.constant 0 : i32
    %c0_i32_0 = arith.constant 0 : i32
    %c0_i32_1 = arith.constant 0 : i32
    %c0_i32_2 = arith.constant 0 : i32
    return %c0_i32, %c0_i32_0, %c0_i32_1 : i32, i32, i32
  }
  func.func @transform_9(%arg0: i32) -> (i32, i32, i32) {
    %c0_i32 = arith.constant 0 : i32
    %c0_i32_0 = arith.constant 0 : i32
    %c0_i32_1 = arith.constant 0 : i32
    %c0_i32_2 = arith.constant 0 : i32
    return %c0_i32, %c0_i32_0, %c0_i32_1 : i32, i32, i32
  }
  func.func @transform_10(%arg0: i32) -> (i32, i32) {
    %c0_i32 = arith.constant 0 : i32
    %c0_i32_0 = arith.constant 0 : i32
    %c0_i32_1 = arith.constant 0 : i32
    return %c0_i32, %c0_i32_0 : i32, i32
  }
  func.func @transform_11(%arg0: i32) -> (i32, i32) {
    %c0_i32 = arith.constant 0 : i32
    %c0_i32_0 = arith.constant 0 : i32
    %c0_i32_1 = arith.constant 0 : i32
    return %c0_i32, %c0_i32_0 : i32, i32
  }
  func.func @transform_12(%arg0: i32) -> (i32, i32) {
    %c0_i32 = arith.constant 0 : i32
    %c0_i32_0 = arith.constant 0 : i32
    %c0_i32_1 = arith.constant 0 : i32
    return %c0_i32, %c0_i32_0 : i32, i32
  }
  func.func @transform_13(%arg0: i32) -> (i32, i32) {
    %c0_i32 = arith.constant 0 : i32
    %c0_i32_0 = arith.constant 0 : i32
    %c0_i32_1 = arith.constant 0 : i32
    return %c0_i32, %c0_i32_0 : i32, i32
  }
  func.func @transform_14(%arg0: i32) -> (i32, i32) {
    %c0_i32 = arith.constant 0 : i32
    %c0_i32_0 = arith.constant 0 : i32
    %c0_i32_1 = arith.constant 0 : i32
    return %c0_i32, %c0_i32_0 : i32, i32
  }
  func.func @transform_15(%arg0: i32) -> (i32, i32) {
    %c0_i32 = arith.constant 0 : i32
    %c0_i32_0 = arith.constant 0 : i32
    %c0_i32_1 = arith.constant 0 : i32
    return %c0_i32, %c0_i32_0 : i32, i32
  }
}

</mosaic_0001>

<llo_original>
// kernel: tpu_custom_call.1
$region0: #{tpu_custom_call.1}
  #allocation0 [shape = 'u32[]', space=smem, size = 0x4, offset = 0x4, fixed_abs, tag = 'smem constant byte address 0x4 - core index']
  #allocation1 [shape = 'u32[144,128]{1,0:T(1,128)}', space=vmem, size = 0x12000, scoped, tag = 'internal scratch']
  %s0 = inlined_call_operand.hbm [shape: f32[16,32], index: 0, kind: input, shape index: {}]
  %s1 = inlined_call_operand.hbm [shape: f32[4,32,32], index: 1, kind: input, shape index: {}]
  %s2 = inlined_call_operand.hbm [shape: f32[4,32,32], index: 2, kind: input, shape index: {}]
  %s3 = inlined_call_operand.vmem [shape: f32[4,1,32], index: 3, kind: input, shape index: {}]
  %s4 = inlined_call_operand.hbm [shape: f32[32,32], index: 4, kind: input, shape index: {}]
  %s5 = inlined_call_operand.hbm [shape: f32[32,32], index: 5, kind: input, shape index: {}]
  %s6 = inlined_call_operand.vmem [shape: f32[1,32], index: 6, kind: input, shape index: {}]
  %s7 = inlined_call_operand.hbm [shape: f32[4,32,32], index: 7, kind: input, shape index: {}]
  %s8 = inlined_call_operand.hbm [shape: f32[4,32,32], index: 8, kind: input, shape index: {}]
  %s9 = inlined_call_operand.vmem [shape: f32[4,1,32], index: 9, kind: input, shape index: {}]
  %s10 = inlined_call_operand.hbm [shape: f32[32,32], index: 10, kind: input, shape index: {}]
  %s11 = inlined_call_operand.hbm [shape: f32[32,32], index: 11, kind: input, shape index: {}]
  %s12 = inlined_call_operand.vmem [shape: f32[1,32], index: 12, kind: input, shape index: {}]
  %s13 = inlined_call_operand.hbm [shape: f32[32,128], index: 13, kind: input, shape index: {}]
  %s14 = inlined_call_operand.vmem [shape: f32[1,128], index: 14, kind: input, shape index: {}]
  %s15 = inlined_call_operand.hbm [shape: f32[16,128], index: 15, kind: output, shape index: {}]
  %s16 = sld [smem:[#allocation0]]
  $region110: #{tpu_custom_call.1} parent=0
    _
  %s18 = ssub.s32 1, %s16
  %s19 = scalar_select 0, %s18, %s16
  $region1: #{tpu_custom_call.1} parent=0
    #allocation2 [shape = 'u8[8192]{0}', space=vmem, size = 0x2000, scoped, tag = 'input window, operand 0, single buffered']
    #allocation3 [shape = 's32[1]{0}', space=sflag, size = 0x4, scoped, tag = 'scoped memory for tpu_custom_call.1']
    #allocation4 [shape = 's32[1]{0}', space=sflag, size = 0x4, scoped, tag = 'scoped memory for tpu_custom_call.1']
    #allocation5 [shape = 'u8[65536]{0}', space=vmem, size = 0x10000, scoped, tag = 'input window, operand 1, single buffered']
    #allocation6 [shape = 's32[1]{0}', space=sflag, size = 0x4, scoped, tag = 'scoped memory for tpu_custom_call.1']
    #allocation7 [shape = 'u8[65536]{0}', space=vmem, size = 0x10000, scoped, tag = 'input window, operand 2, single buffered']
    #allocation8 [shape = 'u8[16384]{0}', space=vmem, size = 0x4000, scoped, tag = 'input window, operand 4, single buffered']
    #allocation9 [shape = 's32[1]{0}', space=sflag, size = 0x4, scoped, tag = 'scoped memory for tpu_custom_call.1']
    #allocation10 [shape = 'u8[16384]{0}', space=vmem, size = 0x4000, scoped, tag = 'input window, operand 5, single buffered']
    #allocation11 [shape = 'u8[65536]{0}', space=vmem, size = 0x10000, scoped, tag = 'input window, operand 7, single buffered']
    #allocation12 [shape = 's32[1]{0}', space=sflag, size = 0x4, scoped, tag = 'scoped memory for tpu_custom_call.1']
    #allocation13 [shape = 'u8[65536]{0}', space=vmem, size = 0x10000, scoped, tag = 'input window, operand 8, single buffered']
    #allocation14 [shape = 'u8[16384]{0}', space=vmem, size = 0x4000, scoped, tag = 'input window, operand 10, single buffered']
    #allocation15 [shape = 's32[1]{0}', space=sflag, size = 0x4, scoped, tag = 'scoped memory for tpu_custom_call.1']
    #allocation16 [shape = 'u8[16384]{0}', space=vmem, size = 0x4000, scoped, tag = 'input window, operand 11, single buffered']
    #allocation17 [shape = 'u8[16384]{0}', space=vmem, size = 0x4000, scoped, tag = 'input window, operand 13, single buffered']
    #allocation18 [shape = 's32[1]{0}', space=sflag, size = 0x4, scoped, tag = 'scoped memory for tpu_custom_call.1']
    #allocation19 [shape = 'u8[8192]{0}', space=vmem, size = 0x2000, scoped, tag = 'output window, operand 0, single buffered']
    %20 = vsyncpa [#allocation3], 0
    %21 = vsyncpa [#allocation6], 0
    %22 = vsyncpa [#allocation9], 0
    %23 = vsyncpa [#allocation12], 0
    %24 = vsyncpa [#allocation15], 0
    %25 = vsyncpa [#allocation18], 0
    %26 = vsyncpa [#allocation4], 0
    // Predicated region
    $region2: #{tpu_custom_call.1} parent=1 // pred_check
      _
    $region3: #{tpu_custom_call.1} parent=1 // pred_check_branch
      %28 = sbr.rel (0) target = $region5
    $region4: #{tpu_custom_call.1} parent=1 // pred_region
      %s30 = ssub.s32 256, 256
      %31 = vsyncadd [#allocation3], %s30
      %s32 = sshll.u32 [#allocation2], 4
      %s33 = int_to_ptr.vmem [resolvable:$true] %s32
      %38 = dma.hbm_to_vmem [thread:$0]  %s0, 256, %s33, [#allocation3], 128, 128, 8
    $region5: #{tpu_custom_call.1} parent=1 // pred_fallthru
      _
    // Predicated region
    $region6: #{tpu_custom_call.1} parent=1 // pred_check
      _
    $region7: #{tpu_custom_call.1} parent=1 // pred_check_branch
      %40 = sbr.rel (0) target = $region9
    $region8: #{tpu_custom_call.1} parent=1 // pred_region
      %s42 = ssub.s32 2048, 2048
      %43 = vsyncadd [#allocation6], %s42
      %s44 = sshll.u32 [#allocation5], 4
      %s45 = int_to_ptr.vmem [resolvable:$true] %s44
      %50 = dma.hbm_to_vmem [thread:$0]  %s1, 2048, %s45, [#allocation6], 128, 128, 8
    $region9: #{tpu_custom_call.1} parent=1 // pred_fallthru
      _
    // Predicated region
    $region10: #{tpu_custom_call.1} parent=1 // pred_check
      _
    $region11: #{tpu_custom_call.1} parent=1 // pred_check_branch
      %52 = sbr.rel (0) target = $region13
    $region12: #{tpu_custom_call.1} parent=1 // pred_region
      %s54 = ssub.s32 2048, 2048
      %55 = vsyncadd [#allocation6], %s54
      %s56 = sshll.u32 [#allocation7], 4
      %s57 = int_to_ptr.vmem [resolvable:$true] %s56
      %62 = dma.hbm_to_vmem [thread:$0]  %s2, 2048, %s57, [#allocation6], 128, 128, 8
    $region13: #{tpu_custom_call.1} parent=1 // pred_fallthru
      _
    // Predicated region
    $region14: #{tpu_custom_call.1} parent=1 // pred_check
      _
    $region15: #{tpu_custom_call.1} parent=1 // pred_check_branch
      %64 = sbr.rel (0) target = $region17
    $region16: #{tpu_custom_call.1} parent=1 // pred_region
      _
    $region17: #{tpu_custom_call.1} parent=1 // pred_fallthru
      _
    // Predicated region
    $region18: #{tpu_custom_call.1} parent=1 // pred_check
      _
    $region19: #{tpu_custom_call.1} parent=1 // pred_check_branch
      %66 = sbr.rel (0) target = $region21
    $region20: #{tpu_custom_call.1} parent=1 // pred_region
      %s68 = ssub.s32 512, 512
      %69 = vsyncadd [#allocation9], %s68
      %s70 = sshll.u32 [#allocation8], 4
      %s71 = int_to_ptr.vmem [resolvable:$true] %s70
      %76 = dma.hbm_to_vmem [thread:$0]  %s4, 512, %s71, [#allocation9], 128, 128, 8
    $region21: #{tpu_custom_call.1} parent=1 // pred_fallthru
      _
    // Predicated region
    $region22: #{tpu_custom_call.1} parent=1 // pred_check
      _
    $region23: #{tpu_custom_call.1} parent=1 // pred_check_branch
      %78 = sbr.rel (0) target = $region25
    $region24: #{tpu_custom_call.1} parent=1 // pred_region
      %s80 = ssub.s32 512, 512
      %81 = vsyncadd [#allocation9], %s80
      %s82 = sshll.u32 [#allocation10], 4
      %s83 = int_to_ptr.vmem [resolvable:$true] %s82
      %88 = dma.hbm_to_vmem [thread:$0]  %s5, 512, %s83, [#allocation9], 128, 128, 8
    $region25: #{tpu_custom_call.1} parent=1 // pred_fallthru
      _
    // Predicated region
    $region26: #{tpu_custom_call.1} parent=1 // pred_check
      _
    $region27: #{tpu_custom_call.1} parent=1 // pred_check_branch
      %90 = sbr.rel (0) target = $region29
    $region28: #{tpu_custom_call.1} parent=1 // pred_region
      _
    $region29: #{tpu_custom_call.1} parent=1 // pred_fallthru
      _
    // Predicated region
    $region30: #{tpu_custom_call.1} parent=1 // pred_check
      _
    $region31: #{tpu_custom_call.1} parent=1 // pred_check_branch
      %92 = sbr.rel (0) target = $region33
    $region32: #{tpu_custom_call.1} parent=1 // pred_region
      %s94 = ssub.s32 2048, 2048
      %95 = vsyncadd [#allocation12], %s94
      %s96 = sshll.u32 [#allocation11], 4
      %s97 = int_to_ptr.vmem [resolvable:$true] %s96
      %102 = dma.hbm_to_vmem [thread:$0]  %s7, 2048, %s97, [#allocation12], 128, 128, 8
    $region33: #{tpu_custom_call.1} parent=1 // pred_fallthru
      _
    // Predicated region
    $region34: #{tpu_custom_call.1} parent=1 // pred_check
      _
    $region35: #{tpu_custom_call.1} parent=1 // pred_check_branch
      %104 = sbr.rel (0) target = $region37
    $region36: #{tpu_custom_call.1} parent=1 // pred_region
      %s106 = ssub.s32 2048, 2048
      %107 = vsyncadd [#allocation12], %s106
      %s108 = sshll.u32 [#allocation13], 4
      %s109 = int_to_ptr.vmem [resolvable:$true] %s108
      %114 = dma.hbm_to_vmem [thread:$0]  %s8, 2048, %s109, [#allocation12], 128, 128, 8
    $region37: #{tpu_custom_call.1} parent=1 // pred_fallthru
      _
    // Predicated region
    $region38: #{tpu_custom_call.1} parent=1 // pred_check
      _
    $region39: #{tpu_custom_call.1} parent=1 // pred_check_branch
      %116 = sbr.rel (0) target = $region41
    $region40: #{tpu_custom_call.1} parent=1 // pred_region
      _
    $region41: #{tpu_custom_call.1} parent=1 // pred_fallthru
      _
    // Predicated region
    $region42: #{tpu_custom_call.1} parent=1 // pred_check
      _
    $region43: #{tpu_custom_call.1} parent=1 // pred_check_branch
      %118 = sbr.rel (0) target = $region45
    $region44: #{tpu_custom_call.1} parent=1 // pred_region
      %s120 = ssub.s32 512, 512
      %121 = vsyncadd [#allocation15], %s120
      %s122 = sshll.u32 [#allocation14], 4
      %s123 = int_to_ptr.vmem [resolvable:$true] %s122
      %128 = dma.hbm_to_vmem [thread:$0]  %s10, 512, %s123, [#allocation15], 128, 128, 8
    $region45: #{tpu_custom_call.1} parent=1 // pred_fallthru
      _
    // Predicated region
    $region46: #{tpu_custom_call.1} parent=1 // pred_check
      _
    $region47: #{tpu_custom_call.1} parent=1 // pred_check_branch
      %130 = sbr.rel (0) target = $region49
    $region48: #{tpu_custom_call.1} parent=1 // pred_region
      %s132 = ssub.s32 512, 512
      %133 = vsyncadd [#allocation15], %s132
      %s134 = sshll.u32 [#allocation16], 4
      %s135 = int_to_ptr.vmem [resolvable:$true] %s134
      %140 = dma.hbm_to_vmem [thread:$0]  %s11, 512, %s135, [#allocation15], 128, 128, 8
    $region49: #{tpu_custom_call.1} parent=1 // pred_fallthru
      _
    // Predicated region
    $region50: #{tpu_custom_call.1} parent=1 // pred_check
      _
    $region51: #{tpu_custom_call.1} parent=1 // pred_check_branch
      %142 = sbr.rel (0) target = $region53
    $region52: #{tpu_custom_call.1} parent=1 // pred_region
      _
    $region53: #{tpu_custom_call.1} parent=1 // pred_fallthru
      _
    // Predicated region
    $region54: #{tpu_custom_call.1} parent=1 // pred_check
      _
    $region55: #{tpu_custom_call.1} parent=1 // pred_check_branch
      %144 = sbr.rel (0) target = $region57
    $region56: #{tpu_custom_call.1} parent=1 // pred_region
      %s146 = ssub.s32 512, 512
      %147 = vsyncadd [#allocation18], %s146
      %s148 = sshll.u32 [#allocation17], 4
      %s149 = int_to_ptr.vmem [resolvable:$true] %s148
      %154 = dma.hbm_to_vmem [thread:$0]  %s13, 512, %s149, [#allocation18], 128, 128, 8
    $region57: #{tpu_custom_call.1} parent=1 // pred_fallthru
      _
    // Predicated region
    $region58: #{tpu_custom_call.1} parent=1 // pred_check
      _
    $region59: #{tpu_custom_call.1} parent=1 // pred_check_branch
      %156 = sbr.rel (0) target = $region61
    $region60: #{tpu_custom_call.1} parent=1 // pred_region
      _
    $region61: #{tpu_custom_call.1} parent=1 // pred_fallthru
      _
    // Predicated region
    $region62: #{tpu_custom_call.1} parent=1 // pred_check
      _
    $region63: #{tpu_custom_call.1} parent=1 // pred_check_branch
      %158 = sbr.rel (0) target = $region65
    $region64: #{tpu_custom_call.1} parent=1 // pred_region
      %159 = dma.done [#allocation3], 256
    $region65: #{tpu_custom_call.1} parent=1 // pred_fallthru
      _
    // Predicated region
    $region66: #{tpu_custom_call.1} parent=1 // pred_check
      _
    $region67: #{tpu_custom_call.1} parent=1 // pred_check_branch
      %161 = sbr.rel (0) target = $region69
    $region68: #{tpu_custom_call.1} parent=1 // pred_region
      %162 = dma.done [#allocation6], 2048
    $region69: #{tpu_custom_call.1} parent=1 // pred_fallthru
      _
    // Predicated region
    $region70: #{tpu_custom_call.1} parent=1 // pred_check
      _
    $region71: #{tpu_custom_call.1} parent=1 // pred_check_branch
      %164 = sbr.rel (0) target = $region73
    $region72: #{tpu_custom_call.1} parent=1 // pred_region
      %165 = dma.done [#allocation6], 2048
    $region73: #{tpu_custom_call.1} parent=1 // pred_fallthru
      _
    // Predicated region
    $region74: #{tpu_custom_call.1} parent=1 // pred_check
      _
    $region75: #{tpu_custom_call.1} parent=1 // pred_check_branch
      %167 = sbr.rel (0) target = $region77
    $region76: #{tpu_custom_call.1} parent=1 // pred_region
      %168 = dma.done [#allocation9], 512
    $region77: #{tpu_custom_call.1} parent=1 // pred_fallthru
      _
    // Predicated region
    $region78: #{tpu_custom_call.1} parent=1 // pred_check
      _
    $region79: #{tpu_custom_call.1} parent=1 // pred_check_branch
      %170 = sbr.rel (0) target = $region81
    $region80: #{tpu_custom_call.1} parent=1 // pred_region
      %171 = dma.done [#allocation9], 512
    $region81: #{tpu_custom_call.1} parent=1 // pred_fallthru
      _
    // Predicated region
    $region82: #{tpu_custom_call.1} parent=1 // pred_check
      _
    $region83: #{tpu_custom_call.1} parent=1 // pred_check_branch
      %173 = sbr.rel (0) target = $region85
    $region84: #{tpu_custom_call.1} parent=1 // pred_region
      %174 = dma.done [#allocation12], 2048
    $region85: #{tpu_custom_call.1} parent=1 // pred_fallthru
      _
    // Predicated region
    $region86: #{tpu_custom_call.1} parent=1 // pred_check
      _
    $region87: #{tpu_custom_call.1} parent=1 // pred_check_branch
      %176 = sbr.rel (0) target = $region89
    $region88: #{tpu_custom_call.1} parent=1 // pred_region
      %177 = dma.done [#allocation12], 2048
    $region89: #{tpu_custom_call.1} parent=1 // pred_fallthru
      _
    // Predicated region
    $region90: #{tpu_custom_call.1} parent=1 // pred_check
      _
    $region91: #{tpu_custom_call.1} parent=1 // pred_check_branch
      %179 = sbr.rel (0) target = $region93
    $region92: #{tpu_custom_call.1} parent=1 // pred_region
      %180 = dma.done [#allocation15], 512
    $region93: #{tpu_custom_call.1} parent=1 // pred_fallthru
      _
    // Predicated region
    $region94: #{tpu_custom_call.1} parent=1 // pred_check
      _
    $region95: #{tpu_custom_call.1} parent=1 // pred_check_branch
      %182 = sbr.rel (0) target = $region97
    $region96: #{tpu_custom_call.1} parent=1 // pred_region
      %183 = dma.done [#allocation15], 512
    $region97: #{tpu_custom_call.1} parent=1 // pred_fallthru
      _
    // Predicated region
    $region98: #{tpu_custom_call.1} parent=1 // pred_check
      _
    $region99: #{tpu_custom_call.1} parent=1 // pred_check_branch
      %185 = sbr.rel (0) target = $region101
    $region100: #{tpu_custom_call.1} parent=1 // pred_region
      %186 = dma.done [#allocation18], 512
    $region101: #{tpu_custom_call.1} parent=1 // pred_fallthru
      _
    %v187 = vld [vmem:[#allocation2] sm:$0xff]
    %v188 = vld [vmem:[#allocation2 + $0x8] sm:$0xff]
    %v189 = vld [vmem:[#allocation5] sm:$0xff]
    %v190 = vld [vmem:[#allocation5 + $0x8] sm:$0xff]
    %v191 = vld [vmem:[#allocation5 + $0x10] sm:$0xff]
    %v192 = vld [vmem:[#allocation5 + $0x18] sm:$0xff]
    %v193 = vld [vmem:[%s3] sm:$0x1]
    %v195 = vlaneseq
    %v196 = vshrl.u32 %v195, 7
    %v197 = vsub.s32 0, %v196
    %v198 = vrot.slane %v193, %v197
    %vm200 = vcmask 261120
    %v202 = vsel %vm200, %v187, 0
    %v205 = vsel %vm200, %v188, 0
    %207 = vmatprep.subr.mxu0 0.0
    %208 = vmatpush1.msra.mxu0 0.0
    %209 = vmatprep.subr.mxu0 0.0
    %210 = vmatpush1.msra.mxu0 0.0
    %211 = vmatprep.subr.mxu0 0.0
    %212 = vmatpush1.msra.mxu0 0.0
    %213 = vmatprep.subr.mxu0 0.0
    %214 = vmatpush1.msra.mxu0 0.0
    %215 = vmatprep.subr.mxu0 0.0
    %216 = vmatpush1.msra.mxu0 0.0
    %217 = vmatprep.subr.mxu0 0.0
    %218 = vmatpush1.msra.mxu0 0.0
    %219 = vmatprep.subr.mxu0 0.0
    %220 = vmatpush1.msra.mxu0 0.0
    %221 = vmatprep.subr.mxu0 0.0
    %222 = vmatpush1.msra.mxu0 0.0
    %223 = vmatprep.subr.mxu0 0.0
    %224 = vmatpush1.msra.mxu0 0.0
    %225 = vmatprep.subr.mxu0 0.0
    %226 = vmatpush1.msra.mxu0 0.0
    %227 = vmatprep.subr.mxu0 0.0
    %228 = vmatpush1.msra.mxu0 0.0
    %229 = vmatprep.subr.mxu0 0.0
    %230 = vmatpush1.msra.mxu0 0.0
    %231 = vmatprep.subr.mxu0 0.0
    %232 = vmatpush1.msra.mxu0 %v192
    %233 = vmatprep.subr.mxu0 0.0
    %234 = vmatpush1.msra.mxu0 %v191
    %235 = vmatprep.subr.mxu0 0.0
    %236 = vmatpush1.msra.mxu0 %v190
    %237 = vmatprep.subr.mxu0 0.0
    %238 = vmatpush1.msra.mxu0 %v189
    %239 = vmatprep.subr.mxu0 0.0
    %240 = vmatpush2.msra.mxu0 0.0
    %241 = vmatprep.subr.mxu0 0.0
    %242 = vmatpush2.msra.mxu0 0.0
    %243 = vmatprep.subr.mxu0 0.0
    %244 = vmatpush2.msra.mxu0 0.0
    %245 = vmatprep.subr.mxu0 0.0
    %246 = vmatpush2.msra.mxu0 0.0
    %247 = vmatprep.subr.mxu0 0.0
    %248 = vmatpush2.msra.mxu0 0.0
    %249 = vmatprep.subr.mxu0 0.0
    %250 = vmatpush2.msra.mxu0 0.0
    %251 = vmatprep.subr.mxu0 0.0
    %252 = vmatpush2.msra.mxu0 0.0
    %253 = vmatprep.subr.mxu0 0.0
    %254 = vmatpush2.msra.mxu0 0.0
    %255 = vmatprep.subr.mxu0 0.0
    %256 = vmatpush2.msra.mxu0 0.0
    %257 = vmatprep.subr.mxu0 0.0
    %258 = vmatpush2.msra.mxu0 0.0
    %259 = vmatprep.subr.mxu0 0.0
    %260 = vmatpush2.msra.mxu0 0.0
    %261 = vmatprep.subr.mxu0 0.0
    %262 = vmatpush2.msra.mxu0 0.0
    %263 = vmatprep.subr.mxu0 0.0
    %264 = vmatpush2.msra.mxu0 0.0
    %265 = vmatprep.subr.mxu0 0.0
    %266 = vmatpush2.msra.mxu0 0.0
    %267 = vmatprep.subr.mxu0 0.0
    %268 = vmatpush2.msra.mxu0 0.0
    %269 = vmatprep.subr.mxu0 0.0
    %270 = vmatpush2.msra.mxu0 0.0
    %271 = vmatprep.mubr.f32.mxu0 0.0
    %272 = vmatmul.mubr.f32.gmra.mxu0 %v202
    %v273 = vpop.f32.mrf.mxu0
    %v274 = vadd.f32 %v198, %v273
    %v275 = vpop.f32.mrf.mxu0
    %276 = vmatprep.mubr.f32.mxu0 0.0
    %277 = vmatmul.mubr.f32.gmra.mxu0 %v205
    %v278 = vpop.f32.mrf.mxu0
    %v279 = vadd.f32 %v198, %v278
    %v280 = vpop.f32.mrf.mxu0
    %281 = vdwg.mxu0
    %s282 = scalar_lea.vmem [#allocation5], 32
    %v283 = vld [vmem:[%s282] sm:$0xff]
    %v284 = vld [vmem:[%s282 + $0x8] sm:$0xff]
    %v285 = vld [vmem:[%s282 + $0x10] sm:$0xff]
    %v286 = vld [vmem:[%s282 + $0x18] sm:$0xff]
    %s287 = scalar_lea.vmem %s3, 1
    %v288 = vld [vmem:[%s287] sm:$0x1]
    %v290 = vlaneseq
    %v291 = vshrl.u32 %v290, 7
    %v292 = vsub.s32 0, %v291
    %v293 = vrot.slane %v288, %v292
    %295 = vmatprep.subr.mxu0 0.0
    %296 = vmatpush1.msra.mxu0 0.0
    %297 = vmatprep.subr.mxu0 0.0
    %298 = vmatpush1.msra.mxu0 0.0
    %299 = vmatprep.subr.mxu0 0.0
    %300 = vmatpush1.msra.mxu0 0.0
    %301 = vmatprep.subr.mxu0 0.0
    %302 = vmatpush1.msra.mxu0 0.0
    %303 = vmatprep.subr.mxu0 0.0
    %304 = vmatpush1.msra.mxu0 0.0
    %305 = vmatprep.subr.mxu0 0.0
    %306 = vmatpush1.msra.mxu0 0.0
    %307 = vmatprep.subr.mxu0 0.0
    %308 = vmatpush1.msra.mxu0 0.0
    %309 = vmatprep.subr.mxu0 0.0
    %310 = vmatpush1.msra.mxu0 0.0
    %311 = vmatprep.subr.mxu0 0.0
    %312 = vmatpush1.msra.mxu0 0.0
    %313 = vmatprep.subr.mxu0 0.0
    %314 = vmatpush1.msra.mxu0 0.0
    %315 = vmatprep.subr.mxu0 0.0
    %316 = vmatpush1.msra.mxu0 0.0
    %317 = vmatprep.subr.mxu0 0.0
    %318 = vmatpush1.msra.mxu0 0.0
    %319 = vmatprep.subr.mxu0 0.0
    %320 = vmatpush1.msra.mxu0 %v286
    %321 = vmatprep.subr.mxu0 0.0
    %322 = vmatpush1.msra.mxu0 %v285
    %323 = vmatprep.subr.mxu0 0.0
    %324 = vmatpush1.msra.mxu0 %v284
    %325 = vmatprep.subr.mxu0 0.0
    %326 = vmatpush1.msra.mxu0 %v283
    %327 = vmatprep.subr.mxu0 0.0
    %328 = vmatpush2.msra.mxu0 0.0
    %329 = vmatprep.subr.mxu0 0.0
    %330 = vmatpush2.msra.mxu0 0.0
    %331 = vmatprep.subr.mxu0 0.0
    %332 = vmatpush2.msra.mxu0 0.0
    %333 = vmatprep.subr.mxu0 0.0
    %334 = vmatpush2.msra.mxu0 0.0
    %335 = vmatprep.subr.mxu0 0.0
    %336 = vmatpush2.msra.mxu0 0.0
    %337 = vmatprep.subr.mxu0 0.0
    %338 = vmatpush2.msra.mxu0 0.0
    %339 = vmatprep.subr.mxu0 0.0
    %340 = vmatpush2.msra.mxu0 0.0
    %341 = vmatprep.subr.mxu0 0.0
    %342 = vmatpush2.msra.mxu0 0.0
    %343 = vmatprep.subr.mxu0 0.0
    %344 = vmatpush2.msra.mxu0 0.0
    %345 = vmatprep.subr.mxu0 0.0
    %346 = vmatpush2.msra.mxu0 0.0
    %347 = vmatprep.subr.mxu0 0.0
    %348 = vmatpush2.msra.mxu0 0.0
    %349 = vmatprep.subr.mxu0 0.0
    %350 = vmatpush2.msra.mxu0 0.0
    %351 = vmatprep.subr.mxu0 0.0
    %352 = vmatpush2.msra.mxu0 0.0
    %353 = vmatprep.subr.mxu0 0.0
    %354 = vmatpush2.msra.mxu0 0.0
    %355 = vmatprep.subr.mxu0 0.0
    %356 = vmatpush2.msra.mxu0 0.0
    %357 = vmatprep.subr.mxu0 0.0
    %358 = vmatpush2.msra.mxu0 0.0
    %359 = vmatprep.mubr.f32.mxu0 0.0
    %360 = vmatmul.mubr.f32.gmra.mxu0 %v202
    %v361 = vpop.f32.mrf.mxu0
    %v362 = vadd.f32 %v293, %v361
    %v363 = vpop.f32.mrf.mxu0
    %364 = vmatprep.mubr.f32.mxu0 0.0
    %365 = vmatmul.mubr.f32.gmra.mxu0 %v205
    %v366 = vpop.f32.mrf.mxu0
    %v367 = vadd.f32 %v293, %v366
    %v368 = vpop.f32.mrf.mxu0
    %369 = vdwg.mxu0
    %s370 = scalar_lea.vmem [#allocation5], 64
    %v371 = vld [vmem:[%s370] sm:$0xff]
    %v372 = vld [vmem:[%s370 + $0x8] sm:$0xff]
    %v373 = vld [vmem:[%s370 + $0x10] sm:$0xff]
    %v374 = vld [vmem:[%s370 + $0x18] sm:$0xff]
    %s375 = scalar_lea.vmem %s3, 2
    %v376 = vld [vmem:[%s375] sm:$0x1]
    %v378 = vlaneseq
    %v379 = vshrl.u32 %v378, 7
    %v380 = vsub.s32 0, %v379
    %v381 = vrot.slane %v376, %v380
    %383 = vmatprep.subr.mxu0 0.0
    %384 = vmatpush1.msra.mxu0 0.0
    %385 = vmatprep.subr.mxu0 0.0
    %386 = vmatpush1.msra.mxu0 0.0
    %387 = vmatprep.subr.mxu0 0.0
    %388 = vmatpush1.msra.mxu0 0.0
    %389 = vmatprep.subr.mxu0 0.0
    %390 = vmatpush1.msra.mxu0 0.0
    %391 = vmatprep.subr.mxu0 0.0
    %392 = vmatpush1.msra.mxu0 0.0
    %393 = vmatprep.subr.mxu0 0.0
    %394 = vmatpush1.msra.mxu0 0.0
    %395 = vmatprep.subr.mxu0 0.0
    %396 = vmatpush1.msra.mxu0 0.0
    %397 = vmatprep.subr.mxu0 0.0
    %398 = vmatpush1.msra.mxu0 0.0
    %399 = vmatprep.subr.mxu0 0.0
    %400 = vmatpush1.msra.mxu0 0.0
    %401 = vmatprep.subr.mxu0 0.0
    %402 = vmatpush1.msra.mxu0 0.0
    %403 = vmatprep.subr.mxu0 0.0
    %404 = vmatpush1.msra.mxu0 0.0
    %405 = vmatprep.subr.mxu0 0.0
    %406 = vmatpush1.msra.mxu0 0.0
    %407 = vmatprep.subr.mxu0 0.0
    %408 = vmatpush1.msra.mxu0 %v374
    %409 = vmatprep.subr.mxu0 0.0
    %410 = vmatpush1.msra.mxu0 %v373
    %411 = vmatprep.subr.mxu0 0.0
    %412 = vmatpush1.msra.mxu0 %v372
    %413 = vmatprep.subr.mxu0 0.0
    %414 = vmatpush1.msra.mxu0 %v371
    %415 = vmatprep.subr.mxu0 0.0
    %416 = vmatpush2.msra.mxu0 0.0
    %417 = vmatprep.subr.mxu0 0.0
    %418 = vmatpush2.msra.mxu0 0.0
    %419 = vmatprep.subr.mxu0 0.0
    %420 = vmatpush2.msra.mxu0 0.0
    %421 = vmatprep.subr.mxu0 0.0
    %422 = vmatpush2.msra.mxu0 0.0
    %423 = vmatprep.subr.mxu0 0.0
    %424 = vmatpush2.msra.mxu0 0.0
    %425 = vmatprep.subr.mxu0 0.0
    %426 = vmatpush2.msra.mxu0 0.0
    %427 = vmatprep.subr.mxu0 0.0
    %428 = vmatpush2.msra.mxu0 0.0
    %429 = vmatprep.subr.mxu0 0.0
    %430 = vmatpush2.msra.mxu0 0.0
    %431 = vmatprep.subr.mxu0 0.0
    %432 = vmatpush2.msra.mxu0 0.0
    %433 = vmatprep.subr.mxu0 0.0
    %434 = vmatpush2.msra.mxu0 0.0
    %435 = vmatprep.subr.mxu0 0.0
    %436 = vmatpush2.msra.mxu0 0.0
    %437 = vmatprep.subr.mxu0 0.0
    %438 = vmatpush2.msra.mxu0 0.0
    %439 = vmatprep.subr.mxu0 0.0
    %440 = vmatpush2.msra.mxu0 0.0
    %441 = vmatprep.subr.mxu0 0.0
    %442 = vmatpush2.msra.mxu0 0.0
    %443 = vmatprep.subr.mxu0 0.0
    %444 = vmatpush2.msra.mxu0 0.0
    %445 = vmatprep.subr.mxu0 0.0
    %446 = vmatpush2.msra.mxu0 0.0
    %447 = vmatprep.mubr.f32.mxu0 0.0
    %448 = vmatmul.mubr.f32.gmra.mxu0 %v202
    %v449 = vpop.f32.mrf.mxu0
    %v450 = vadd.f32 %v381, %v449
    %v451 = vpop.f32.mrf.mxu0
    %452 = vmatprep.mubr.f32.mxu0 0.0
    %453 = vmatmul.mubr.f32.gmra.mxu0 %v205
    %v454 = vpop.f32.mrf.mxu0
    %v455 = vadd.f32 %v381, %v454
    %v456 = vpop.f32.mrf.mxu0
    %457 = vdwg.mxu0
    %s458 = scalar_lea.vmem [#allocation5], 96
    %v459 = vld [vmem:[%s458] sm:$0xff]
    %v460 = vld [vmem:[%s458 + $0x8] sm:$0xff]
    %v461 = vld [vmem:[%s458 + $0x10] sm:$0xff]
    %v462 = vld [vmem:[%s458 + $0x18] sm:$0xff]
    %s463 = scalar_lea.vmem %s3, 3
    %v464 = vld [vmem:[%s463] sm:$0x1]
    %v466 = vlaneseq
    %v467 = vshrl.u32 %v466, 7
    %v468 = vsub.s32 0, %v467
    %v469 = vrot.slane %v464, %v468
    %471 = vmatprep.subr.mxu0 0.0
    %472 = vmatpush1.msra.mxu0 0.0
    %473 = vmatprep.subr.mxu0 0.0
    %474 = vmatpush1.msra.mxu0 0.0
    %475 = vmatprep.subr.mxu0 0.0
    %476 = vmatpush1.msra.mxu0 0.0
    %477 = vmatprep.subr.mxu0 0.0
    %478 = vmatpush1.msra.mxu0 0.0
    %479 = vmatprep.subr.mxu0 0.0
    %480 = vmatpush1.msra.mxu0 0.0
    %481 = vmatprep.subr.mxu0 0.0
    %482 = vmatpush1.msra.mxu0 0.0
    %483 = vmatprep.subr.mxu0 0.0
    %484 = vmatpush1.msra.mxu0 0.0
    %485 = vmatprep.subr.mxu0 0.0
    %486 = vmatpush1.msra.mxu0 0.0
    %487 = vmatprep.subr.mxu0 0.0
    %488 = vmatpush1.msra.mxu0 0.0
    %489 = vmatprep.subr.mxu0 0.0
    %490 = vmatpush1.msra.mxu0 0.0
    %491 = vmatprep.subr.mxu0 0.0
    %492 = vmatpush1.msra.mxu0 0.0
    %493 = vmatprep.subr.mxu0 0.0
    %494 = vmatpush1.msra.mxu0 0.0
    %495 = vmatprep.subr.mxu0 0.0
    %496 = vmatpush1.msra.mxu0 %v462
    %497 = vmatprep.subr.mxu0 0.0
    %498 = vmatpush1.msra.mxu0 %v461
    %499 = vmatprep.subr.mxu0 0.0
    %500 = vmatpush1.msra.mxu0 %v460
    %501 = vmatprep.subr.mxu0 0.0
    %502 = vmatpush1.msra.mxu0 %v459
    %503 = vmatprep.subr.mxu0 0.0
    %504 = vmatpush2.msra.mxu0 0.0
    %505 = vmatprep.subr.mxu0 0.0
    %506 = vmatpush2.msra.mxu0 0.0
    %507 = vmatprep.subr.mxu0 0.0
    %508 = vmatpush2.msra.mxu0 0.0
    %509 = vmatprep.subr.mxu0 0.0
    %510 = vmatpush2.msra.mxu0 0.0
    %511 = vmatprep.subr.mxu0 0.0
    %512 = vmatpush2.msra.mxu0 0.0
    %513 = vmatprep.subr.mxu0 0.0
    %514 = vmatpush2.msra.mxu0 0.0
    %515 = vmatprep.subr.mxu0 0.0
    %516 = vmatpush2.msra.mxu0 0.0
    %517 = vmatprep.subr.mxu0 0.0
    %518 = vmatpush2.msra.mxu0 0.0
    %519 = vmatprep.subr.mxu0 0.0
    %520 = vmatpush2.msra.mxu0 0.0
    %521 = vmatprep.subr.mxu0 0.0
    %522 = vmatpush2.msra.mxu0 0.0
    %523 = vmatprep.subr.mxu0 0.0
    %524 = vmatpush2.msra.mxu0 0.0
    %525 = vmatprep.subr.mxu0 0.0
    %526 = vmatpush2.msra.mxu0 0.0
    %527 = vmatprep.subr.mxu0 0.0
    %528 = vmatpush2.msra.mxu0 0.0
    %529 = vmatprep.subr.mxu0 0.0
    %530 = vmatpush2.msra.mxu0 0.0
    %531 = vmatprep.subr.mxu0 0.0
    %532 = vmatpush2.msra.mxu0 0.0
    %533 = vmatprep.subr.mxu0 0.0
    %534 = vmatpush2.msra.mxu0 0.0
    %535 = vmatprep.mubr.f32.mxu0 0.0
    %536 = vmatmul.mubr.f32.gmra.mxu0 %v202
    %v537 = vpop.f32.mrf.mxu0
    %v538 = vadd.f32 %v469, %v537
    %v539 = vpop.f32.mrf.mxu0
    %540 = vmatprep.mubr.f32.mxu0 0.0
    %541 = vmatmul.mubr.f32.gmra.mxu0 %v205
    %v542 = vpop.f32.mrf.mxu0
    %v543 = vadd.f32 %v469, %v542
    %v544 = vpop.f32.mrf.mxu0
    %545 = vdwg.mxu0
    %v546 = vrot.slane %v274, 1
    %v547 = vrot.slane %v279, 1
    %v548 = vlaneseq
    %v549 = vshrl.u32 %v548, 7
    %vm550 = vcmp.lt.s32.totalorder %v549, 7
    %v551 = vsel %vm550, %v546, %v547
    %v552 = vsel %vm550, %v547, %v546
    %v553 = vrot.slane %v362, 1
    %v554 = vrot.slane %v367, 1
    %v555 = vsel %vm550, %v553, %v554
    %v556 = vsel %vm550, %v554, %v553
    %v557 = vrot.slane %v450, 1
    %v558 = vrot.slane %v455, 1
    %v559 = vsel %vm550, %v557, %v558
    %v560 = vsel %vm550, %v558, %v557
    %v561 = vrot.slane %v538, 1
    %v562 = vrot.slane %v543, 1
    %v563 = vsel %vm550, %v561, %v562
    %v564 = vsel %vm550, %v562, %v561
    %v565 = vxor.u32 %v551, 2147483648
    %v566 = vxor.u32 %v552, 2147483648
    %v567 = vmul.f32 %v565, 1.442695
    %v568 = vpow.pop %v567
    %v569 = vmul.f32 %v566, 1.442695
    %v570 = vpow.pop %v569
    %v571 = vadd.f32 %v568, 1.0
    %v572 = vadd.f32 %v570, 1.0
    %v573 = vrcp.pop %v571
    %v574 = vmul.f32 1.0, %v573
    %v575 = vrcp.pop %v572
    %v576 = vmul.f32 1.0, %v575
    %v577 = vxor.u32 %v555, 2147483648
    %v578 = vxor.u32 %v556, 2147483648
    %v579 = vmul.f32 %v577, 1.442695
    %v580 = vpow.pop %v579
    %v581 = vmul.f32 %v578, 1.442695
    %v582 = vpow.pop %v581
    %v583 = vadd.f32 %v580, 1.0
    %v584 = vadd.f32 %v582, 1.0
    %v585 = vrcp.pop %v583
    %v586 = vmul.f32 1.0, %v585
    %v587 = vrcp.pop %v584
    %v588 = vmul.f32 1.0, %v587
    %v589 = vtanh.pop %v559
    %v590 = vtanh.pop %v560
    %v591 = vxor.u32 %v563, 2147483648
    %v592 = vxor.u32 %v564, 2147483648
    %v593 = vmul.f32 %v591, 1.442695
    %v594 = vpow.pop %v593
    %v595 = vmul.f32 %v592, 1.442695
    %v596 = vpow.pop %v595
    %v597 = vadd.f32 %v594, 1.0
    %v598 = vadd.f32 %v596, 1.0
    %v599 = vrcp.pop %v597
    %v600 = vmul.f32 1.0, %v599
    %v601 = vrcp.pop %v598
    %v602 = vmul.f32 1.0, %v601
    %v603 = vmul.f32 %v586, 0.0
    %v604 = vmul.f32 %v588, 0.0
    %v605 = vmul.f32 %v574, %v589
    %v606 = vmul.f32 %v576, %v590
    %v607 = vadd.f32 %v603, %v605
    %v608 = vadd.f32 %v604, %v606
    %v609 = vtanh.pop %v607
    %v610 = vtanh.pop %v608
    %v611 = vmul.f32 %v600, %v609
    %v612 = vmul.f32 %v602, %v610
    %v613 = vrot.slane %v274, 2
    %v614 = vrot.slane %v279, 2
    %vm615 = vcmp.lt.s32.totalorder %v549, 6
    %v616 = vsel %vm615, %v613, %v614
    %v617 = vsel %vm615, %v614, %v613
    %v618 = vrot.slane %v362, 2
    %v619 = vrot.slane %v367, 2
    %v620 = vsel %vm615, %v618, %v619
    %v621 = vsel %vm615, %v619, %v618
    %v622 = vrot.slane %v450, 2
    %v623 = vrot.slane %v455, 2
    %v624 = vsel %vm615, %v622, %v623
    %v625 = vsel %vm615, %v623, %v622
    %v626 = vrot.slane %v538, 2
    %v627 = vrot.slane %v543, 2
    %v628 = vsel %vm615, %v626, %v627
    %v629 = vsel %vm615, %v627, %v626
    %v630 = vld [vmem:[#allocation7] sm:$0xff]
    %v631 = vld [vmem:[#allocation7 + $0x8] sm:$0xff]
    %v632 = vld [vmem:[#allocation7 + $0x10] sm:$0xff]
    %v633 = vld [vmem:[#allocation7 + $0x18] sm:$0xff]
    %v635 = vsel %vm200, %v611, 0
    %v638 = vsel %vm200, %v612, 0
    %640 = vmatprep.subr.mxu0 0.0
    %641 = vmatpush1.msra.mxu0 0.0
    %642 = vmatprep.subr.mxu0 0.0
    %643 = vmatpush1.msra.mxu0 0.0
    %644 = vmatprep.subr.mxu0 0.0
    %645 = vmatpush1.msra.mxu0 0.0
    %646 = vmatprep.subr.mxu0 0.0
    %647 = vmatpush1.msra.mxu0 0.0
    %648 = vmatprep.subr.mxu0 0.0
    %649 = vmatpush1.msra.mxu0 0.0
    %650 = vmatprep.subr.mxu0 0.0
    %651 = vmatpush1.msra.mxu0 0.0
    %652 = vmatprep.subr.mxu0 0.0
    %653 = vmatpush1.msra.mxu0 0.0
    %654 = vmatprep.subr.mxu0 0.0
    %655 = vmatpush1.msra.mxu0 0.0
    %656 = vmatprep.subr.mxu0 0.0
    %657 = vmatpush1.msra.mxu0 0.0
    %658 = vmatprep.subr.mxu0 0.0
    %659 = vmatpush1.msra.mxu0 0.0
    %660 = vmatprep.subr.mxu0 0.0
    %661 = vmatpush1.msra.mxu0 0.0
    %662 = vmatprep.subr.mxu0 0.0
    %663 = vmatpush1.msra.mxu0 0.0
    %664 = vmatprep.subr.mxu0 0.0
    %665 = vmatpush1.msra.mxu0 %v633
    %666 = vmatprep.subr.mxu0 0.0
    %667 = vmatpush1.msra.mxu0 %v632
    %668 = vmatprep.subr.mxu0 0.0
    %669 = vmatpush1.msra.mxu0 %v631
    %670 = vmatprep.subr.mxu0 0.0
    %671 = vmatpush1.msra.mxu0 %v630
    %672 = vmatprep.subr.mxu0 0.0
    %673 = vmatpush2.msra.mxu0 0.0
    %674 = vmatprep.subr.mxu0 0.0
    %675 = vmatpush2.msra.mxu0 0.0
    %676 = vmatprep.subr.mxu0 0.0
    %677 = vmatpush2.msra.mxu0 0.0
    %678 = vmatprep.subr.mxu0 0.0
    %679 = vmatpush2.msra.mxu0 0.0
    %680 = vmatprep.subr.mxu0 0.0
    %681 = vmatpush2.msra.mxu0 0.0
    %682 = vmatprep.subr.mxu0 0.0
    %683 = vmatpush2.msra.mxu0 0.0
    %684 = vmatprep.subr.mxu0 0.0
    %685 = vmatpush2.msra.mxu0 0.0
    %686 = vmatprep.subr.mxu0 0.0
    %687 = vmatpush2.msra.mxu0 0.0
    %688 = vmatprep.subr.mxu0 0.0
    %689 = vmatpush2.msra.mxu0 0.0
    %690 = vmatprep.subr.mxu0 0.0
    %691 = vmatpush2.msra.mxu0 0.0
    %692 = vmatprep.subr.mxu0 0.0
    %693 = vmatpush2.msra.mxu0 0.0
    %694 = vmatprep.subr.mxu0 0.0
    %695 = vmatpush2.msra.mxu0 0.0
    %696 = vmatprep.subr.mxu0 0.0
    %697 = vmatpush2.msra.mxu0 0.0
    %698 = vmatprep.subr.mxu0 0.0
    %699 = vmatpush2.msra.mxu0 0.0
    %700 = vmatprep.subr.mxu0 0.0
    %701 = vmatpush2.msra.mxu0 0.0
    %702 = vmatprep.subr.mxu0 0.0
    %703 = vmatpush2.msra.mxu0 0.0
    %704 = vmatprep.mubr.f32.mxu0 0.0
    %705 = vmatmul.mubr.f32.gmra.mxu0 %v635
    %v706 = vpop.f32.mrf.mxu0
    %v707 = vadd.f32 0.0, %v706
    %v708 = vpop.f32.mrf.mxu0
    %709 = vmatprep.mubr.f32.mxu0 0.0
    %710 = vmatmul.mubr.f32.gmra.mxu0 %v638
    %v711 = vpop.f32.mrf.mxu0
    %v712 = vadd.f32 0.0, %v711
    %v713 = vpop.f32.mrf.mxu0
    %714 = vdwg.mxu0
    %v715 = vadd.f32 %v616, %v707
    %v716 = vadd.f32 %v617, %v712
    %s717 = scalar_lea.vmem [#allocation7], 32
    %v718 = vld [vmem:[%s717] sm:$0xff]
    %v719 = vld [vmem:[%s717 + $0x8] sm:$0xff]
    %v720 = vld [vmem:[%s717 + $0x10] sm:$0xff]
    %v721 = vld [vmem:[%s717 + $0x18] sm:$0xff]
    %722 = vmatprep.subr.mxu0 0.0
    %723 = vmatpush1.msra.mxu0 0.0
    %724 = vmatprep.subr.mxu0 0.0
    %725 = vmatpush1.msra.mxu0 0.0
    %726 = vmatprep.subr.mxu0 0.0
    %727 = vmatpush1.msra.mxu0 0.0
    %728 = vmatprep.subr.mxu0 0.0
    %729 = vmatpush1.msra.mxu0 0.0
    %730 = vmatprep.subr.mxu0 0.0
    %731 = vmatpush1.msra.mxu0 0.0
    %732 = vmatprep.subr.mxu0 0.0
    %733 = vmatpush1.msra.mxu0 0.0
    %734 = vmatprep.subr.mxu0 0.0
    %735 = vmatpush1.msra.mxu0 0.0
    %736 = vmatprep.subr.mxu0 0.0
    %737 = vmatpush1.msra.mxu0 0.0
    %738 = vmatprep.subr.mxu0 0.0
    %739 = vmatpush1.msra.mxu0 0.0
    %740 = vmatprep.subr.mxu0 0.0
    %741 = vmatpush1.msra.mxu0 0.0
    %742 = vmatprep.subr.mxu0 0.0
    %743 = vmatpush1.msra.mxu0 0.0
    %744 = vmatprep.subr.mxu0 0.0
    %745 = vmatpush1.msra.mxu0 0.0
    %746 = vmatprep.subr.mxu0 0.0
    %747 = vmatpush1.msra.mxu0 %v721
    %748 = vmatprep.subr.mxu0 0.0
    %749 = vmatpush1.msra.mxu0 %v720
    %750 = vmatprep.subr.mxu0 0.0
    %751 = vmatpush1.msra.mxu0 %v719
    %752 = vmatprep.subr.mxu0 0.0
    %753 = vmatpush1.msra.mxu0 %v718
    %754 = vmatprep.subr.mxu0 0.0
    %755 = vmatpush2.msra.mxu0 0.0
    %756 = vmatprep.subr.mxu0 0.0
    %757 = vmatpush2.msra.mxu0 0.0
    %758 = vmatprep.subr.mxu0 0.0
    %759 = vmatpush2.msra.mxu0 0.0
    %760 = vmatprep.subr.mxu0 0.0
    %761 = vmatpush2.msra.mxu0 0.0
    %762 = vmatprep.subr.mxu0 0.0
    %763 = vmatpush2.msra.mxu0 0.0
    %764 = vmatprep.subr.mxu0 0.0
    %765 = vmatpush2.msra.mxu0 0.0
    %766 = vmatprep.subr.mxu0 0.0
    %767 = vmatpush2.msra.mxu0 0.0
    %768 = vmatprep.subr.mxu0 0.0
    %769 = vmatpush2.msra.mxu0 0.0
    %770 = vmatprep.subr.mxu0 0.0
    %771 = vmatpush2.msra.mxu0 0.0
    %772 = vmatprep.subr.mxu0 0.0
    %773 = vmatpush2.msra.mxu0 0.0
    %774 = vmatprep.subr.mxu0 0.0
    %775 = vmatpush2.msra.mxu0 0.0
    %776 = vmatprep.subr.mxu0 0.0
    %777 = vmatpush2.msra.mxu0 0.0
    %778 = vmatprep.subr.mxu0 0.0
    %779 = vmatpush2.msra.mxu0 0.0
    %780 = vmatprep.subr.mxu0 0.0
    %781 = vmatpush2.msra.mxu0 0.0
    %782 = vmatprep.subr.mxu0 0.0
    %783 = vmatpush2.msra.mxu0 0.0
    %784 = vmatprep.subr.mxu0 0.0
    %785 = vmatpush2.msra.mxu0 0.0
    %786 = vmatprep.mubr.f32.mxu0 0.0
    %787 = vmatmul.mubr.f32.gmra.mxu0 %v635
    %v788 = vpop.f32.mrf.mxu0
    %v789 = vadd.f32 0.0, %v788
    %v790 = vpop.f32.mrf.mxu0
    %791 = vmatprep.mubr.f32.mxu0 0.0
    %792 = vmatmul.mubr.f32.gmra.mxu0 %v638
    %v793 = vpop.f32.mrf.mxu0
    %v794 = vadd.f32 0.0, %v793
    %v795 = vpop.f32.mrf.mxu0
    %796 = vdwg.mxu0
    %v797 = vadd.f32 %v620, %v789
    %v798 = vadd.f32 %v621, %v794
    %s799 = scalar_lea.vmem [#allocation7], 64
    %v800 = vld [vmem:[%s799] sm:$0xff]
    %v801 = vld [vmem:[%s799 + $0x8] sm:$0xff]
    %v802 = vld [vmem:[%s799 + $0x10] sm:$0xff]
    %v803 = vld [vmem:[%s799 + $0x18] sm:$0xff]
    %804 = vmatprep.subr.mxu0 0.0
    %805 = vmatpush1.msra.mxu0 0.0
    %806 = vmatprep.subr.mxu0 0.0
    %807 = vmatpush1.msra.mxu0 0.0
    %808 = vmatprep.subr.mxu0 0.0
    %809 = vmatpush1.msra.mxu0 0.0
    %810 = vmatprep.subr.mxu0 0.0
    %811 = vmatpush1.msra.mxu0 0.0
    %812 = vmatprep.subr.mxu0 0.0
    %813 = vmatpush1.msra.mxu0 0.0
    %814 = vmatprep.subr.mxu0 0.0
    %815 = vmatpush1.msra.mxu0 0.0
    %816 = vmatprep.subr.mxu0 0.0
    %817 = vmatpush1.msra.mxu0 0.0
    %818 = vmatprep.subr.mxu0 0.0
    %819 = vmatpush1.msra.mxu0 0.0
    %820 = vmatprep.subr.mxu0 0.0
    %821 = vmatpush1.msra.mxu0 0.0
    %822 = vmatprep.subr.mxu0 0.0
    %823 = vmatpush1.msra.mxu0 0.0
    %824 = vmatprep.subr.mxu0 0.0
    %825 = vmatpush1.msra.mxu0 0.0
    %826 = vmatprep.subr.mxu0 0.0
    %827 = vmatpush1.msra.mxu0 0.0
    %828 = vmatprep.subr.mxu0 0.0
    %829 = vmatpush1.msra.mxu0 %v803
    %830 = vmatprep.subr.mxu0 0.0
    %831 = vmatpush1.msra.mxu0 %v802
    %832 = vmatprep.subr.mxu0 0.0
    %833 = vmatpush1.msra.mxu0 %v801
    %834 = vmatprep.subr.mxu0 0.0
    %835 = vmatpush1.msra.mxu0 %v800
    %836 = vmatprep.subr.mxu0 0.0
    %837 = vmatpush2.msra.mxu0 0.0
    %838 = vmatprep.subr.mxu0 0.0
    %839 = vmatpush2.msra.mxu0 0.0
    %840 = vmatprep.subr.mxu0 0.0
    %841 = vmatpush2.msra.mxu0 0.0
    %842 = vmatprep.subr.mxu0 0.0
    %843 = vmatpush2.msra.mxu0 0.0
    %844 = vmatprep.subr.mxu0 0.0
    %845 = vmatpush2.msra.mxu0 0.0
    %846 = vmatprep.subr.mxu0 0.0
    %847 = vmatpush2.msra.mxu0 0.0
    %848 = vmatprep.subr.mxu0 0.0
    %849 = vmatpush2.msra.mxu0 0.0
    %850 = vmatprep.subr.mxu0 0.0
    %851 = vmatpush2.msra.mxu0 0.0
    %852 = vmatprep.subr.mxu0 0.0
    %853 = vmatpush2.msra.mxu0 0.0
    %854 = vmatprep.subr.mxu0 0.0
    %855 = vmatpush2.msra.mxu0 0.0
    %856 = vmatprep.subr.mxu0 0.0
    %857 = vmatpush2.msra.mxu0 0.0
    %858 = vmatprep.subr.mxu0 0.0
    %859 = vmatpush2.msra.mxu0 0.0
    %860 = vmatprep.subr.mxu0 0.0
    %861 = vmatpush2.msra.mxu0 0.0
    %862 = vmatprep.subr.mxu0 0.0
    %863 = vmatpush2.msra.mxu0 0.0
    %864 = vmatprep.subr.mxu0 0.0
    %865 = vmatpush2.msra.mxu0 0.0
    %866 = vmatprep.subr.mxu0 0.0
    %867 = vmatpush2.msra.mxu0 0.0
    %868 = vmatprep.mubr.f32.mxu0 0.0
    %869 = vmatmul.mubr.f32.gmra.mxu0 %v635
    %v870 = vpop.f32.mrf.mxu0
    %v871 = vadd.f32 0.0, %v870
    %v872 = vpop.f32.mrf.mxu0
    %873 = vmatprep.mubr.f32.mxu0 0.0
    %874 = vmatmul.mubr.f32.gmra.mxu0 %v638
    %v875 = vpop.f32.mrf.mxu0
    %v876 = vadd.f32 0.0, %v875
    %v877 = vpop.f32.mrf.mxu0
    %878 = vdwg.mxu0
    %v879 = vadd.f32 %v624, %v871
    %v880 = vadd.f32 %v625, %v876
    %s881 = scalar_lea.vmem [#allocation7], 96
    %v882 = vld [vmem:[%s881] sm:$0xff]
    %v883 = vld [vmem:[%s881 + $0x8] sm:$0xff]
    %v884 = vld [vmem:[%s881 + $0x10] sm:$0xff]
    %v885 = vld [vmem:[%s881 + $0x18] sm:$0xff]
    %886 = vmatprep.subr.mxu0 0.0
    %887 = vmatpush1.msra.mxu0 0.0
    %888 = vmatprep.subr.mxu0 0.0
    %889 = vmatpush1.msra.mxu0 0.0
    %890 = vmatprep.subr.mxu0 0.0
    %891 = vmatpush1.msra.mxu0 0.0
    %892 = vmatprep.subr.mxu0 0.0
    %893 = vmatpush1.msra.mxu0 0.0
    %894 = vmatprep.subr.mxu0 0.0
    %895 = vmatpush1.msra.mxu0 0.0
    %896 = vmatprep.subr.mxu0 0.0
    %897 = vmatpush1.msra.mxu0 0.0
    %898 = vmatprep.subr.mxu0 0.0
    %899 = vmatpush1.msra.mxu0 0.0
    %900 = vmatprep.subr.mxu0 0.0
    %901 = vmatpush1.msra.mxu0 0.0
    %902 = vmatprep.subr.mxu0 0.0
    %903 = vmatpush1.msra.mxu0 0.0
    %904 = vmatprep.subr.mxu0 0.0
    %905 = vmatpush1.msra.mxu0 0.0
    %906 = vmatprep.subr.mxu0 0.0
    %907 = vmatpush1.msra.mxu0 0.0
    %908 = vmatprep.subr.mxu0 0.0
    %909 = vmatpush1.msra.mxu0 0.0
    %910 = vmatprep.subr.mxu0 0.0
    %911 = vmatpush1.msra.mxu0 %v885
    %912 = vmatprep.subr.mxu0 0.0
    %913 = vmatpush1.msra.mxu0 %v884
    %914 = vmatprep.subr.mxu0 0.0
    %915 = vmatpush1.msra.mxu0 %v883
    %916 = vmatprep.subr.mxu0 0.0
    %917 = vmatpush1.msra.mxu0 %v882
    %918 = vmatprep.subr.mxu0 0.0
    %919 = vmatpush2.msra.mxu0 0.0
    %920 = vmatprep.subr.mxu0 0.0
    %921 = vmatpush2.msra.mxu0 0.0
    %922 = vmatprep.subr.mxu0 0.0
    %923 = vmatpush2.msra.mxu0 0.0
    %924 = vmatprep.subr.mxu0 0.0
    %925 = vmatpush2.msra.mxu0 0.0
    %926 = vmatprep.subr.mxu0 0.0
    %927 = vmatpush2.msra.mxu0 0.0
    %928 = vmatprep.subr.mxu0 0.0
    %929 = vmatpush2.msra.mxu0 0.0
    %930 = vmatprep.subr.mxu0 0.0
    %931 = vmatpush2.msra.mxu0 0.0
    %932 = vmatprep.subr.mxu0 0.0
    %933 = vmatpush2.msra.mxu0 0.0
    %934 = vmatprep.subr.mxu0 0.0
    %935 = vmatpush2.msra.mxu0 0.0
    %936 = vmatprep.subr.mxu0 0.0
    %937 = vmatpush2.msra.mxu0 0.0
    %938 = vmatprep.subr.mxu0 0.0
    %939 = vmatpush2.msra.mxu0 0.0
    %940 = vmatprep.subr.mxu0 0.0
    %941 = vmatpush2.msra.mxu0 0.0
    %942 = vmatprep.subr.mxu0 0.0
    %943 = vmatpush2.msra.mxu0 0.0
    %944 = vmatprep.subr.mxu0 0.0
    %945 = vmatpush2.msra.mxu0 0.0
    %946 = vmatprep.subr.mxu0 0.0
    %947 = vmatpush2.msra.mxu0 0.0
    %948 = vmatprep.subr.mxu0 0.0
    %949 = vmatpush2.msra.mxu0 0.0
    %950 = vmatprep.mubr.f32.mxu0 0.0
    %951 = vmatmul.mubr.f32.gmra.mxu0 %v635
    %v952 = vpop.f32.mrf.mxu0
    %v953 = vadd.f32 0.0, %v952
    %v954 = vpop.f32.mrf.mxu0
    %955 = vmatprep.mubr.f32.mxu0 0.0
    %956 = vmatmul.mubr.f32.gmra.mxu0 %v638
    %v957 = vpop.f32.mrf.mxu0
    %v958 = vadd.f32 0.0, %v957
    %v959 = vpop.f32.mrf.mxu0
    %960 = vdwg.mxu0
    %v961 = vadd.f32 %v628, %v953
    %v962 = vadd.f32 %v629, %v958
    %v963 = vxor.u32 %v715, 2147483648
    %v964 = vxor.u32 %v716, 2147483648
    %v965 = vmul.f32 %v963, 1.442695
    %v966 = vpow.pop %v965
    %v967 = vmul.f32 %v964, 1.442695
    %v968 = vpow.pop %v967
    %v969 = vadd.f32 %v966, 1.0
    %v970 = vadd.f32 %v968, 1.0
    %v971 = vrcp.pop %v969
    %v972 = vmul.f32 1.0, %v971
    %v973 = vrcp.pop %v970
    %v974 = vmul.f32 1.0, %v973
    %v975 = vxor.u32 %v797, 2147483648
    %v976 = vxor.u32 %v798, 2147483648
    %v977 = vmul.f32 %v975, 1.442695
    %v978 = vpow.pop %v977
    %v979 = vmul.f32 %v976, 1.442695
    %v980 = vpow.pop %v979
    %v981 = vadd.f32 %v978, 1.0
    %v982 = vadd.f32 %v980, 1.0
    %v983 = vrcp.pop %v981
    %v984 = vmul.f32 1.0, %v983
    %v985 = vrcp.pop %v982
    %v986 = vmul.f32 1.0, %v985
    %v987 = vtanh.pop %v879
    %v988 = vtanh.pop %v880
    %v989 = vxor.u32 %v961, 2147483648
    %v990 = vxor.u32 %v962, 2147483648
    %v991 = vmul.f32 %v989, 1.442695
    %v992 = vpow.pop %v991
    %v993 = vmul.f32 %v990, 1.442695
    %v994 = vpow.pop %v993
    %v995 = vadd.f32 %v992, 1.0
    %v996 = vadd.f32 %v994, 1.0
    %v997 = vrcp.pop %v995
    %v998 = vmul.f32 1.0, %v997
    %v999 = vrcp.pop %v996
    %v1000 = vmul.f32 1.0, %v999
    %v1001 = vmul.f32 %v984, %v607
    %v1002 = vmul.f32 %v986, %v608
    %v1003 = vmul.f32 %v972, %v987
    %v1004 = vmul.f32 %v974, %v988
    %v1005 = vadd.f32 %v1001, %v1003
    %v1006 = vadd.f32 %v1002, %v1004
    %v1007 = vtanh.pop %v1005
    %v1008 = vtanh.pop %v1006
    %v1009 = vmul.f32 %v998, %v1007
    %v1010 = vmul.f32 %v1000, %v1008
    %v1011 = vrot.slane %v274, 3
    %v1012 = vrot.slane %v279, 3
    %vm1013 = vcmp.lt.s32.totalorder %v549, 5
    %v1014 = vsel %vm1013, %v1011, %v1012
    %v1015 = vsel %vm1013, %v1012, %v1011
    %v1016 = vrot.slane %v362, 3
    %v1017 = vrot.slane %v367, 3
    %v1018 = vsel %vm1013, %v1016, %v1017
    %v1019 = vsel %vm1013, %v1017, %v1016
    %v1020 = vrot.slane %v450, 3
    %v1021 = vrot.slane %v455, 3
    %v1022 = vsel %vm1013, %v1020, %v1021
    %v1023 = vsel %vm1013, %v1021, %v1020
    %v1024 = vrot.slane %v538, 3
    %v1025 = vrot.slane %v543, 3
    %v1026 = vsel %vm1013, %v1024, %v1025
    %v1027 = vsel %vm1013, %v1025, %v1024
    %v1029 = vsel %vm200, %v1009, 0
    %v1032 = vsel %vm200, %v1010, 0
    %1034 = vmatprep.subr.mxu0 0.0
    %1035 = vmatpush1.msra.mxu0 0.0
    %1036 = vmatprep.subr.mxu0 0.0
    %1037 = vmatpush1.msra.mxu0 0.0
    %1038 = vmatprep.subr.mxu0 0.0
    %1039 = vmatpush1.msra.mxu0 0.0
    %1040 = vmatprep.subr.mxu0 0.0
    %1041 = vmatpush1.msra.mxu0 0.0
    %1042 = vmatprep.subr.mxu0 0.0
    %1043 = vmatpush1.msra.mxu0 0.0
    %1044 = vmatprep.subr.mxu0 0.0
    %1045 = vmatpush1.msra.mxu0 0.0
    %1046 = vmatprep.subr.mxu0 0.0
    %1047 = vmatpush1.msra.mxu0 0.0
    %1048 = vmatprep.subr.mxu0 0.0
    %1049 = vmatpush1.msra.mxu0 0.0
    %1050 = vmatprep.subr.mxu0 0.0
    %1051 = vmatpush1.msra.mxu0 0.0
    %1052 = vmatprep.subr.mxu0 0.0
    %1053 = vmatpush1.msra.mxu0 0.0
    %1054 = vmatprep.subr.mxu0 0.0
    %1055 = vmatpush1.msra.mxu0 0.0
    %1056 = vmatprep.subr.mxu0 0.0
    %1057 = vmatpush1.msra.mxu0 0.0
    %1058 = vmatprep.subr.mxu0 0.0
    %1059 = vmatpush1.msra.mxu0 %v633
    %1060 = vmatprep.subr.mxu0 0.0
    %1061 = vmatpush1.msra.mxu0 %v632
    %1062 = vmatprep.subr.mxu0 0.0
    %1063 = vmatpush1.msra.mxu0 %v631
    %1064 = vmatprep.subr.mxu0 0.0
    %1065 = vmatpush1.msra.mxu0 %v630
    %1066 = vmatprep.subr.mxu0 0.0
    %1067 = vmatpush2.msra.mxu0 0.0
    %1068 = vmatprep.subr.mxu0 0.0
    %1069 = vmatpush2.msra.mxu0 0.0
    %1070 = vmatprep.subr.mxu0 0.0
    %1071 = vmatpush2.msra.mxu0 0.0
    %1072 = vmatprep.subr.mxu0 0.0
    %1073 = vmatpush2.msra.mxu0 0.0
    %1074 = vmatprep.subr.mxu0 0.0
    %1075 = vmatpush2.msra.mxu0 0.0
    %1076 = vmatprep.subr.mxu0 0.0
    %1077 = vmatpush2.msra.mxu0 0.0
    %1078 = vmatprep.subr.mxu0 0.0
    %1079 = vmatpush2.msra.mxu0 0.0
    %1080 = vmatprep.subr.mxu0 0.0
    %1081 = vmatpush2.msra.mxu0 0.0
    %1082 = vmatprep.subr.mxu0 0.0
    %1083 = vmatpush2.msra.mxu0 0.0
    %1084 = vmatprep.subr.mxu0 0.0
    %1085 = vmatpush2.msra.mxu0 0.0
    %1086 = vmatprep.subr.mxu0 0.0
    %1087 = vmatpush2.msra.mxu0 0.0
    %1088 = vmatprep.subr.mxu0 0.0
    %1089 = vmatpush2.msra.mxu0 0.0
    %1090 = vmatprep.subr.mxu0 0.0
    %1091 = vmatpush2.msra.mxu0 0.0
    %1092 = vmatprep.subr.mxu0 0.0
    %1093 = vmatpush2.msra.mxu0 0.0
    %1094 = vmatprep.subr.mxu0 0.0
    %1095 = vmatpush2.msra.mxu0 0.0
    %1096 = vmatprep.subr.mxu0 0.0
    %1097 = vmatpush2.msra.mxu0 0.0
    %1098 = vmatprep.mubr.f32.mxu0 0.0
    %1099 = vmatmul.mubr.f32.gmra.mxu0 %v1029
    %v1100 = vpop.f32.mrf.mxu0
    %v1101 = vadd.f32 0.0, %v1100
    %v1102 = vpop.f32.mrf.mxu0
    %1103 = vmatprep.mubr.f32.mxu0 0.0
    %1104 = vmatmul.mubr.f32.gmra.mxu0 %v1032
    %v1105 = vpop.f32.mrf.mxu0
    %v1106 = vadd.f32 0.0, %v1105
    %v1107 = vpop.f32.mrf.mxu0
    %1108 = vdwg.mxu0
    %v1109 = vadd.f32 %v1014, %v1101
    %v1110 = vadd.f32 %v1015, %v1106
    %1111 = vmatprep.subr.mxu0 0.0
    %1112 = vmatpush1.msra.mxu0 0.0
    %1113 = vmatprep.subr.mxu0 0.0
    %1114 = vmatpush1.msra.mxu0 0.0
    %1115 = vmatprep.subr.mxu0 0.0
    %1116 = vmatpush1.msra.mxu0 0.0
    %1117 = vmatprep.subr.mxu0 0.0
    %1118 = vmatpush1.msra.mxu0 0.0
    %1119 = vmatprep.subr.mxu0 0.0
    %1120 = vmatpush1.msra.mxu0 0.0
    %1121 = vmatprep.subr.mxu0 0.0
    %1122 = vmatpush1.msra.mxu0 0.0
    %1123 = vmatprep.subr.mxu0 0.0
    %1124 = vmatpush1.msra.mxu0 0.0
    %1125 = vmatprep.subr.mxu0 0.0
    %1126 = vmatpush1.msra.mxu0 0.0
    %1127 = vmatprep.subr.mxu0 0.0
    %1128 = vmatpush1.msra.mxu0 0.0
    %1129 = vmatprep.subr.mxu0 0.0
    %1130 = vmatpush1.msra.mxu0 0.0
    %1131 = vmatprep.subr.mxu0 0.0
    %1132 = vmatpush1.msra.mxu0 0.0
    %1133 = vmatprep.subr.mxu0 0.0
    %1134 = vmatpush1.msra.mxu0 0.0
    %1135 = vmatprep.subr.mxu0 0.0
    %1136 = vmatpush1.msra.mxu0 %v721
    %1137 = vmatprep.subr.mxu0 0.0
    %1138 = vmatpush1.msra.mxu0 %v720
    %1139 = vmatprep.subr.mxu0 0.0
    %1140 = vmatpush1.msra.mxu0 %v719
    %1141 = vmatprep.subr.mxu0 0.0
    %1142 = vmatpush1.msra.mxu0 %v718
    %1143 = vmatprep.subr.mxu0 0.0
    %1144 = vmatpush2.msra.mxu0 0.0
    %1145 = vmatprep.subr.mxu0 0.0
    %1146 = vmatpush2.msra.mxu0 0.0
    %1147 = vmatprep.subr.mxu0 0.0
    %1148 = vmatpush2.msra.mxu0 0.0
    %1149 = vmatprep.subr.mxu0 0.0
    %1150 = vmatpush2.msra.mxu0 0.0
    %1151 = vmatprep.subr.mxu0 0.0
    %1152 = vmatpush2.msra.mxu0 0.0
    %1153 = vmatprep.subr.mxu0 0.0
    %1154 = vmatpush2.msra.mxu0 0.0
    %1155 = vmatprep.subr.mxu0 0.0
    %1156 = vmatpush2.msra.mxu0 0.0
    %1157 = vmatprep.subr.mxu0 0.0
    %1158 = vmatpush2.msra.mxu0 0.0
    %1159 = vmatprep.subr.mxu0 0.0
    %1160 = vmatpush2.msra.mxu0 0.0
    %1161 = vmatprep.subr.mxu0 0.0
    %1162 = vmatpush2.msra.mxu0 0.0
    %1163 = vmatprep.subr.mxu0 0.0
    %1164 = vmatpush2.msra.mxu0 0.0
    %1165 = vmatprep.subr.mxu0 0.0
    %1166 = vmatpush2.msra.mxu0 0.0
    %1167 = vmatprep.subr.mxu0 0.0
    %1168 = vmatpush2.msra.mxu0 0.0
    %1169 = vmatprep.subr.mxu0 0.0
    %1170 = vmatpush2.msra.mxu0 0.0
    %1171 = vmatprep.subr.mxu0 0.0
    %1172 = vmatpush2.msra.mxu0 0.0
    %1173 = vmatprep.subr.mxu0 0.0
    %1174 = vmatpush2.msra.mxu0 0.0
    %1175 = vmatprep.mubr.f32.mxu0 0.0
    %1176 = vmatmul.mubr.f32.gmra.mxu0 %v1029
    %v1177 = vpop.f32.mrf.mxu0
    %v1178 = vadd.f32 0.0, %v1177
    %v1179 = vpop.f32.mrf.mxu0
    %1180 = vmatprep.mubr.f32.mxu0 0.0
    %1181 = vmatmul.mubr.f32.gmra.mxu0 %v1032
    %v1182 = vpop.f32.mrf.mxu0
    %v1183 = vadd.f32 0.0, %v1182
    %v1184 = vpop.f32.mrf.mxu0
    %1185 = vdwg.mxu0
    %v1186 = vadd.f32 %v1018, %v1178
    %v1187 = vadd.f32 %v1019, %v1183
    %1188 = vmatprep.subr.mxu0 0.0
    %1189 = vmatpush1.msra.mxu0 0.0
    %1190 = vmatprep.subr.mxu0 0.0
    %1191 = vmatpush1.msra.mxu0 0.0
    %1192 = vmatprep.subr.mxu0 0.0
    %1193 = vmatpush1.msra.mxu0 0.0
    %1194 = vmatprep.subr.mxu0 0.0
    %1195 = vmatpush1.msra.mxu0 0.0
    %1196 = vmatprep.subr.mxu0 0.0
    %1197 = vmatpush1.msra.mxu0 0.0
    %1198 = vmatprep.subr.mxu0 0.0
    %1199 = vmatpush1.msra.mxu0 0.0
    %1200 = vmatprep.subr.mxu0 0.0
    %1201 = vmatpush1.msra.mxu0 0.0
    %1202 = vmatprep.subr.mxu0 0.0
    %1203 = vmatpush1.msra.mxu0 0.0
    %1204 = vmatprep.subr.mxu0 0.0
    %1205 = vmatpush1.msra.mxu0 0.0
    %1206 = vmatprep.subr.mxu0 0.0
    %1207 = vmatpush1.msra.mxu0 0.0
    %1208 = vmatprep.subr.mxu0 0.0
    %1209 = vmatpush1.msra.mxu0 0.0
    %1210 = vmatprep.subr.mxu0 0.0
    %1211 = vmatpush1.msra.mxu0 0.0
    %1212 = vmatprep.subr.mxu0 0.0
    %1213 = vmatpush1.msra.mxu0 %v803
    %1214 = vmatprep.subr.mxu0 0.0
    %1215 = vmatpush1.msra.mxu0 %v802
    %1216 = vmatprep.subr.mxu0 0.0
    %1217 = vmatpush1.msra.mxu0 %v801
    %1218 = vmatprep.subr.mxu0 0.0
    %1219 = vmatpush1.msra.mxu0 %v800
    %1220 = vmatprep.subr.mxu0 0.0
    %1221 = vmatpush2.msra.mxu0 0.0
    %1222 = vmatprep.subr.mxu0 0.0
    %1223 = vmatpush2.msra.mxu0 0.0
    %1224 = vmatprep.subr.mxu0 0.0
    %1225 = vmatpush2.msra.mxu0 0.0
    %1226 = vmatprep.subr.mxu0 0.0
    %1227 = vmatpush2.msra.mxu0 0.0
    %1228 = vmatprep.subr.mxu0 0.0
    %1229 = vmatpush2.msra.mxu0 0.0
    %1230 = vmatprep.subr.mxu0 0.0
    %1231 = vmatpush2.msra.mxu0 0.0
    %1232 = vmatprep.subr.mxu0 0.0
    %1233 = vmatpush2.msra.mxu0 0.0
    %1234 = vmatprep.subr.mxu0 0.0
    %1235 = vmatpush2.msra.mxu0 0.0
    %1236 = vmatprep.subr.mxu0 0.0
    %1237 = vmatpush2.msra.mxu0 0.0
    %1238 = vmatprep.subr.mxu0 0.0
    %1239 = vmatpush2.msra.mxu0 0.0
    %1240 = vmatprep.subr.mxu0 0.0
    %1241 = vmatpush2.msra.mxu0 0.0
    %1242 = vmatprep.subr.mxu0 0.0
    %1243 = vmatpush2.msra.mxu0 0.0
    %1244 = vmatprep.subr.mxu0 0.0
    %1245 = vmatpush2.msra.mxu0 0.0
    %1246 = vmatprep.subr.mxu0 0.0
    %1247 = vmatpush2.msra.mxu0 0.0
    %1248 = vmatprep.subr.mxu0 0.0
    %1249 = vmatpush2.msra.mxu0 0.0
    %1250 = vmatprep.subr.mxu0 0.0
    %1251 = vmatpush2.msra.mxu0 0.0
    %1252 = vmatprep.mubr.f32.mxu0 0.0
    %1253 = vmatmul.mubr.f32.gmra.mxu0 %v1029
    %v1254 = vpop.f32.mrf.mxu0
    %v1255 = vadd.f32 0.0, %v1254
    %v1256 = vpop.f32.mrf.mxu0
    %1257 = vmatprep.mubr.f32.mxu0 0.0
    %1258 = vmatmul.mubr.f32.gmra.mxu0 %v1032
    %v1259 = vpop.f32.mrf.mxu0
    %v1260 = vadd.f32 0.0, %v1259
    %v1261 = vpop.f32.mrf.mxu0
    %1262 = vdwg.mxu0
    %v1263 = vadd.f32 %v1022, %v1255
    %v1264 = vadd.f32 %v1023, %v1260
    %1265 = vmatprep.subr.mxu0 0.0
    %1266 = vmatpush1.msra.mxu0 0.0
    %1267 = vmatprep.subr.mxu0 0.0
    %1268 = vmatpush1.msra.mxu0 0.0
    %1269 = vmatprep.subr.mxu0 0.0
    %1270 = vmatpush1.msra.mxu0 0.0
    %1271 = vmatprep.subr.mxu0 0.0
    %1272 = vmatpush1.msra.mxu0 0.0
    %1273 = vmatprep.subr.mxu0 0.0
    %1274 = vmatpush1.msra.mxu0 0.0
    %1275 = vmatprep.subr.mxu0 0.0
    %1276 = vmatpush1.msra.mxu0 0.0
    %1277 = vmatprep.subr.mxu0 0.0
    %1278 = vmatpush1.msra.mxu0 0.0
    %1279 = vmatprep.subr.mxu0 0.0
    %1280 = vmatpush1.msra.mxu0 0.0
    %1281 = vmatprep.subr.mxu0 0.0
    %1282 = vmatpush1.msra.mxu0 0.0
    %1283 = vmatprep.subr.mxu0 0.0
    %1284 = vmatpush1.msra.mxu0 0.0
    %1285 = vmatprep.subr.mxu0 0.0
    %1286 = vmatpush1.msra.mxu0 0.0
    %1287 = vmatprep.subr.mxu0 0.0
    %1288 = vmatpush1.msra.mxu0 0.0
    %1289 = vmatprep.subr.mxu0 0.0
    %1290 = vmatpush1.msra.mxu0 %v885
    %1291 = vmatprep.subr.mxu0 0.0
    %1292 = vmatpush1.msra.mxu0 %v884
    %1293 = vmatprep.subr.mxu0 0.0
    %1294 = vmatpush1.msra.mxu0 %v883
    %1295 = vmatprep.subr.mxu0 0.0
    %1296 = vmatpush1.msra.mxu0 %v882
    %1297 = vmatprep.subr.mxu0 0.0
    %1298 = vmatpush2.msra.mxu0 0.0
    %1299 = vmatprep.subr.mxu0 0.0
    %1300 = vmatpush2.msra.mxu0 0.0
    %1301 = vmatprep.subr.mxu0 0.0
    %1302 = vmatpush2.msra.mxu0 0.0
    %1303 = vmatprep.subr.mxu0 0.0
    %1304 = vmatpush2.msra.mxu0 0.0
    %1305 = vmatprep.subr.mxu0 0.0
    %1306 = vmatpush2.msra.mxu0 0.0
    %1307 = vmatprep.subr.mxu0 0.0
    %1308 = vmatpush2.msra.mxu0 0.0
    %1309 = vmatprep.subr.mxu0 0.0
    %1310 = vmatpush2.msra.mxu0 0.0
    %1311 = vmatprep.subr.mxu0 0.0
    %1312 = vmatpush2.msra.mxu0 0.0
    %1313 = vmatprep.subr.mxu0 0.0
    %1314 = vmatpush2.msra.mxu0 0.0
    %1315 = vmatprep.subr.mxu0 0.0
    %1316 = vmatpush2.msra.mxu0 0.0
    %1317 = vmatprep.subr.mxu0 0.0
    %1318 = vmatpush2.msra.mxu0 0.0
    %1319 = vmatprep.subr.mxu0 0.0
    %1320 = vmatpush2.msra.mxu0 0.0
    %1321 = vmatprep.subr.mxu0 0.0
    %1322 = vmatpush2.msra.mxu0 0.0
    %1323 = vmatprep.subr.mxu0 0.0
    %1324 = vmatpush2.msra.mxu0 0.0
    %1325 = vmatprep.subr.mxu0 0.0
    %1326 = vmatpush2.msra.mxu0 0.0
    %1327 = vmatprep.subr.mxu0 0.0
    %1328 = vmatpush2.msra.mxu0 0.0
    %1329 = vmatprep.mubr.f32.mxu0 0.0
    %1330 = vmatmul.mubr.f32.gmra.mxu0 %v1029
    %v1331 = vpop.f32.mrf.mxu0
    %v1332 = vadd.f32 0.0, %v1331
    %v1333 = vpop.f32.mrf.mxu0
    %1334 = vmatprep.mubr.f32.mxu0 0.0
    %1335 = vmatmul.mubr.f32.gmra.mxu0 %v1032
    %v1336 = vpop.f32.mrf.mxu0
    %v1337 = vadd.f32 0.0, %v1336
    %v1338 = vpop.f32.mrf.mxu0
    %1339 = vdwg.mxu0
    %v1340 = vadd.f32 %v1026, %v1332
    %v1341 = vadd.f32 %v1027, %v1337
    %v1342 = vxor.u32 %v1109, 2147483648
    %v1343 = vxor.u32 %v1110, 2147483648
    %v1344 = vmul.f32 %v1342, 1.442695
    %v1345 = vpow.pop %v1344
    %v1346 = vmul.f32 %v1343, 1.442695
    %v1347 = vpow.pop %v1346
    %v1348 = vadd.f32 %v1345, 1.0
    %v1349 = vadd.f32 %v1347, 1.0
    %v1350 = vrcp.pop %v1348
    %v1351 = vmul.f32 1.0, %v1350
    %v1352 = vrcp.pop %v1349
    %v1353 = vmul.f32 1.0, %v1352
    %v1354 = vxor.u32 %v1186, 2147483648
    %v1355 = vxor.u32 %v1187, 2147483648
    %v1356 = vmul.f32 %v1354, 1.442695
    %v1357 = vpow.pop %v1356
    %v1358 = vmul.f32 %v1355, 1.442695
    %v1359 = vpow.pop %v1358
    %v1360 = vadd.f32 %v1357, 1.0
    %v1361 = vadd.f32 %v1359, 1.0
    %v1362 = vrcp.pop %v1360
    %v1363 = vmul.f32 1.0, %v1362
    %v1364 = vrcp.pop %v1361
    %v1365 = vmul.f32 1.0, %v1364
    %v1366 = vtanh.pop %v1263
    %v1367 = vtanh.pop %v1264
    %v1368 = vxor.u32 %v1340, 2147483648
    %v1369 = vxor.u32 %v1341, 2147483648
    %v1370 = vmul.f32 %v1368, 1.442695
    %v1371 = vpow.pop %v1370
    %v1372 = vmul.f32 %v1369, 1.442695
    %v1373 = vpow.pop %v1372
    %v1374 = vadd.f32 %v1371, 1.0
    %v1375 = vadd.f32 %v1373, 1.0
    %v1376 = vrcp.pop %v1374
    %v1377 = vmul.f32 1.0, %v1376
    %v1378 = vrcp.pop %v1375
    %v1379 = vmul.f32 1.0, %v1378
    %v1380 = vmul.f32 %v1363, %v1005
    %v1381 = vmul.f32 %v1365, %v1006
    %v1382 = vmul.f32 %v1351, %v1366
    %v1383 = vmul.f32 %v1353, %v1367
    %v1384 = vadd.f32 %v1380, %v1382
    %v1385 = vadd.f32 %v1381, %v1383
    %v1386 = vtanh.pop %v1384
    %v1387 = vtanh.pop %v1385
    %v1388 = vmul.f32 %v1377, %v1386
    %v1389 = vmul.f32 %v1379, %v1387
    %v1390 = vrot.slane %v274, 4
    %v1391 = vrot.slane %v279, 4
    %vm1392 = vcmp.lt.s32.totalorder %v549, 4
    %v1393 = vsel %vm1392, %v1390, %v1391
    %v1394 = vsel %vm1392, %v1391, %v1390
    %v1395 = vrot.slane %v362, 4
    %v1396 = vrot.slane %v367, 4
    %v1397 = vsel %vm1392, %v1395, %v1396
    %v1398 = vsel %vm1392, %v1396, %v1395
    %v1399 = vrot.slane %v450, 4
    %v1400 = vrot.slane %v455, 4
    %v1401 = vsel %vm1392, %v1399, %v1400
    %v1402 = vsel %vm1392, %v1400, %v1399
    %v1403 = vrot.slane %v538, 4
    %v1404 = vrot.slane %v543, 4
    %v1405 = vsel %vm1392, %v1403, %v1404
    %v1406 = vsel %vm1392, %v1404, %v1403
    %v1408 = vsel %vm200, %v1388, 0
    %v1411 = vsel %vm200, %v1389, 0
    %1413 = vmatprep.subr.mxu0 0.0
    %1414 = vmatpush1.msra.mxu0 0.0
    %1415 = vmatprep.subr.mxu0 0.0
    %1416 = vmatpush1.msra.mxu0 0.0
    %1417 = vmatprep.subr.mxu0 0.0
    %1418 = vmatpush1.msra.mxu0 0.0
    %1419 = vmatprep.subr.mxu0 0.0
    %1420 = vmatpush1.msra.mxu0 0.0
    %1421 = vmatprep.subr.mxu0 0.0
    %1422 = vmatpush1.msra.mxu0 0.0
    %1423 = vmatprep.subr.mxu0 0.0
    %1424 = vmatpush1.msra.mxu0 0.0
    %1425 = vmatprep.subr.mxu0 0.0
    %1426 = vmatpush1.msra.mxu0 0.0
    %1427 = vmatprep.subr.mxu0 0.0
    %1428 = vmatpush1.msra.mxu0 0.0
    %1429 = vmatprep.subr.mxu0 0.0
    %1430 = vmatpush1.msra.mxu0 0.0
    %1431 = vmatprep.subr.mxu0 0.0
    %1432 = vmatpush1.msra.mxu0 0.0
    %1433 = vmatprep.subr.mxu0 0.0
    %1434 = vmatpush1.msra.mxu0 0.0
    %1435 = vmatprep.subr.mxu0 0.0
    %1436 = vmatpush1.msra.mxu0 0.0
    %1437 = vmatprep.subr.mxu0 0.0
    %1438 = vmatpush1.msra.mxu0 %v633
    %1439 = vmatprep.subr.mxu0 0.0
    %1440 = vmatpush1.msra.mxu0 %v632
    %1441 = vmatprep.subr.mxu0 0.0
    %1442 = vmatpush1.msra.mxu0 %v631
    %1443 = vmatprep.subr.mxu0 0.0
    %1444 = vmatpush1.msra.mxu0 %v630
    %1445 = vmatprep.subr.mxu0 0.0
    %1446 = vmatpush2.msra.mxu0 0.0
    %1447 = vmatprep.subr.mxu0 0.0
    %1448 = vmatpush2.msra.mxu0 0.0
    %1449 = vmatprep.subr.mxu0 0.0
    %1450 = vmatpush2.msra.mxu0 0.0
    %1451 = vmatprep.subr.mxu0 0.0
    %1452 = vmatpush2.msra.mxu0 0.0
    %1453 = vmatprep.subr.mxu0 0.0
    %1454 = vmatpush2.msra.mxu0 0.0
    %1455 = vmatprep.subr.mxu0 0.0
    %1456 = vmatpush2.msra.mxu0 0.0
    %1457 = vmatprep.subr.mxu0 0.0
    %1458 = vmatpush2.msra.mxu0 0.0
    %1459 = vmatprep.subr.mxu0 0.0
    %1460 = vmatpush2.msra.mxu0 0.0
    %1461 = vmatprep.subr.mxu0 0.0
    %1462 = vmatpush2.msra.mxu0 0.0
    %1463 = vmatprep.subr.mxu0 0.0
    %1464 = vmatpush2.msra.mxu0 0.0
    %1465 = vmatprep.subr.mxu0 0.0
    %1466 = vmatpush2.msra.mxu0 0.0
    %1467 = vmatprep.subr.mxu0 0.0
    %1468 = vmatpush2.msra.mxu0 0.0
    %1469 = vmatprep.subr.mxu0 0.0
    %1470 = vmatpush2.msra.mxu0 0.0
    %1471 = vmatprep.subr.mxu0 0.0
    %1472 = vmatpush2.msra.mxu0 0.0
    %1473 = vmatprep.subr.mxu0 0.0
    %1474 = vmatpush2.msra.mxu0 0.0
    %1475 = vmatprep.subr.mxu0 0.0
    %1476 = vmatpush2.msra.mxu0 0.0
    %1477 = vmatprep.mubr.f32.mxu0 0.0
    %1478 = vmatmul.mubr.f32.gmra.mxu0 %v1408
    %v1479 = vpop.f32.mrf.mxu0
    %v1480 = vadd.f32 0.0, %v1479
    %v1481 = vpop.f32.mrf.mxu0
    %1482 = vmatprep.mubr.f32.mxu0 0.0
    %1483 = vmatmul.mubr.f32.gmra.mxu0 %v1411
    %v1484 = vpop.f32.mrf.mxu0
    %v1485 = vadd.f32 0.0, %v1484
    %v1486 = vpop.f32.mrf.mxu0
    %1487 = vdwg.mxu0
    %v1488 = vadd.f32 %v1393, %v1480
    %v1489 = vadd.f32 %v1394, %v1485
    %1490 = vmatprep.subr.mxu0 0.0
    %1491 = vmatpush1.msra.mxu0 0.0
    %1492 = vmatprep.subr.mxu0 0.0
    %1493 = vmatpush1.msra.mxu0 0.0
    %1494 = vmatprep.subr.mxu0 0.0
    %1495 = vmatpush1.msra.mxu0 0.0
    %1496 = vmatprep.subr.mxu0 0.0
    %1497 = vmatpush1.msra.mxu0 0.0
    %1498 = vmatprep.subr.mxu0 0.0
    %1499 = vmatpush1.msra.mxu0 0.0
    %1500 = vmatprep.subr.mxu0 0.0
    %1501 = vmatpush1.msra.mxu0 0.0
    %1502 = vmatprep.subr.mxu0 0.0
    %1503 = vmatpush1.msra.mxu0 0.0
    %1504 = vmatprep.subr.mxu0 0.0
    %1505 = vmatpush1.msra.mxu0 0.0
    %1506 = vmatprep.subr.mxu0 0.0
    %1507 = vmatpush1.msra.mxu0 0.0
    %1508 = vmatprep.subr.mxu0 0.0
    %1509 = vmatpush1.msra.mxu0 0.0
    %1510 = vmatprep.subr.mxu0 0.0
    %1511 = vmatpush1.msra.mxu0 0.0
    %1512 = vmatprep.subr.mxu0 0.0
    %1513 = vmatpush1.msra.mxu0 0.0
    %1514 = vmatprep.subr.mxu0 0.0
    %1515 = vmatpush1.msra.mxu0 %v721
    %1516 = vmatprep.subr.mxu0 0.0
    %1517 = vmatpush1.msra.mxu0 %v720
    %1518 = vmatprep.subr.mxu0 0.0
    %1519 = vmatpush1.msra.mxu0 %v719
    %1520 = vmatprep.subr.mxu0 0.0
    %1521 = vmatpush1.msra.mxu0 %v718
    %1522 = vmatprep.subr.mxu0 0.0
    %1523 = vmatpush2.msra.mxu0 0.0
    %1524 = vmatprep.subr.mxu0 0.0
    %1525 = vmatpush2.msra.mxu0 0.0
    %1526 = vmatprep.subr.mxu0 0.0
    %1527 = vmatpush2.msra.mxu0 0.0
    %1528 = vmatprep.subr.mxu0 0.0
    %1529 = vmatpush2.msra.mxu0 0.0
    %1530 = vmatprep.subr.mxu0 0.0
    %1531 = vmatpush2.msra.mxu0 0.0
    %1532 = vmatprep.subr.mxu0 0.0
    %1533 = vmatpush2.msra.mxu0 0.0
    %1534 = vmatprep.subr.mxu0 0.0
    %1535 = vmatpush2.msra.mxu0 0.0
    %1536 = vmatprep.subr.mxu0 0.0
    %1537 = vmatpush2.msra.mxu0 0.0
    %1538 = vmatprep.subr.mxu0 0.0
    %1539 = vmatpush2.msra.mxu0 0.0
    %1540 = vmatprep.subr.mxu0 0.0
    %1541 = vmatpush2.msra.mxu0 0.0
    %1542 = vmatprep.subr.mxu0 0.0
    %1543 = vmatpush2.msra.mxu0 0.0
    %1544 = vmatprep.subr.mxu0 0.0
    %1545 = vmatpush2.msra.mxu0 0.0
    %1546 = vmatprep.subr.mxu0 0.0
    %1547 = vmatpush2.msra.mxu0 0.0
    %1548 = vmatprep.subr.mxu0 0.0
    %1549 = vmatpush2.msra.mxu0 0.0
    %1550 = vmatprep.subr.mxu0 0.0
    %1551 = vmatpush2.msra.mxu0 0.0
    %1552 = vmatprep.subr.mxu0 0.0
    %1553 = vmatpush2.msra.mxu0 0.0
    %1554 = vmatprep.mubr.f32.mxu0 0.0
    %1555 = vmatmul.mubr.f32.gmra.mxu0 %v1408
    %v1556 = vpop.f32.mrf.mxu0
    %v1557 = vadd.f32 0.0, %v1556
    %v1558 = vpop.f32.mrf.mxu0
    %1559 = vmatprep.mubr.f32.mxu0 0.0
    %1560 = vmatmul.mubr.f32.gmra.mxu0 %v1411
    %v1561 = vpop.f32.mrf.mxu0
    %v1562 = vadd.f32 0.0, %v1561
    %v1563 = vpop.f32.mrf.mxu0
    %1564 = vdwg.mxu0
    %v1565 = vadd.f32 %v1397, %v1557
    %v1566 = vadd.f32 %v1398, %v1562
    %1567 = vmatprep.subr.mxu0 0.0
    %1568 = vmatpush1.msra.mxu0 0.0
    %1569 = vmatprep.subr.mxu0 0.0
    %1570 = vmatpush1.msra.mxu0 0.0
    %1571 = vmatprep.subr.mxu0 0.0
    %1572 = vmatpush1.msra.mxu0 0.0
    %1573 = vmatprep.subr.mxu0 0.0
    %1574 = vmatpush1.msra.mxu0 0.0
    %1575 = vmatprep.subr.mxu0 0.0
    %1576 = vmatpush1.msra.mxu0 0.0
    %1577 = vmatprep.subr.mxu0 0.0
    %1578 = vmatpush1.msra.mxu0 0.0
    %1579 = vmatprep.subr.mxu0 0.0
    %1580 = vmatpush1.msra.mxu0 0.0
    %1581 = vmatprep.subr.mxu0 0.0
    %1582 = vmatpush1.msra.mxu0 0.0
    %1583 = vmatprep.subr.mxu0 0.0
    %1584 = vmatpush1.msra.mxu0 0.0
    %1585 = vmatprep.subr.mxu0 0.0
    %1586 = vmatpush1.msra.mxu0 0.0
    %1587 = vmatprep.subr.mxu0 0.0
    %1588 = vmatpush1.msra.mxu0 0.0
    %1589 = vmatprep.subr.mxu0 0.0
    %1590 = vmatpush1.msra.mxu0 0.0
    %1591 = vmatprep.subr.mxu0 0.0
    %1592 = vmatpush1.msra.mxu0 %v803
    %1593 = vmatprep.subr.mxu0 0.0
    %1594 = vmatpush1.msra.mxu0 %v802
    %1595 = vmatprep.subr.mxu0 0.0
    %1596 = vmatpush1.msra.mxu0 %v801
    %1597 = vmatprep.subr.mxu0 0.0
    %1598 = vmatpush1.msra.mxu0 %v800
    %1599 = vmatprep.subr.mxu0 0.0
    %1600 = vmatpush2.msra.mxu0 0.0
    %1601 = vmatprep.subr.mxu0 0.0
    %1602 = vmatpush2.msra.mxu0 0.0
    %1603 = vmatprep.subr.mxu0 0.0
    %1604 = vmatpush2.msra.mxu0 0.0
    %1605 = vmatprep.subr.mxu0 0.0
    %1606 = vmatpush2.msra.mxu0 0.0
    %1607 = vmatprep.subr.mxu0 0.0
    %1608 = vmatpush2.msra.mxu0 0.0
    %1609 = vmatprep.subr.mxu0 0.0
    %1610 = vmatpush2.msra.mxu0 0.0
    %1611 = vmatprep.subr.mxu0 0.0
    %1612 = vmatpush2.msra.mxu0 0.0
    %1613 = vmatprep.subr.mxu0 0.0
    %1614 = vmatpush2.msra.mxu0 0.0
    %1615 = vmatprep.subr.mxu0 0.0
    %1616 = vmatpush2.msra.mxu0 0.0
    %1617 = vmatprep.subr.mxu0 0.0
    %1618 = vmatpush2.msra.mxu0 0.0
    %1619 = vmatprep.subr.mxu0 0.0
    %1620 = vmatpush2.msra.mxu0 0.0
    %1621 = vmatprep.subr.mxu0 0.0
    %1622 = vmatpush2.msra.mxu0 0.0
    %1623 = vmatprep.subr.mxu0 0.0
    %1624 = vmatpush2.msra.mxu0 0.0
    %1625 = vmatprep.subr.mxu0 0.0
    %1626 = vmatpush2.msra.mxu0 0.0
    %1627 = vmatprep.subr.mxu0 0.0
    %1628 = vmatpush2.msra.mxu0 0.0
    %1629 = vmatprep.subr.mxu0 0.0
    %1630 = vmatpush2.msra.mxu0 0.0
    %1631 = vmatprep.mubr.f32.mxu0 0.0
    %1632 = vmatmul.mubr.f32.gmra.mxu0 %v1408
    %v1633 = vpop.f32.mrf.mxu0
    %v1634 = vadd.f32 0.0, %v1633
    %v1635 = vpop.f32.mrf.mxu0
    %1636 = vmatprep.mubr.f32.mxu0 0.0
    %1637 = vmatmul.mubr.f32.gmra.mxu0 %v1411
    %v1638 = vpop.f32.mrf.mxu0
    %v1639 = vadd.f32 0.0, %v1638
    %v1640 = vpop.f32.mrf.mxu0
    %1641 = vdwg.mxu0
    %v1642 = vadd.f32 %v1401, %v1634
    %v1643 = vadd.f32 %v1402, %v1639
    %1644 = vmatprep.subr.mxu0 0.0
    %1645 = vmatpush1.msra.mxu0 0.0
    %1646 = vmatprep.subr.mxu0 0.0
    %1647 = vmatpush1.msra.mxu0 0.0
    %1648 = vmatprep.subr.mxu0 0.0
    %1649 = vmatpush1.msra.mxu0 0.0
    %1650 = vmatprep.subr.mxu0 0.0
    %1651 = vmatpush1.msra.mxu0 0.0
    %1652 = vmatprep.subr.mxu0 0.0
    %1653 = vmatpush1.msra.mxu0 0.0
    %1654 = vmatprep.subr.mxu0 0.0
    %1655 = vmatpush1.msra.mxu0 0.0
    %1656 = vmatprep.subr.mxu0 0.0
    %1657 = vmatpush1.msra.mxu0 0.0
    %1658 = vmatprep.subr.mxu0 0.0
    %1659 = vmatpush1.msra.mxu0 0.0
    %1660 = vmatprep.subr.mxu0 0.0
    %1661 = vmatpush1.msra.mxu0 0.0
    %1662 = vmatprep.subr.mxu0 0.0
    %1663 = vmatpush1.msra.mxu0 0.0
    %1664 = vmatprep.subr.mxu0 0.0
    %1665 = vmatpush1.msra.mxu0 0.0
    %1666 = vmatprep.subr.mxu0 0.0
    %1667 = vmatpush1.msra.mxu0 0.0
    %1668 = vmatprep.subr.mxu0 0.0
    %1669 = vmatpush1.msra.mxu0 %v885
    %1670 = vmatprep.subr.mxu0 0.0
    %1671 = vmatpush1.msra.mxu0 %v884
    %1672 = vmatprep.subr.mxu0 0.0
    %1673 = vmatpush1.msra.mxu0 %v883
    %1674 = vmatprep.subr.mxu0 0.0
    %1675 = vmatpush1.msra.mxu0 %v882
    %1676 = vmatprep.subr.mxu0 0.0
    %1677 = vmatpush2.msra.mxu0 0.0
    %1678 = vmatprep.subr.mxu0 0.0
    %1679 = vmatpush2.msra.mxu0 0.0
    %1680 = vmatprep.subr.mxu0 0.0
    %1681 = vmatpush2.msra.mxu0 0.0
    %1682 = vmatprep.subr.mxu0 0.0
    %1683 = vmatpush2.msra.mxu0 0.0
    %1684 = vmatprep.subr.mxu0 0.0
    %1685 = vmatpush2.msra.mxu0 0.0
    %1686 = vmatprep.subr.mxu0 0.0
    %1687 = vmatpush2.msra.mxu0 0.0
    %1688 = vmatprep.subr.mxu0 0.0
    %1689 = vmatpush2.msra.mxu0 0.0
    %1690 = vmatprep.subr.mxu0 0.0
    %1691 = vmatpush2.msra.mxu0 0.0
    %1692 = vmatprep.subr.mxu0 0.0
    %1693 = vmatpush2.msra.mxu0 0.0
    %1694 = vmatprep.subr.mxu0 0.0
    %1695 = vmatpush2.msra.mxu0 0.0
    %1696 = vmatprep.subr.mxu0 0.0
    %1697 = vmatpush2.msra.mxu0 0.0
    %1698 = vmatprep.subr.mxu0 0.0
    %1699 = vmatpush2.msra.mxu0 0.0
    %1700 = vmatprep.subr.mxu0 0.0
    %1701 = vmatpush2.msra.mxu0 0.0
    %1702 = vmatprep.subr.mxu0 0.0
    %1703 = vmatpush2.msra.mxu0 0.0
    %1704 = vmatprep.subr.mxu0 0.0
    %1705 = vmatpush2.msra.mxu0 0.0
    %1706 = vmatprep.subr.mxu0 0.0
    %1707 = vmatpush2.msra.mxu0 0.0
    %1708 = vmatprep.mubr.f32.mxu0 0.0
    %1709 = vmatmul.mubr.f32.gmra.mxu0 %v1408
    %v1710 = vpop.f32.mrf.mxu0
    %v1711 = vadd.f32 0.0, %v1710
    %v1712 = vpop.f32.mrf.mxu0
    %1713 = vmatprep.mubr.f32.mxu0 0.0
    %1714 = vmatmul.mubr.f32.gmra.mxu0 %v1411
    %v1715 = vpop.f32.mrf.mxu0
    %v1716 = vadd.f32 0.0, %v1715
    %v1717 = vpop.f32.mrf.mxu0
    %1718 = vdwg.mxu0
    %v1719 = vadd.f32 %v1405, %v1711
    %v1720 = vadd.f32 %v1406, %v1716
    %v1721 = vxor.u32 %v1488, 2147483648
    %v1722 = vxor.u32 %v1489, 2147483648
    %v1723 = vmul.f32 %v1721, 1.442695
    %v1724 = vpow.pop %v1723
    %v1725 = vmul.f32 %v1722, 1.442695
    %v1726 = vpow.pop %v1725
    %v1727 = vadd.f32 %v1724, 1.0
    %v1728 = vadd.f32 %v1726, 1.0
    %v1729 = vrcp.pop %v1727
    %v1730 = vmul.f32 1.0, %v1729
    %v1731 = vrcp.pop %v1728
    %v1732 = vmul.f32 1.0, %v1731
    %v1733 = vxor.u32 %v1565, 2147483648
    %v1734 = vxor.u32 %v1566, 2147483648
    %v1735 = vmul.f32 %v1733, 1.442695
    %v1736 = vpow.pop %v1735
    %v1737 = vmul.f32 %v1734, 1.442695
    %v1738 = vpow.pop %v1737
    %v1739 = vadd.f32 %v1736, 1.0
    %v1740 = vadd.f32 %v1738, 1.0
    %v1741 = vrcp.pop %v1739
    %v1742 = vmul.f32 1.0, %v1741
    %v1743 = vrcp.pop %v1740
    %v1744 = vmul.f32 1.0, %v1743
    %v1745 = vtanh.pop %v1642
    %v1746 = vtanh.pop %v1643
    %v1747 = vxor.u32 %v1719, 2147483648
    %v1748 = vxor.u32 %v1720, 2147483648
    %v1749 = vmul.f32 %v1747, 1.442695
    %v1750 = vpow.pop %v1749
    %v1751 = vmul.f32 %v1748, 1.442695
    %v1752 = vpow.pop %v1751
    %v1753 = vadd.f32 %v1750, 1.0
    %v1754 = vadd.f32 %v1752, 1.0
    %v1755 = vrcp.pop %v1753
    %v1756 = vmul.f32 1.0, %v1755
    %v1757 = vrcp.pop %v1754
    %v1758 = vmul.f32 1.0, %v1757
    %v1759 = vmul.f32 %v1742, %v1384
    %v1760 = vmul.f32 %v1744, %v1385
    %v1761 = vmul.f32 %v1730, %v1745
    %v1762 = vmul.f32 %v1732, %v1746
    %v1763 = vadd.f32 %v1759, %v1761
    %v1764 = vadd.f32 %v1760, %v1762
    %v1765 = vtanh.pop %v1763
    %v1766 = vtanh.pop %v1764
    %v1767 = vmul.f32 %v1756, %v1765
    %v1768 = vmul.f32 %v1758, %v1766
    %v1769 = vld [vmem:[#allocation8] sm:$0xff]
    %v1770 = vld [vmem:[#allocation8 + $0x8] sm:$0xff]
    %v1771 = vld [vmem:[#allocation8 + $0x10] sm:$0xff]
    %v1772 = vld [vmem:[#allocation8 + $0x18] sm:$0xff]
    %v1773 = vld [vmem:[#allocation10] sm:$0xff]
    %v1774 = vld [vmem:[#allocation10 + $0x8] sm:$0xff]
    %v1775 = vld [vmem:[#allocation10 + $0x10] sm:$0xff]
    %v1776 = vld [vmem:[#allocation10 + $0x18] sm:$0xff]
    %v1778 = vsel %vm200, %v1767, 0
    %v1781 = vsel %vm200, %v1768, 0
    %1783 = vmatprep.subr.mxu0 0.0
    %1784 = vmatpush1.msra.mxu0 0.0
    %1785 = vmatprep.subr.mxu0 0.0
    %1786 = vmatpush1.msra.mxu0 0.0
    %1787 = vmatprep.subr.mxu0 0.0
    %1788 = vmatpush1.msra.mxu0 0.0
    %1789 = vmatprep.subr.mxu0 0.0
    %1790 = vmatpush1.msra.mxu0 0.0
    %1791 = vmatprep.subr.mxu0 0.0
    %1792 = vmatpush1.msra.mxu0 0.0
    %1793 = vmatprep.subr.mxu0 0.0
    %1794 = vmatpush1.msra.mxu0 0.0
    %1795 = vmatprep.subr.mxu0 0.0
    %1796 = vmatpush1.msra.mxu0 0.0
    %1797 = vmatprep.subr.mxu0 0.0
    %1798 = vmatpush1.msra.mxu0 0.0
    %1799 = vmatprep.subr.mxu0 0.0
    %1800 = vmatpush1.msra.mxu0 0.0
    %1801 = vmatprep.subr.mxu0 0.0
    %1802 = vmatpush1.msra.mxu0 0.0
    %1803 = vmatprep.subr.mxu0 0.0
    %1804 = vmatpush1.msra.mxu0 0.0
    %1805 = vmatprep.subr.mxu0 0.0
    %1806 = vmatpush1.msra.mxu0 0.0
    %1807 = vmatprep.subr.mxu0 0.0
    %1808 = vmatpush1.msra.mxu0 %v1776
    %1809 = vmatprep.subr.mxu0 0.0
    %1810 = vmatpush1.msra.mxu0 %v1775
    %1811 = vmatprep.subr.mxu0 0.0
    %1812 = vmatpush1.msra.mxu0 %v1774
    %1813 = vmatprep.subr.mxu0 0.0
    %1814 = vmatpush1.msra.mxu0 %v1773
    %1815 = vmatprep.subr.mxu0 0.0
    %1816 = vmatpush2.msra.mxu0 0.0
    %1817 = vmatprep.subr.mxu0 0.0
    %1818 = vmatpush2.msra.mxu0 0.0
    %1819 = vmatprep.subr.mxu0 0.0
    %1820 = vmatpush2.msra.mxu0 0.0
    %1821 = vmatprep.subr.mxu0 0.0
    %1822 = vmatpush2.msra.mxu0 0.0
    %1823 = vmatprep.subr.mxu0 0.0
    %1824 = vmatpush2.msra.mxu0 0.0
    %1825 = vmatprep.subr.mxu0 0.0
    %1826 = vmatpush2.msra.mxu0 0.0
    %1827 = vmatprep.subr.mxu0 0.0
    %1828 = vmatpush2.msra.mxu0 0.0
    %1829 = vmatprep.subr.mxu0 0.0
    %1830 = vmatpush2.msra.mxu0 0.0
    %1831 = vmatprep.subr.mxu0 0.0
    %1832 = vmatpush2.msra.mxu0 0.0
    %1833 = vmatprep.subr.mxu0 0.0
    %1834 = vmatpush2.msra.mxu0 0.0
    %1835 = vmatprep.subr.mxu0 0.0
    %1836 = vmatpush2.msra.mxu0 0.0
    %1837 = vmatprep.subr.mxu0 0.0
    %1838 = vmatpush2.msra.mxu0 0.0
    %1839 = vmatprep.subr.mxu0 0.0
    %1840 = vmatpush2.msra.mxu0 0.0
    %1841 = vmatprep.subr.mxu0 0.0
    %1842 = vmatpush2.msra.mxu0 0.0
    %1843 = vmatprep.subr.mxu0 0.0
    %1844 = vmatpush2.msra.mxu0 0.0
    %1845 = vmatprep.subr.mxu0 0.0
    %1846 = vmatpush2.msra.mxu0 0.0
    %1847 = vmatprep.mubr.f32.mxu0 0.0
    %1848 = vmatmul.mubr.f32.gmra.mxu0 %v1778
    %v1849 = vpop.f32.mrf.mxu0
    %v1850 = vadd.f32 0.0, %v1849
    %v1851 = vpop.f32.mrf.mxu0
    %1852 = vmatprep.mubr.f32.mxu0 0.0
    %1853 = vmatmul.mubr.f32.gmra.mxu0 %v1781
    %v1854 = vpop.f32.mrf.mxu0
    %v1855 = vadd.f32 0.0, %v1854
    %v1856 = vpop.f32.mrf.mxu0
    %1857 = vdwg.mxu0
    %1858 = vmatprep.subr.mxu0 0.0
    %1859 = vmatpush1.msra.mxu0 0.0
    %1860 = vmatprep.subr.mxu0 0.0
    %1861 = vmatpush1.msra.mxu0 0.0
    %1862 = vmatprep.subr.mxu0 0.0
    %1863 = vmatpush1.msra.mxu0 0.0
    %1864 = vmatprep.subr.mxu0 0.0
    %1865 = vmatpush1.msra.mxu0 0.0
    %1866 = vmatprep.subr.mxu0 0.0
    %1867 = vmatpush1.msra.mxu0 0.0
    %1868 = vmatprep.subr.mxu0 0.0
    %1869 = vmatpush1.msra.mxu0 0.0
    %1870 = vmatprep.subr.mxu0 0.0
    %1871 = vmatpush1.msra.mxu0 0.0
    %1872 = vmatprep.subr.mxu0 0.0
    %1873 = vmatpush1.msra.mxu0 0.0
    %1874 = vmatprep.subr.mxu0 0.0
    %1875 = vmatpush1.msra.mxu0 0.0
    %1876 = vmatprep.subr.mxu0 0.0
    %1877 = vmatpush1.msra.mxu0 0.0
    %1878 = vmatprep.subr.mxu0 0.0
    %1879 = vmatpush1.msra.mxu0 0.0
    %1880 = vmatprep.subr.mxu0 0.0
    %1881 = vmatpush1.msra.mxu0 0.0
    %1882 = vmatprep.subr.mxu0 0.0
    %1883 = vmatpush1.msra.mxu0 %v1772
    %1884 = vmatprep.subr.mxu0 0.0
    %1885 = vmatpush1.msra.mxu0 %v1771
    %1886 = vmatprep.subr.mxu0 0.0
    %1887 = vmatpush1.msra.mxu0 %v1770
    %1888 = vmatprep.subr.mxu0 0.0
    %1889 = vmatpush1.msra.mxu0 %v1769
    %1890 = vmatprep.subr.mxu0 0.0
    %1891 = vmatpush2.msra.mxu0 0.0
    %1892 = vmatprep.subr.mxu0 0.0
    %1893 = vmatpush2.msra.mxu0 0.0
    %1894 = vmatprep.subr.mxu0 0.0
    %1895 = vmatpush2.msra.mxu0 0.0
    %1896 = vmatprep.subr.mxu0 0.0
    %1897 = vmatpush2.msra.mxu0 0.0
    %1898 = vmatprep.subr.mxu0 0.0
    %1899 = vmatpush2.msra.mxu0 0.0
    %1900 = vmatprep.subr.mxu0 0.0
    %1901 = vmatpush2.msra.mxu0 0.0
    %1902 = vmatprep.subr.mxu0 0.0
    %1903 = vmatpush2.msra.mxu0 0.0
    %1904 = vmatprep.subr.mxu0 0.0
    %1905 = vmatpush2.msra.mxu0 0.0
    %1906 = vmatprep.subr.mxu0 0.0
    %1907 = vmatpush2.msra.mxu0 0.0
    %1908 = vmatprep.subr.mxu0 0.0
    %1909 = vmatpush2.msra.mxu0 0.0
    %1910 = vmatprep.subr.mxu0 0.0
    %1911 = vmatpush2.msra.mxu0 0.0
    %1912 = vmatprep.subr.mxu0 0.0
    %1913 = vmatpush2.msra.mxu0 0.0
    %1914 = vmatprep.subr.mxu0 0.0
    %1915 = vmatpush2.msra.mxu0 0.0
    %1916 = vmatprep.subr.mxu0 0.0
    %1917 = vmatpush2.msra.mxu0 0.0
    %1918 = vmatprep.subr.mxu0 0.0
    %1919 = vmatpush2.msra.mxu0 0.0
    %1920 = vmatprep.subr.mxu0 0.0
    %1921 = vmatpush2.msra.mxu0 0.0
    %1922 = vmatprep.mubr.f32.mxu0 0.0
    %1923 = vmatmul.mubr.f32.gmra.mxu0 %v202
    %v1924 = vpop.f32.mrf.mxu0
    %v1925 = vadd.f32 %v1850, %v1924
    %v1926 = vpop.f32.mrf.mxu0
    %1927 = vmatprep.mubr.f32.mxu0 0.0
    %1928 = vmatmul.mubr.f32.gmra.mxu0 %v205
    %v1929 = vpop.f32.mrf.mxu0
    %v1930 = vadd.f32 %v1855, %v1929
    %v1931 = vpop.f32.mrf.mxu0
    %1932 = vdwg.mxu0
    %v1933 = vld [vmem:[%s6] sm:$0x1]
    %v1935 = vlaneseq
    %v1936 = vshrl.u32 %v1935, 7
    %v1937 = vsub.s32 0, %v1936
    %v1938 = vrot.slane %v1933, %v1937
    %v1940 = vadd.f32 %v1925, %v1938
    %v1941 = vadd.f32 %v1930, %v1938
    %v1942 = vld [vmem:[#allocation11] sm:$0xff]
    %v1943 = vld [vmem:[#allocation11 + $0x8] sm:$0xff]
    %v1944 = vld [vmem:[#allocation11 + $0x10] sm:$0xff]
    %v1945 = vld [vmem:[#allocation11 + $0x18] sm:$0xff]
    %v1946 = vld [vmem:[%s9] sm:$0x1]
    %v1948 = vlaneseq
    %v1949 = vshrl.u32 %v1948, 7
    %v1950 = vsub.s32 0, %v1949
    %v1951 = vrot.slane %v1946, %v1950
    %v1954 = vsel %vm200, %v1940, 0
    %v1957 = vsel %vm200, %v1941, 0
    %1959 = vmatprep.subr.mxu0 0.0
    %1960 = vmatpush1.msra.mxu0 0.0
    %1961 = vmatprep.subr.mxu0 0.0
    %1962 = vmatpush1.msra.mxu0 0.0
    %1963 = vmatprep.subr.mxu0 0.0
    %1964 = vmatpush1.msra.mxu0 0.0
    %1965 = vmatprep.subr.mxu0 0.0
    %1966 = vmatpush1.msra.mxu0 0.0
    %1967 = vmatprep.subr.mxu0 0.0
    %1968 = vmatpush1.msra.mxu0 0.0
    %1969 = vmatprep.subr.mxu0 0.0
    %1970 = vmatpush1.msra.mxu0 0.0
    %1971 = vmatprep.subr.mxu0 0.0
    %1972 = vmatpush1.msra.mxu0 0.0
    %1973 = vmatprep.subr.mxu0 0.0
    %1974 = vmatpush1.msra.mxu0 0.0
    %1975 = vmatprep.subr.mxu0 0.0
    %1976 = vmatpush1.msra.mxu0 0.0
    %1977 = vmatprep.subr.mxu0 0.0
    %1978 = vmatpush1.msra.mxu0 0.0
    %1979 = vmatprep.subr.mxu0 0.0
    %1980 = vmatpush1.msra.mxu0 0.0
    %1981 = vmatprep.subr.mxu0 0.0
    %1982 = vmatpush1.msra.mxu0 0.0
    %1983 = vmatprep.subr.mxu0 0.0
    %1984 = vmatpush1.msra.mxu0 %v1945
    %1985 = vmatprep.subr.mxu0 0.0
    %1986 = vmatpush1.msra.mxu0 %v1944
    %1987 = vmatprep.subr.mxu0 0.0
    %1988 = vmatpush1.msra.mxu0 %v1943
    %1989 = vmatprep.subr.mxu0 0.0
    %1990 = vmatpush1.msra.mxu0 %v1942
    %1991 = vmatprep.subr.mxu0 0.0
    %1992 = vmatpush2.msra.mxu0 0.0
    %1993 = vmatprep.subr.mxu0 0.0
    %1994 = vmatpush2.msra.mxu0 0.0
    %1995 = vmatprep.subr.mxu0 0.0
    %1996 = vmatpush2.msra.mxu0 0.0
    %1997 = vmatprep.subr.mxu0 0.0
    %1998 = vmatpush2.msra.mxu0 0.0
    %1999 = vmatprep.subr.mxu0 0.0
    %2000 = vmatpush2.msra.mxu0 0.0
    %2001 = vmatprep.subr.mxu0 0.0
    %2002 = vmatpush2.msra.mxu0 0.0
    %2003 = vmatprep.subr.mxu0 0.0
    %2004 = vmatpush2.msra.mxu0 0.0
    %2005 = vmatprep.subr.mxu0 0.0
    %2006 = vmatpush2.msra.mxu0 0.0
    %2007 = vmatprep.subr.mxu0 0.0
    %2008 = vmatpush2.msra.mxu0 0.0
    %2009 = vmatprep.subr.mxu0 0.0
    %2010 = vmatpush2.msra.mxu0 0.0
    %2011 = vmatprep.subr.mxu0 0.0
    %2012 = vmatpush2.msra.mxu0 0.0
    %2013 = vmatprep.subr.mxu0 0.0
    %2014 = vmatpush2.msra.mxu0 0.0
    %2015 = vmatprep.subr.mxu0 0.0
    %2016 = vmatpush2.msra.mxu0 0.0
    %2017 = vmatprep.subr.mxu0 0.0
    %2018 = vmatpush2.msra.mxu0 0.0
    %2019 = vmatprep.subr.mxu0 0.0
    %2020 = vmatpush2.msra.mxu0 0.0
    %2021 = vmatprep.subr.mxu0 0.0
    %2022 = vmatpush2.msra.mxu0 0.0
    %2023 = vmatprep.mubr.f32.mxu0 0.0
    %2024 = vmatmul.mubr.f32.gmra.mxu0 %v1954
    %v2025 = vpop.f32.mrf.mxu0
    %v2026 = vadd.f32 %v1951, %v2025
    %v2027 = vpop.f32.mrf.mxu0
    %2028 = vmatprep.mubr.f32.mxu0 0.0
    %2029 = vmatmul.mubr.f32.gmra.mxu0 %v1957
    %v2030 = vpop.f32.mrf.mxu0
    %v2031 = vadd.f32 %v1951, %v2030
    %v2032 = vpop.f32.mrf.mxu0
    %2033 = vdwg.mxu0
    %s2034 = scalar_lea.vmem [#allocation11], 32
    %v2035 = vld [vmem:[%s2034] sm:$0xff]
    %v2036 = vld [vmem:[%s2034 + $0x8] sm:$0xff]
    %v2037 = vld [vmem:[%s2034 + $0x10] sm:$0xff]
    %v2038 = vld [vmem:[%s2034 + $0x18] sm:$0xff]
    %s2039 = scalar_lea.vmem %s9, 1
    %v2040 = vld [vmem:[%s2039] sm:$0x1]
    %v2042 = vlaneseq
    %v2043 = vshrl.u32 %v2042, 7
    %v2044 = vsub.s32 0, %v2043
    %v2045 = vrot.slane %v2040, %v2044
    %2047 = vmatprep.subr.mxu0 0.0
    %2048 = vmatpush1.msra.mxu0 0.0
    %2049 = vmatprep.subr.mxu0 0.0
    %2050 = vmatpush1.msra.mxu0 0.0
    %2051 = vmatprep.subr.mxu0 0.0
    %2052 = vmatpush1.msra.mxu0 0.0
    %2053 = vmatprep.subr.mxu0 0.0
    %2054 = vmatpush1.msra.mxu0 0.0
    %2055 = vmatprep.subr.mxu0 0.0
    %2056 = vmatpush1.msra.mxu0 0.0
    %2057 = vmatprep.subr.mxu0 0.0
    %2058 = vmatpush1.msra.mxu0 0.0
    %2059 = vmatprep.subr.mxu0 0.0
    %2060 = vmatpush1.msra.mxu0 0.0
    %2061 = vmatprep.subr.mxu0 0.0
    %2062 = vmatpush1.msra.mxu0 0.0
    %2063 = vmatprep.subr.mxu0 0.0
    %2064 = vmatpush1.msra.mxu0 0.0
    %2065 = vmatprep.subr.mxu0 0.0
    %2066 = vmatpush1.msra.mxu0 0.0
    %2067 = vmatprep.subr.mxu0 0.0
    %2068 = vmatpush1.msra.mxu0 0.0
    %2069 = vmatprep.subr.mxu0 0.0
    %2070 = vmatpush1.msra.mxu0 0.0
    %2071 = vmatprep.subr.mxu0 0.0
    %2072 = vmatpush1.msra.mxu0 %v2038
    %2073 = vmatprep.subr.mxu0 0.0
    %2074 = vmatpush1.msra.mxu0 %v2037
    %2075 = vmatprep.subr.mxu0 0.0
    %2076 = vmatpush1.msra.mxu0 %v2036
    %2077 = vmatprep.subr.mxu0 0.0
    %2078 = vmatpush1.msra.mxu0 %v2035
    %2079 = vmatprep.subr.mxu0 0.0
    %2080 = vmatpush2.msra.mxu0 0.0
    %2081 = vmatprep.subr.mxu0 0.0
    %2082 = vmatpush2.msra.mxu0 0.0
    %2083 = vmatprep.subr.mxu0 0.0
    %2084 = vmatpush2.msra.mxu0 0.0
    %2085 = vmatprep.subr.mxu0 0.0
    %2086 = vmatpush2.msra.mxu0 0.0
    %2087 = vmatprep.subr.mxu0 0.0
    %2088 = vmatpush2.msra.mxu0 0.0
    %2089 = vmatprep.subr.mxu0 0.0
    %2090 = vmatpush2.msra.mxu0 0.0
    %2091 = vmatprep.subr.mxu0 0.0
    %2092 = vmatpush2.msra.mxu0 0.0
    %2093 = vmatprep.subr.mxu0 0.0
    %2094 = vmatpush2.msra.mxu0 0.0
    %2095 = vmatprep.subr.mxu0 0.0
    %2096 = vmatpush2.msra.mxu0 0.0
    %2097 = vmatprep.subr.mxu0 0.0
    %2098 = vmatpush2.msra.mxu0 0.0
    %2099 = vmatprep.subr.mxu0 0.0
    %2100 = vmatpush2.msra.mxu0 0.0
    %2101 = vmatprep.subr.mxu0 0.0
    %2102 = vmatpush2.msra.mxu0 0.0
    %2103 = vmatprep.subr.mxu0 0.0
    %2104 = vmatpush2.msra.mxu0 0.0
    %2105 = vmatprep.subr.mxu0 0.0
    %2106 = vmatpush2.msra.mxu0 0.0
    %2107 = vmatprep.subr.mxu0 0.0
    %2108 = vmatpush2.msra.mxu0 0.0
    %2109 = vmatprep.subr.mxu0 0.0
    %2110 = vmatpush2.msra.mxu0 0.0
    %2111 = vmatprep.mubr.f32.mxu0 0.0
    %2112 = vmatmul.mubr.f32.gmra.mxu0 %v1954
    %v2113 = vpop.f32.mrf.mxu0
    %v2114 = vadd.f32 %v2045, %v2113
    %v2115 = vpop.f32.mrf.mxu0
    %2116 = vmatprep.mubr.f32.mxu0 0.0
    %2117 = vmatmul.mubr.f32.gmra.mxu0 %v1957
    %v2118 = vpop.f32.mrf.mxu0
    %v2119 = vadd.f32 %v2045, %v2118
    %v2120 = vpop.f32.mrf.mxu0
    %2121 = vdwg.mxu0
    %s2122 = scalar_lea.vmem [#allocation11], 64
    %v2123 = vld [vmem:[%s2122] sm:$0xff]
    %v2124 = vld [vmem:[%s2122 + $0x8] sm:$0xff]
    %v2125 = vld [vmem:[%s2122 + $0x10] sm:$0xff]
    %v2126 = vld [vmem:[%s2122 + $0x18] sm:$0xff]
    %s2127 = scalar_lea.vmem %s9, 2
    %v2128 = vld [vmem:[%s2127] sm:$0x1]
    %v2130 = vlaneseq
    %v2131 = vshrl.u32 %v2130, 7
    %v2132 = vsub.s32 0, %v2131
    %v2133 = vrot.slane %v2128, %v2132
    %2135 = vmatprep.subr.mxu0 0.0
    %2136 = vmatpush1.msra.mxu0 0.0
    %2137 = vmatprep.subr.mxu0 0.0
    %2138 = vmatpush1.msra.mxu0 0.0
    %2139 = vmatprep.subr.mxu0 0.0
    %2140 = vmatpush1.msra.mxu0 0.0
    %2141 = vmatprep.subr.mxu0 0.0
    %2142 = vmatpush1.msra.mxu0 0.0
    %2143 = vmatprep.subr.mxu0 0.0
    %2144 = vmatpush1.msra.mxu0 0.0
    %2145 = vmatprep.subr.mxu0 0.0
    %2146 = vmatpush1.msra.mxu0 0.0
    %2147 = vmatprep.subr.mxu0 0.0
    %2148 = vmatpush1.msra.mxu0 0.0
    %2149 = vmatprep.subr.mxu0 0.0
    %2150 = vmatpush1.msra.mxu0 0.0
    %2151 = vmatprep.subr.mxu0 0.0
    %2152 = vmatpush1.msra.mxu0 0.0
    %2153 = vmatprep.subr.mxu0 0.0
    %2154 = vmatpush1.msra.mxu0 0.0
    %2155 = vmatprep.subr.mxu0 0.0
    %2156 = vmatpush1.msra.mxu0 0.0
    %2157 = vmatprep.subr.mxu0 0.0
    %2158 = vmatpush1.msra.mxu0 0.0
    %2159 = vmatprep.subr.mxu0 0.0
    %2160 = vmatpush1.msra.mxu0 %v2126
    %2161 = vmatprep.subr.mxu0 0.0
    %2162 = vmatpush1.msra.mxu0 %v2125
    %2163 = vmatprep.subr.mxu0 0.0
    %2164 = vmatpush1.msra.mxu0 %v2124
    %2165 = vmatprep.subr.mxu0 0.0
    %2166 = vmatpush1.msra.mxu0 %v2123
    %2167 = vmatprep.subr.mxu0 0.0
    %2168 = vmatpush2.msra.mxu0 0.0
    %2169 = vmatprep.subr.mxu0 0.0
    %2170 = vmatpush2.msra.mxu0 0.0
    %2171 = vmatprep.subr.mxu0 0.0
    %2172 = vmatpush2.msra.mxu0 0.0
    %2173 = vmatprep.subr.mxu0 0.0
    %2174 = vmatpush2.msra.mxu0 0.0
    %2175 = vmatprep.subr.mxu0 0.0
    %2176 = vmatpush2.msra.mxu0 0.0
    %2177 = vmatprep.subr.mxu0 0.0
    %2178 = vmatpush2.msra.mxu0 0.0
    %2179 = vmatprep.subr.mxu0 0.0
    %2180 = vmatpush2.msra.mxu0 0.0
    %2181 = vmatprep.subr.mxu0 0.0
    %2182 = vmatpush2.msra.mxu0 0.0
    %2183 = vmatprep.subr.mxu0 0.0
    %2184 = vmatpush2.msra.mxu0 0.0
    %2185 = vmatprep.subr.mxu0 0.0
    %2186 = vmatpush2.msra.mxu0 0.0
    %2187 = vmatprep.subr.mxu0 0.0
    %2188 = vmatpush2.msra.mxu0 0.0
    %2189 = vmatprep.subr.mxu0 0.0
    %2190 = vmatpush2.msra.mxu0 0.0
    %2191 = vmatprep.subr.mxu0 0.0
    %2192 = vmatpush2.msra.mxu0 0.0
    %2193 = vmatprep.subr.mxu0 0.0
    %2194 = vmatpush2.msra.mxu0 0.0
    %2195 = vmatprep.subr.mxu0 0.0
    %2196 = vmatpush2.msra.mxu0 0.0
    %2197 = vmatprep.subr.mxu0 0.0
    %2198 = vmatpush2.msra.mxu0 0.0
    %2199 = vmatprep.mubr.f32.mxu0 0.0
    %2200 = vmatmul.mubr.f32.gmra.mxu0 %v1954
    %v2201 = vpop.f32.mrf.mxu0
    %v2202 = vadd.f32 %v2133, %v2201
    %v2203 = vpop.f32.mrf.mxu0
    %2204 = vmatprep.mubr.f32.mxu0 0.0
    %2205 = vmatmul.mubr.f32.gmra.mxu0 %v1957
    %v2206 = vpop.f32.mrf.mxu0
    %v2207 = vadd.f32 %v2133, %v2206
    %v2208 = vpop.f32.mrf.mxu0
    %2209 = vdwg.mxu0
    %s2210 = scalar_lea.vmem [#allocation11], 96
    %v2211 = vld [vmem:[%s2210] sm:$0xff]
    %v2212 = vld [vmem:[%s2210 + $0x8] sm:$0xff]
    %v2213 = vld [vmem:[%s2210 + $0x10] sm:$0xff]
    %v2214 = vld [vmem:[%s2210 + $0x18] sm:$0xff]
    %s2215 = scalar_lea.vmem %s9, 3
    %v2216 = vld [vmem:[%s2215] sm:$0x1]
    %v2218 = vlaneseq
    %v2219 = vshrl.u32 %v2218, 7
    %v2220 = vsub.s32 0, %v2219
    %v2221 = vrot.slane %v2216, %v2220
    %2223 = vmatprep.subr.mxu0 0.0
    %2224 = vmatpush1.msra.mxu0 0.0
    %2225 = vmatprep.subr.mxu0 0.0
    %2226 = vmatpush1.msra.mxu0 0.0
    %2227 = vmatprep.subr.mxu0 0.0
    %2228 = vmatpush1.msra.mxu0 0.0
    %2229 = vmatprep.subr.mxu0 0.0
    %2230 = vmatpush1.msra.mxu0 0.0
    %2231 = vmatprep.subr.mxu0 0.0
    %2232 = vmatpush1.msra.mxu0 0.0
    %2233 = vmatprep.subr.mxu0 0.0
    %2234 = vmatpush1.msra.mxu0 0.0
    %2235 = vmatprep.subr.mxu0 0.0
    %2236 = vmatpush1.msra.mxu0 0.0
    %2237 = vmatprep.subr.mxu0 0.0
    %2238 = vmatpush1.msra.mxu0 0.0
    %2239 = vmatprep.subr.mxu0 0.0
    %2240 = vmatpush1.msra.mxu0 0.0
    %2241 = vmatprep.subr.mxu0 0.0
    %2242 = vmatpush1.msra.mxu0 0.0
    %2243 = vmatprep.subr.mxu0 0.0
    %2244 = vmatpush1.msra.mxu0 0.0
    %2245 = vmatprep.subr.mxu0 0.0
    %2246 = vmatpush1.msra.mxu0 0.0
    %2247 = vmatprep.subr.mxu0 0.0
    %2248 = vmatpush1.msra.mxu0 %v2214
    %2249 = vmatprep.subr.mxu0 0.0
    %2250 = vmatpush1.msra.mxu0 %v2213
    %2251 = vmatprep.subr.mxu0 0.0
    %2252 = vmatpush1.msra.mxu0 %v2212
    %2253 = vmatprep.subr.mxu0 0.0
    %2254 = vmatpush1.msra.mxu0 %v2211
    %2255 = vmatprep.subr.mxu0 0.0
    %2256 = vmatpush2.msra.mxu0 0.0
    %2257 = vmatprep.subr.mxu0 0.0
    %2258 = vmatpush2.msra.mxu0 0.0
    %2259 = vmatprep.subr.mxu0 0.0
    %2260 = vmatpush2.msra.mxu0 0.0
    %2261 = vmatprep.subr.mxu0 0.0
    %2262 = vmatpush2.msra.mxu0 0.0
    %2263 = vmatprep.subr.mxu0 0.0
    %2264 = vmatpush2.msra.mxu0 0.0
    %2265 = vmatprep.subr.mxu0 0.0
    %2266 = vmatpush2.msra.mxu0 0.0
    %2267 = vmatprep.subr.mxu0 0.0
    %2268 = vmatpush2.msra.mxu0 0.0
    %2269 = vmatprep.subr.mxu0 0.0
    %2270 = vmatpush2.msra.mxu0 0.0
    %2271 = vmatprep.subr.mxu0 0.0
    %2272 = vmatpush2.msra.mxu0 0.0
    %2273 = vmatprep.subr.mxu0 0.0
    %2274 = vmatpush2.msra.mxu0 0.0
    %2275 = vmatprep.subr.mxu0 0.0
    %2276 = vmatpush2.msra.mxu0 0.0
    %2277 = vmatprep.subr.mxu0 0.0
    %2278 = vmatpush2.msra.mxu0 0.0
    %2279 = vmatprep.subr.mxu0 0.0
    %2280 = vmatpush2.msra.mxu0 0.0
    %2281 = vmatprep.subr.mxu0 0.0
    %2282 = vmatpush2.msra.mxu0 0.0
    %2283 = vmatprep.subr.mxu0 0.0
    %2284 = vmatpush2.msra.mxu0 0.0
    %2285 = vmatprep.subr.mxu0 0.0
    %2286 = vmatpush2.msra.mxu0 0.0
    %2287 = vmatprep.mubr.f32.mxu0 0.0
    %2288 = vmatmul.mubr.f32.gmra.mxu0 %v1954
    %v2289 = vpop.f32.mrf.mxu0
    %v2290 = vadd.f32 %v2221, %v2289
    %v2291 = vpop.f32.mrf.mxu0
    %2292 = vmatprep.mubr.f32.mxu0 0.0
    %2293 = vmatmul.mubr.f32.gmra.mxu0 %v1957
    %v2294 = vpop.f32.mrf.mxu0
    %v2295 = vadd.f32 %v2221, %v2294
    %v2296 = vpop.f32.mrf.mxu0
    %2297 = vdwg.mxu0
    %v2298 = vrot.slane %v2026, 1
    %v2299 = vrot.slane %v2031, 1
    %v2300 = vsel %vm550, %v2298, %v2299
    %v2301 = vsel %vm550, %v2299, %v2298
    %v2302 = vrot.slane %v2114, 1
    %v2303 = vrot.slane %v2119, 1
    %v2304 = vsel %vm550, %v2302, %v2303
    %v2305 = vsel %vm550, %v2303, %v2302
    %v2306 = vrot.slane %v2202, 1
    %v2307 = vrot.slane %v2207, 1
    %v2308 = vsel %vm550, %v2306, %v2307
    %v2309 = vsel %vm550, %v2307, %v2306
    %v2310 = vrot.slane %v2290, 1
    %v2311 = vrot.slane %v2295, 1
    %v2312 = vsel %vm550, %v2310, %v2311
    %v2313 = vsel %vm550, %v2311, %v2310
    %v2314 = vxor.u32 %v2300, 2147483648
    %v2315 = vxor.u32 %v2301, 2147483648
    %v2316 = vmul.f32 %v2314, 1.442695
    %v2317 = vpow.pop %v2316
    %v2318 = vmul.f32 %v2315, 1.442695
    %v2319 = vpow.pop %v2318
    %v2320 = vadd.f32 %v2317, 1.0
    %v2321 = vadd.f32 %v2319, 1.0
    %v2322 = vrcp.pop %v2320
    %v2323 = vmul.f32 1.0, %v2322
    %v2324 = vrcp.pop %v2321
    %v2325 = vmul.f32 1.0, %v2324
    %v2326 = vxor.u32 %v2304, 2147483648
    %v2327 = vxor.u32 %v2305, 2147483648
    %v2328 = vmul.f32 %v2326, 1.442695
    %v2329 = vpow.pop %v2328
    %v2330 = vmul.f32 %v2327, 1.442695
    %v2331 = vpow.pop %v2330
    %v2332 = vadd.f32 %v2329, 1.0
    %v2333 = vadd.f32 %v2331, 1.0
    %v2334 = vrcp.pop %v2332
    %v2335 = vmul.f32 1.0, %v2334
    %v2336 = vrcp.pop %v2333
    %v2337 = vmul.f32 1.0, %v2336
    %v2338 = vtanh.pop %v2308
    %v2339 = vtanh.pop %v2309
    %v2340 = vxor.u32 %v2312, 2147483648
    %v2341 = vxor.u32 %v2313, 2147483648
    %v2342 = vmul.f32 %v2340, 1.442695
    %v2343 = vpow.pop %v2342
    %v2344 = vmul.f32 %v2341, 1.442695
    %v2345 = vpow.pop %v2344
    %v2346 = vadd.f32 %v2343, 1.0
    %v2347 = vadd.f32 %v2345, 1.0
    %v2348 = vrcp.pop %v2346
    %v2349 = vmul.f32 1.0, %v2348
    %v2350 = vrcp.pop %v2347
    %v2351 = vmul.f32 1.0, %v2350
    %v2352 = vmul.f32 %v2335, 0.0
    %v2353 = vmul.f32 %v2337, 0.0
    %v2354 = vmul.f32 %v2323, %v2338
    %v2355 = vmul.f32 %v2325, %v2339
    %v2356 = vadd.f32 %v2352, %v2354
    %v2357 = vadd.f32 %v2353, %v2355
    %v2358 = vtanh.pop %v2356
    %v2359 = vtanh.pop %v2357
    %v2360 = vmul.f32 %v2349, %v2358
    %v2361 = vmul.f32 %v2351, %v2359
    %v2362 = vrot.slane %v2026, 2
    %v2363 = vrot.slane %v2031, 2
    %v2364 = vsel %vm615, %v2362, %v2363
    %v2365 = vsel %vm615, %v2363, %v2362
    %v2366 = vrot.slane %v2114, 2
    %v2367 = vrot.slane %v2119, 2
    %v2368 = vsel %vm615, %v2366, %v2367
    %v2369 = vsel %vm615, %v2367, %v2366
    %v2370 = vrot.slane %v2202, 2
    %v2371 = vrot.slane %v2207, 2
    %v2372 = vsel %vm615, %v2370, %v2371
    %v2373 = vsel %vm615, %v2371, %v2370
    %v2374 = vrot.slane %v2290, 2
    %v2375 = vrot.slane %v2295, 2
    %v2376 = vsel %vm615, %v2374, %v2375
    %v2377 = vsel %vm615, %v2375, %v2374
    %v2378 = vld [vmem:[#allocation13] sm:$0xff]
    %v2379 = vld [vmem:[#allocation13 + $0x8] sm:$0xff]
    %v2380 = vld [vmem:[#allocation13 + $0x10] sm:$0xff]
    %v2381 = vld [vmem:[#allocation13 + $0x18] sm:$0xff]
    %v2383 = vsel %vm200, %v2360, 0
    %v2386 = vsel %vm200, %v2361, 0
    %2388 = vmatprep.subr.mxu0 0.0
    %2389 = vmatpush1.msra.mxu0 0.0
    %2390 = vmatprep.subr.mxu0 0.0
    %2391 = vmatpush1.msra.mxu0 0.0
    %2392 = vmatprep.subr.mxu0 0.0
    %2393 = vmatpush1.msra.mxu0 0.0
    %2394 = vmatprep.subr.mxu0 0.0
    %2395 = vmatpush1.msra.mxu0 0.0
    %2396 = vmatprep.subr.mxu0 0.0
    %2397 = vmatpush1.msra.mxu0 0.0
    %2398 = vmatprep.subr.mxu0 0.0
    %2399 = vmatpush1.msra.mxu0 0.0
    %2400 = vmatprep.subr.mxu0 0.0
    %2401 = vmatpush1.msra.mxu0 0.0
    %2402 = vmatprep.subr.mxu0 0.0
    %2403 = vmatpush1.msra.mxu0 0.0
    %2404 = vmatprep.subr.mxu0 0.0
    %2405 = vmatpush1.msra.mxu0 0.0
    %2406 = vmatprep.subr.mxu0 0.0
    %2407 = vmatpush1.msra.mxu0 0.0
    %2408 = vmatprep.subr.mxu0 0.0
    %2409 = vmatpush1.msra.mxu0 0.0
    %2410 = vmatprep.subr.mxu0 0.0
    %2411 = vmatpush1.msra.mxu0 0.0
    %2412 = vmatprep.subr.mxu0 0.0
    %2413 = vmatpush1.msra.mxu0 %v2381
    %2414 = vmatprep.subr.mxu0 0.0
    %2415 = vmatpush1.msra.mxu0 %v2380
    %2416 = vmatprep.subr.mxu0 0.0
    %2417 = vmatpush1.msra.mxu0 %v2379
    %2418 = vmatprep.subr.mxu0 0.0
    %2419 = vmatpush1.msra.mxu0 %v2378
    %2420 = vmatprep.subr.mxu0 0.0
    %2421 = vmatpush2.msra.mxu0 0.0
    %2422 = vmatprep.subr.mxu0 0.0
    %2423 = vmatpush2.msra.mxu0 0.0
    %2424 = vmatprep.subr.mxu0 0.0
    %2425 = vmatpush2.msra.mxu0 0.0
    %2426 = vmatprep.subr.mxu0 0.0
    %2427 = vmatpush2.msra.mxu0 0.0
    %2428 = vmatprep.subr.mxu0 0.0
    %2429 = vmatpush2.msra.mxu0 0.0
    %2430 = vmatprep.subr.mxu0 0.0
    %2431 = vmatpush2.msra.mxu0 0.0
    %2432 = vmatprep.subr.mxu0 0.0
    %2433 = vmatpush2.msra.mxu0 0.0
    %2434 = vmatprep.subr.mxu0 0.0
    %2435 = vmatpush2.msra.mxu0 0.0
    %2436 = vmatprep.subr.mxu0 0.0
    %2437 = vmatpush2.msra.mxu0 0.0
    %2438 = vmatprep.subr.mxu0 0.0
    %2439 = vmatpush2.msra.mxu0 0.0
    %2440 = vmatprep.subr.mxu0 0.0
    %2441 = vmatpush2.msra.mxu0 0.0
    %2442 = vmatprep.subr.mxu0 0.0
    %2443 = vmatpush2.msra.mxu0 0.0
    %2444 = vmatprep.subr.mxu0 0.0
    %2445 = vmatpush2.msra.mxu0 0.0
    %2446 = vmatprep.subr.mxu0 0.0
    %2447 = vmatpush2.msra.mxu0 0.0
    %2448 = vmatprep.subr.mxu0 0.0
    %2449 = vmatpush2.msra.mxu0 0.0
    %2450 = vmatprep.subr.mxu0 0.0
    %2451 = vmatpush2.msra.mxu0 0.0
    %2452 = vmatprep.mubr.f32.mxu0 0.0
    %2453 = vmatmul.mubr.f32.gmra.mxu0 %v2383
    %v2454 = vpop.f32.mrf.mxu0
    %v2455 = vadd.f32 0.0, %v2454
    %v2456 = vpop.f32.mrf.mxu0
    %2457 = vmatprep.mubr.f32.mxu0 0.0
    %2458 = vmatmul.mubr.f32.gmra.mxu0 %v2386
    %v2459 = vpop.f32.mrf.mxu0
    %v2460 = vadd.f32 0.0, %v2459
    %v2461 = vpop.f32.mrf.mxu0
    %2462 = vdwg.mxu0
    %v2463 = vadd.f32 %v2364, %v2455
    %v2464 = vadd.f32 %v2365, %v2460
    %s2465 = scalar_lea.vmem [#allocation13], 32
    %v2466 = vld [vmem:[%s2465] sm:$0xff]
    %v2467 = vld [vmem:[%s2465 + $0x8] sm:$0xff]
    %v2468 = vld [vmem:[%s2465 + $0x10] sm:$0xff]
    %v2469 = vld [vmem:[%s2465 + $0x18] sm:$0xff]
    %2470 = vmatprep.subr.mxu0 0.0
    %2471 = vmatpush1.msra.mxu0 0.0
    %2472 = vmatprep.subr.mxu0 0.0
    %2473 = vmatpush1.msra.mxu0 0.0
    %2474 = vmatprep.subr.mxu0 0.0
    %2475 = vmatpush1.msra.mxu0 0.0
    %2476 = vmatprep.subr.mxu0 0.0
    %2477 = vmatpush1.msra.mxu0 0.0
    %2478 = vmatprep.subr.mxu0 0.0
    %2479 = vmatpush1.msra.mxu0 0.0
    %2480 = vmatprep.subr.mxu0 0.0
    %2481 = vmatpush1.msra.mxu0 0.0
    %2482 = vmatprep.subr.mxu0 0.0
    %2483 = vmatpush1.msra.mxu0 0.0
    %2484 = vmatprep.subr.mxu0 0.0
    %2485 = vmatpush1.msra.mxu0 0.0
    %2486 = vmatprep.subr.mxu0 0.0
    %2487 = vmatpush1.msra.mxu0 0.0
    %2488 = vmatprep.subr.mxu0 0.0
    %2489 = vmatpush1.msra.mxu0 0.0
    %2490 = vmatprep.subr.mxu0 0.0
    %2491 = vmatpush1.msra.mxu0 0.0
    %2492 = vmatprep.subr.mxu0 0.0
    %2493 = vmatpush1.msra.mxu0 0.0
    %2494 = vmatprep.subr.mxu0 0.0
    %2495 = vmatpush1.msra.mxu0 %v2469
    %2496 = vmatprep.subr.mxu0 0.0
    %2497 = vmatpush1.msra.mxu0 %v2468
    %2498 = vmatprep.subr.mxu0 0.0
    %2499 = vmatpush1.msra.mxu0 %v2467
    %2500 = vmatprep.subr.mxu0 0.0
    %2501 = vmatpush1.msra.mxu0 %v2466
    %2502 = vmatprep.subr.mxu0 0.0
    %2503 = vmatpush2.msra.mxu0 0.0
    %2504 = vmatprep.subr.mxu0 0.0
    %2505 = vmatpush2.msra.mxu0 0.0
    %2506 = vmatprep.subr.mxu0 0.0
    %2507 = vmatpush2.msra.mxu0 0.0
    %2508 = vmatprep.subr.mxu0 0.0
    %2509 = vmatpush2.msra.mxu0 0.0
    %2510 = vmatprep.subr.mxu0 0.0
    %2511 = vmatpush2.msra.mxu0 0.0
    %2512 = vmatprep.subr.mxu0 0.0
    %2513 = vmatpush2.msra.mxu0 0.0
    %2514 = vmatprep.subr.mxu0 0.0
    %2515 = vmatpush2.msra.mxu0 0.0
    %2516 = vmatprep.subr.mxu0 0.0
    %2517 = vmatpush2.msra.mxu0 0.0
    %2518 = vmatprep.subr.mxu0 0.0
    %2519 = vmatpush2.msra.mxu0 0.0
    %2520 = vmatprep.subr.mxu0 0.0
    %2521 = vmatpush2.msra.mxu0 0.0
    %2522 = vmatprep.subr.mxu0 0.0
    %2523 = vmatpush2.msra.mxu0 0.0
    %2524 = vmatprep.subr.mxu0 0.0
    %2525 = vmatpush2.msra.mxu0 0.0
    %2526 = vmatprep.subr.mxu0 0.0
    %2527 = vmatpush2.msra.mxu0 0.0
    %2528 = vmatprep.subr.mxu0 0.0
    %2529 = vmatpush2.msra.mxu0 0.0
    %2530 = vmatprep.subr.mxu0 0.0
    %2531 = vmatpush2.msra.mxu0 0.0
    %2532 = vmatprep.subr.mxu0 0.0
    %2533 = vmatpush2.msra.mxu0 0.0
    %2534 = vmatprep.mubr.f32.mxu0 0.0
    %2535 = vmatmul.mubr.f32.gmra.mxu0 %v2383
    %v2536 = vpop.f32.mrf.mxu0
    %v2537 = vadd.f32 0.0, %v2536
    %v2538 = vpop.f32.mrf.mxu0
    %2539 = vmatprep.mubr.f32.mxu0 0.0
    %2540 = vmatmul.mubr.f32.gmra.mxu0 %v2386
    %v2541 = vpop.f32.mrf.mxu0
    %v2542 = vadd.f32 0.0, %v2541
    %v2543 = vpop.f32.mrf.mxu0
    %2544 = vdwg.mxu0
    %v2545 = vadd.f32 %v2368, %v2537
    %v2546 = vadd.f32 %v2369, %v2542
    %s2547 = scalar_lea.vmem [#allocation13], 64
    %v2548 = vld [vmem:[%s2547] sm:$0xff]
    %v2549 = vld [vmem:[%s2547 + $0x8] sm:$0xff]
    %v2550 = vld [vmem:[%s2547 + $0x10] sm:$0xff]
    %v2551 = vld [vmem:[%s2547 + $0x18] sm:$0xff]
    %2552 = vmatprep.subr.mxu0 0.0
    %2553 = vmatpush1.msra.mxu0 0.0
    %2554 = vmatprep.subr.mxu0 0.0
    %2555 = vmatpush1.msra.mxu0 0.0
    %2556 = vmatprep.subr.mxu0 0.0
    %2557 = vmatpush1.msra.mxu0 0.0
    %2558 = vmatprep.subr.mxu0 0.0
    %2559 = vmatpush1.msra.mxu0 0.0
    %2560 = vmatprep.subr.mxu0 0.0
    %2561 = vmatpush1.msra.mxu0 0.0
    %2562 = vmatprep.subr.mxu0 0.0
    %2563 = vmatpush1.msra.mxu0 0.0
    %2564 = vmatprep.subr.mxu0 0.0
    %2565 = vmatpush1.msra.mxu0 0.0
    %2566 = vmatprep.subr.mxu0 0.0
    %2567 = vmatpush1.msra.mxu0 0.0
    %2568 = vmatprep.subr.mxu0 0.0
    %2569 = vmatpush1.msra.mxu0 0.0
    %2570 = vmatprep.subr.mxu0 0.0
    %2571 = vmatpush1.msra.mxu0 0.0
    %2572 = vmatprep.subr.mxu0 0.0
    %2573 = vmatpush1.msra.mxu0 0.0
    %2574 = vmatprep.subr.mxu0 0.0
    %2575 = vmatpush1.msra.mxu0 0.0
    %2576 = vmatprep.subr.mxu0 0.0
    %2577 = vmatpush1.msra.mxu0 %v2551
    %2578 = vmatprep.subr.mxu0 0.0
    %2579 = vmatpush1.msra.mxu0 %v2550
    %2580 = vmatprep.subr.mxu0 0.0
    %2581 = vmatpush1.msra.mxu0 %v2549
    %2582 = vmatprep.subr.mxu0 0.0
    %2583 = vmatpush1.msra.mxu0 %v2548
    %2584 = vmatprep.subr.mxu0 0.0
    %2585 = vmatpush2.msra.mxu0 0.0
    %2586 = vmatprep.subr.mxu0 0.0
    %2587 = vmatpush2.msra.mxu0 0.0
    %2588 = vmatprep.subr.mxu0 0.0
    %2589 = vmatpush2.msra.mxu0 0.0
    %2590 = vmatprep.subr.mxu0 0.0
    %2591 = vmatpush2.msra.mxu0 0.0
    %2592 = vmatprep.subr.mxu0 0.0
    %2593 = vmatpush2.msra.mxu0 0.0
    %2594 = vmatprep.subr.mxu0 0.0
    %2595 = vmatpush2.msra.mxu0 0.0
    %2596 = vmatprep.subr.mxu0 0.0
    %2597 = vmatpush2.msra.mxu0 0.0
    %2598 = vmatprep.subr.mxu0 0.0
    %2599 = vmatpush2.msra.mxu0 0.0
    %2600 = vmatprep.subr.mxu0 0.0
    %2601 = vmatpush2.msra.mxu0 0.0
    %2602 = vmatprep.subr.mxu0 0.0
    %2603 = vmatpush2.msra.mxu0 0.0
    %2604 = vmatprep.subr.mxu0 0.0
    %2605 = vmatpush2.msra.mxu0 0.0
    %2606 = vmatprep.subr.mxu0 0.0
    %2607 = vmatpush2.msra.mxu0 0.0
    %2608 = vmatprep.subr.mxu0 0.0
    %2609 = vmatpush2.msra.mxu0 0.0
    %2610 = vmatprep.subr.mxu0 0.0
    %2611 = vmatpush2.msra.mxu0 0.0
    %2612 = vmatprep.subr.mxu0 0.0
    %2613 = vmatpush2.msra.mxu0 0.0
    %2614 = vmatprep.subr.mxu0 0.0
    %2615 = vmatpush2.msra.mxu0 0.0
    %2616 = vmatprep.mubr.f32.mxu0 0.0
    %2617 = vmatmul.mubr.f32.gmra.mxu0 %v2383
    %v2618 = vpop.f32.mrf.mxu0
    %v2619 = vadd.f32 0.0, %v2618
    %v2620 = vpop.f32.mrf.mxu0
    %2621 = vmatprep.mubr.f32.mxu0 0.0
    %2622 = vmatmul.mubr.f32.gmra.mxu0 %v2386
    %v2623 = vpop.f32.mrf.mxu0
    %v2624 = vadd.f32 0.0, %v2623
    %v2625 = vpop.f32.mrf.mxu0
    %2626 = vdwg.mxu0
    %v2627 = vadd.f32 %v2372, %v2619
    %v2628 = vadd.f32 %v2373, %v2624
    %s2629 = scalar_lea.vmem [#allocation13], 96
    %v2630 = vld [vmem:[%s2629] sm:$0xff]
    %v2631 = vld [vmem:[%s2629 + $0x8] sm:$0xff]
    %v2632 = vld [vmem:[%s2629 + $0x10] sm:$0xff]
    %v2633 = vld [vmem:[%s2629 + $0x18] sm:$0xff]
    %2634 = vmatprep.subr.mxu0 0.0
    %2635 = vmatpush1.msra.mxu0 0.0
    %2636 = vmatprep.subr.mxu0 0.0
    %2637 = vmatpush1.msra.mxu0 0.0
    %2638 = vmatprep.subr.mxu0 0.0
    %2639 = vmatpush1.msra.mxu0 0.0
    %2640 = vmatprep.subr.mxu0 0.0
    %2641 = vmatpush1.msra.mxu0 0.0
    %2642 = vmatprep.subr.mxu0 0.0
    %2643 = vmatpush1.msra.mxu0 0.0
    %2644 = vmatprep.subr.mxu0 0.0
    %2645 = vmatpush1.msra.mxu0 0.0
    %2646 = vmatprep.subr.mxu0 0.0
    %2647 = vmatpush1.msra.mxu0 0.0
    %2648 = vmatprep.subr.mxu0 0.0
    %2649 = vmatpush1.msra.mxu0 0.0
    %2650 = vmatprep.subr.mxu0 0.0
    %2651 = vmatpush1.msra.mxu0 0.0
    %2652 = vmatprep.subr.mxu0 0.0
    %2653 = vmatpush1.msra.mxu0 0.0
    %2654 = vmatprep.subr.mxu0 0.0
    %2655 = vmatpush1.msra.mxu0 0.0
    %2656 = vmatprep.subr.mxu0 0.0
    %2657 = vmatpush1.msra.mxu0 0.0
    %2658 = vmatprep.subr.mxu0 0.0
    %2659 = vmatpush1.msra.mxu0 %v2633
    %2660 = vmatprep.subr.mxu0 0.0
    %2661 = vmatpush1.msra.mxu0 %v2632
    %2662 = vmatprep.subr.mxu0 0.0
    %2663 = vmatpush1.msra.mxu0 %v2631
    %2664 = vmatprep.subr.mxu0 0.0
    %2665 = vmatpush1.msra.mxu0 %v2630
    %2666 = vmatprep.subr.mxu0 0.0
    %2667 = vmatpush2.msra.mxu0 0.0
    %2668 = vmatprep.subr.mxu0 0.0
    %2669 = vmatpush2.msra.mxu0 0.0
    %2670 = vmatprep.subr.mxu0 0.0
    %2671 = vmatpush2.msra.mxu0 0.0
    %2672 = vmatprep.subr.mxu0 0.0
    %2673 = vmatpush2.msra.mxu0 0.0
    %2674 = vmatprep.subr.mxu0 0.0
    %2675 = vmatpush2.msra.mxu0 0.0
    %2676 = vmatprep.subr.mxu0 0.0
    %2677 = vmatpush2.msra.mxu0 0.0
    %2678 = vmatprep.subr.mxu0 0.0
    %2679 = vmatpush2.msra.mxu0 0.0
    %2680 = vmatprep.subr.mxu0 0.0
    %2681 = vmatpush2.msra.mxu0 0.0
    %2682 = vmatprep.subr.mxu0 0.0
    %2683 = vmatpush2.msra.mxu0 0.0
    %2684 = vmatprep.subr.mxu0 0.0
    %2685 = vmatpush2.msra.mxu0 0.0
    %2686 = vmatprep.subr.mxu0 0.0
    %2687 = vmatpush2.msra.mxu0 0.0
    %2688 = vmatprep.subr.mxu0 0.0
    %2689 = vmatpush2.msra.mxu0 0.0
    %2690 = vmatprep.subr.mxu0 0.0
    %2691 = vmatpush2.msra.mxu0 0.0
    %2692 = vmatprep.subr.mxu0 0.0
    %2693 = vmatpush2.msra.mxu0 0.0
    %2694 = vmatprep.subr.mxu0 0.0
    %2695 = vmatpush2.msra.mxu0 0.0
    %2696 = vmatprep.subr.mxu0 0.0
    %2697 = vmatpush2.msra.mxu0 0.0
    %2698 = vmatprep.mubr.f32.mxu0 0.0
    %2699 = vmatmul.mubr.f32.gmra.mxu0 %v2383
    %v2700 = vpop.f32.mrf.mxu0
    %v2701 = vadd.f32 0.0, %v2700
    %v2702 = vpop.f32.mrf.mxu0
    %2703 = vmatprep.mubr.f32.mxu0 0.0
    %2704 = vmatmul.mubr.f32.gmra.mxu0 %v2386
    %v2705 = vpop.f32.mrf.mxu0
    %v2706 = vadd.f32 0.0, %v2705
    %v2707 = vpop.f32.mrf.mxu0
    %2708 = vdwg.mxu0
    %v2709 = vadd.f32 %v2376, %v2701
    %v2710 = vadd.f32 %v2377, %v2706
    %v2711 = vxor.u32 %v2463, 2147483648
    %v2712 = vxor.u32 %v2464, 2147483648
    %v2713 = vmul.f32 %v2711, 1.442695
    %v2714 = vpow.pop %v2713
    %v2715 = vmul.f32 %v2712, 1.442695
    %v2716 = vpow.pop %v2715
    %v2717 = vadd.f32 %v2714, 1.0
    %v2718 = vadd.f32 %v2716, 1.0
    %v2719 = vrcp.pop %v2717
    %v2720 = vmul.f32 1.0, %v2719
    %v2721 = vrcp.pop %v2718
    %v2722 = vmul.f32 1.0, %v2721
    %v2723 = vxor.u32 %v2545, 2147483648
    %v2724 = vxor.u32 %v2546, 2147483648
    %v2725 = vmul.f32 %v2723, 1.442695
    %v2726 = vpow.pop %v2725
    %v2727 = vmul.f32 %v2724, 1.442695
    %v2728 = vpow.pop %v2727
    %v2729 = vadd.f32 %v2726, 1.0
    %v2730 = vadd.f32 %v2728, 1.0
    %v2731 = vrcp.pop %v2729
    %v2732 = vmul.f32 1.0, %v2731
    %v2733 = vrcp.pop %v2730
    %v2734 = vmul.f32 1.0, %v2733
    %v2735 = vtanh.pop %v2627
    %v2736 = vtanh.pop %v2628
    %v2737 = vxor.u32 %v2709, 2147483648
    %v2738 = vxor.u32 %v2710, 2147483648
    %v2739 = vmul.f32 %v2737, 1.442695
    %v2740 = vpow.pop %v2739
    %v2741 = vmul.f32 %v2738, 1.442695
    %v2742 = vpow.pop %v2741
    %v2743 = vadd.f32 %v2740, 1.0
    %v2744 = vadd.f32 %v2742, 1.0
    %v2745 = vrcp.pop %v2743
    %v2746 = vmul.f32 1.0, %v2745
    %v2747 = vrcp.pop %v2744
    %v2748 = vmul.f32 1.0, %v2747
    %v2749 = vmul.f32 %v2732, %v2356
    %v2750 = vmul.f32 %v2734, %v2357
    %v2751 = vmul.f32 %v2720, %v2735
    %v2752 = vmul.f32 %v2722, %v2736
    %v2753 = vadd.f32 %v2749, %v2751
    %v2754 = vadd.f32 %v2750, %v2752
    %v2755 = vtanh.pop %v2753
    %v2756 = vtanh.pop %v2754
    %v2757 = vmul.f32 %v2746, %v2755
    %v2758 = vmul.f32 %v2748, %v2756
    %v2759 = vrot.slane %v2026, 3
    %v2760 = vrot.slane %v2031, 3
    %v2761 = vsel %vm1013, %v2759, %v2760
    %v2762 = vsel %vm1013, %v2760, %v2759
    %v2763 = vrot.slane %v2114, 3
    %v2764 = vrot.slane %v2119, 3
    %v2765 = vsel %vm1013, %v2763, %v2764
    %v2766 = vsel %vm1013, %v2764, %v2763
    %v2767 = vrot.slane %v2202, 3
    %v2768 = vrot.slane %v2207, 3
    %v2769 = vsel %vm1013, %v2767, %v2768
    %v2770 = vsel %vm1013, %v2768, %v2767
    %v2771 = vrot.slane %v2290, 3
    %v2772 = vrot.slane %v2295, 3
    %v2773 = vsel %vm1013, %v2771, %v2772
    %v2774 = vsel %vm1013, %v2772, %v2771
    %v2776 = vsel %vm200, %v2757, 0
    %v2779 = vsel %vm200, %v2758, 0
    %2781 = vmatprep.subr.mxu0 0.0
    %2782 = vmatpush1.msra.mxu0 0.0
    %2783 = vmatprep.subr.mxu0 0.0
    %2784 = vmatpush1.msra.mxu0 0.0
    %2785 = vmatprep.subr.mxu0 0.0
    %2786 = vmatpush1.msra.mxu0 0.0
    %2787 = vmatprep.subr.mxu0 0.0
    %2788 = vmatpush1.msra.mxu0 0.0
    %2789 = vmatprep.subr.mxu0 0.0
    %2790 = vmatpush1.msra.mxu0 0.0
    %2791 = vmatprep.subr.mxu0 0.0
    %2792 = vmatpush1.msra.mxu0 0.0
    %2793 = vmatprep.subr.mxu0 0.0
    %2794 = vmatpush1.msra.mxu0 0.0
    %2795 = vmatprep.subr.mxu0 0.0
    %2796 = vmatpush1.msra.mxu0 0.0
    %2797 = vmatprep.subr.mxu0 0.0
    %2798 = vmatpush1.msra.mxu0 0.0
    %2799 = vmatprep.subr.mxu0 0.0
    %2800 = vmatpush1.msra.mxu0 0.0
    %2801 = vmatprep.subr.mxu0 0.0
    %2802 = vmatpush1.msra.mxu0 0.0
    %2803 = vmatprep.subr.mxu0 0.0
    %2804 = vmatpush1.msra.mxu0 0.0
    %2805 = vmatprep.subr.mxu0 0.0
    %2806 = vmatpush1.msra.mxu0 %v2381
    %2807 = vmatprep.subr.mxu0 0.0
    %2808 = vmatpush1.msra.mxu0 %v2380
    %2809 = vmatprep.subr.mxu0 0.0
    %2810 = vmatpush1.msra.mxu0 %v2379
    %2811 = vmatprep.subr.mxu0 0.0
    %2812 = vmatpush1.msra.mxu0 %v2378
    %2813 = vmatprep.subr.mxu0 0.0
    %2814 = vmatpush2.msra.mxu0 0.0
    %2815 = vmatprep.subr.mxu0 0.0
    %2816 = vmatpush2.msra.mxu0 0.0
    %2817 = vmatprep.subr.mxu0 0.0
    %2818 = vmatpush2.msra.mxu0 0.0
    %2819 = vmatprep.subr.mxu0 0.0
    %2820 = vmatpush2.msra.mxu0 0.0
    %2821 = vmatprep.subr.mxu0 0.0
    %2822 = vmatpush2.msra.mxu0 0.0
    %2823 = vmatprep.subr.mxu0 0.0
    %2824 = vmatpush2.msra.mxu0 0.0
    %2825 = vmatprep.subr.mxu0 0.0
    %2826 = vmatpush2.msra.mxu0 0.0
    %2827 = vmatprep.subr.mxu0 0.0
    %2828 = vmatpush2.msra.mxu0 0.0
    %2829 = vmatprep.subr.mxu0 0.0
    %2830 = vmatpush2.msra.mxu0 0.0
    %2831 = vmatprep.subr.mxu0 0.0
    %2832 = vmatpush2.msra.mxu0 0.0
    %2833 = vmatprep.subr.mxu0 0.0
    %2834 = vmatpush2.msra.mxu0 0.0
    %2835 = vmatprep.subr.mxu0 0.0
    %2836 = vmatpush2.msra.mxu0 0.0
    %2837 = vmatprep.subr.mxu0 0.0
    %2838 = vmatpush2.msra.mxu0 0.0
    %2839 = vmatprep.subr.mxu0 0.0
    %2840 = vmatpush2.msra.mxu0 0.0
    %2841 = vmatprep.subr.mxu0 0.0
    %2842 = vmatpush2.msra.mxu0 0.0
    %2843 = vmatprep.subr.mxu0 0.0
    %2844 = vmatpush2.msra.mxu0 0.0
    %2845 = vmatprep.mubr.f32.mxu0 0.0
    %2846 = vmatmul.mubr.f32.gmra.mxu0 %v2776
    %v2847 = vpop.f32.mrf.mxu0
    %v2848 = vadd.f32 0.0, %v2847
    %v2849 = vpop.f32.mrf.mxu0
    %2850 = vmatprep.mubr.f32.mxu0 0.0
    %2851 = vmatmul.mubr.f32.gmra.mxu0 %v2779
    %v2852 = vpop.f32.mrf.mxu0
    %v2853 = vadd.f32 0.0, %v2852
    %v2854 = vpop.f32.mrf.mxu0
    %2855 = vdwg.mxu0
    %v2856 = vadd.f32 %v2761, %v2848
    %v2857 = vadd.f32 %v2762, %v2853
    %2858 = vmatprep.subr.mxu0 0.0
    %2859 = vmatpush1.msra.mxu0 0.0
    %2860 = vmatprep.subr.mxu0 0.0
    %2861 = vmatpush1.msra.mxu0 0.0
    %2862 = vmatprep.subr.mxu0 0.0
    %2863 = vmatpush1.msra.mxu0 0.0
    %2864 = vmatprep.subr.mxu0 0.0
    %2865 = vmatpush1.msra.mxu0 0.0
    %2866 = vmatprep.subr.mxu0 0.0
    %2867 = vmatpush1.msra.mxu0 0.0
    %2868 = vmatprep.subr.mxu0 0.0
    %2869 = vmatpush1.msra.mxu0 0.0
    %2870 = vmatprep.subr.mxu0 0.0
    %2871 = vmatpush1.msra.mxu0 0.0
    %2872 = vmatprep.subr.mxu0 0.0
    %2873 = vmatpush1.msra.mxu0 0.0
    %2874 = vmatprep.subr.mxu0 0.0
    %2875 = vmatpush1.msra.mxu0 0.0
    %2876 = vmatprep.subr.mxu0 0.0
    %2877 = vmatpush1.msra.mxu0 0.0
    %2878 = vmatprep.subr.mxu0 0.0
    %2879 = vmatpush1.msra.mxu0 0.0
    %2880 = vmatprep.subr.mxu0 0.0
    %2881 = vmatpush1.msra.mxu0 0.0
    %2882 = vmatprep.subr.mxu0 0.0
    %2883 = vmatpush1.msra.mxu0 %v2469
    %2884 = vmatprep.subr.mxu0 0.0
    %2885 = vmatpush1.msra.mxu0 %v2468
    %2886 = vmatprep.subr.mxu0 0.0
    %2887 = vmatpush1.msra.mxu0 %v2467
    %2888 = vmatprep.subr.mxu0 0.0
    %2889 = vmatpush1.msra.mxu0 %v2466
    %2890 = vmatprep.subr.mxu0 0.0
    %2891 = vmatpush2.msra.mxu0 0.0
    %2892 = vmatprep.subr.mxu0 0.0
    %2893 = vmatpush2.msra.mxu0 0.0
    %2894 = vmatprep.subr.mxu0 0.0
    %2895 = vmatpush2.msra.mxu0 0.0
    %2896 = vmatprep.subr.mxu0 0.0
    %2897 = vmatpush2.msra.mxu0 0.0
    %2898 = vmatprep.subr.mxu0 0.0
    %2899 = vmatpush2.msra.mxu0 0.0
    %2900 = vmatprep.subr.mxu0 0.0
    %2901 = vmatpush2.msra.mxu0 0.0
    %2902 = vmatprep.subr.mxu0 0.0
    %2903 = vmatpush2.msra.mxu0 0.0
    %2904 = vmatprep.subr.mxu0 0.0
    %2905 = vmatpush2.msra.mxu0 0.0
    %2906 = vmatprep.subr.mxu0 0.0
    %2907 = vmatpush2.msra.mxu0 0.0
    %2908 = vmatprep.subr.mxu0 0.0
    %2909 = vmatpush2.msra.mxu0 0.0
    %2910 = vmatprep.subr.mxu0 0.0
    %2911 = vmatpush2.msra.mxu0 0.0
    %2912 = vmatprep.subr.mxu0 0.0
    %2913 = vmatpush2.msra.mxu0 0.0
    %2914 = vmatprep.subr.mxu0 0.0
    %2915 = vmatpush2.msra.mxu0 0.0
    %2916 = vmatprep.subr.mxu0 0.0
    %2917 = vmatpush2.msra.mxu0 0.0
    %2918 = vmatprep.subr.mxu0 0.0
    %2919 = vmatpush2.msra.mxu0 0.0
    %2920 = vmatprep.subr.mxu0 0.0
    %2921 = vmatpush2.msra.mxu0 0.0
    %2922 = vmatprep.mubr.f32.mxu0 0.0
    %2923 = vmatmul.mubr.f32.gmra.mxu0 %v2776
    %v2924 = vpop.f32.mrf.mxu0
    %v2925 = vadd.f32 0.0, %v2924
    %v2926 = vpop.f32.mrf.mxu0
    %2927 = vmatprep.mubr.f32.mxu0 0.0
    %2928 = vmatmul.mubr.f32.gmra.mxu0 %v2779
    %v2929 = vpop.f32.mrf.mxu0
    %v2930 = vadd.f32 0.0, %v2929
    %v2931 = vpop.f32.mrf.mxu0
    %2932 = vdwg.mxu0
    %v2933 = vadd.f32 %v2765, %v2925
    %v2934 = vadd.f32 %v2766, %v2930
    %2935 = vmatprep.subr.mxu0 0.0
    %2936 = vmatpush1.msra.mxu0 0.0
    %2937 = vmatprep.subr.mxu0 0.0
    %2938 = vmatpush1.msra.mxu0 0.0
    %2939 = vmatprep.subr.mxu0 0.0
    %2940 = vmatpush1.msra.mxu0 0.0
    %2941 = vmatprep.subr.mxu0 0.0
    %2942 = vmatpush1.msra.mxu0 0.0
    %2943 = vmatprep.subr.mxu0 0.0
    %2944 = vmatpush1.msra.mxu0 0.0
    %2945 = vmatprep.subr.mxu0 0.0
    %2946 = vmatpush1.msra.mxu0 0.0
    %2947 = vmatprep.subr.mxu0 0.0
    %2948 = vmatpush1.msra.mxu0 0.0
    %2949 = vmatprep.subr.mxu0 0.0
    %2950 = vmatpush1.msra.mxu0 0.0
    %2951 = vmatprep.subr.mxu0 0.0
    %2952 = vmatpush1.msra.mxu0 0.0
    %2953 = vmatprep.subr.mxu0 0.0
    %2954 = vmatpush1.msra.mxu0 0.0
    %2955 = vmatprep.subr.mxu0 0.0
    %2956 = vmatpush1.msra.mxu0 0.0
    %2957 = vmatprep.subr.mxu0 0.0
    %2958 = vmatpush1.msra.mxu0 0.0
    %2959 = vmatprep.subr.mxu0 0.0
    %2960 = vmatpush1.msra.mxu0 %v2551
    %2961 = vmatprep.subr.mxu0 0.0
    %2962 = vmatpush1.msra.mxu0 %v2550
    %2963 = vmatprep.subr.mxu0 0.0
    %2964 = vmatpush1.msra.mxu0 %v2549
    %2965 = vmatprep.subr.mxu0 0.0
    %2966 = vmatpush1.msra.mxu0 %v2548
    %2967 = vmatprep.subr.mxu0 0.0
    %2968 = vmatpush2.msra.mxu0 0.0
    %2969 = vmatprep.subr.mxu0 0.0
    %2970 = vmatpush2.msra.mxu0 0.0
    %2971 = vmatprep.subr.mxu0 0.0
    %2972 = vmatpush2.msra.mxu0 0.0
    %2973 = vmatprep.subr.mxu0 0.0
    %2974 = vmatpush2.msra.mxu0 0.0
    %2975 = vmatprep.subr.mxu0 0.0
    %2976 = vmatpush2.msra.mxu0 0.0
    %2977 = vmatprep.subr.mxu0 0.0
    %2978 = vmatpush2.msra.mxu0 0.0
    %2979 = vmatprep.subr.mxu0 0.0
    %2980 = vmatpush2.msra.mxu0 0.0
    %2981 = vmatprep.subr.mxu0 0.0
    %2982 = vmatpush2.msra.mxu0 0.0
    %2983 = vmatprep.subr.mxu0 0.0
    %2984 = vmatpush2.msra.mxu0 0.0
    %2985 = vmatprep.subr.mxu0 0.0
    %2986 = vmatpush2.msra.mxu0 0.0
    %2987 = vmatprep.subr.mxu0 0.0
    %2988 = vmatpush2.msra.mxu0 0.0
    %2989 = vmatprep.subr.mxu0 0.0
    %2990 = vmatpush2.msra.mxu0 0.0
    %2991 = vmatprep.subr.mxu0 0.0
    %2992 = vmatpush2.msra.mxu0 0.0
    %2993 = vmatprep.subr.mxu0 0.0
    %2994 = vmatpush2.msra.mxu0 0.0
    %2995 = vmatprep.subr.mxu0 0.0
    %2996 = vmatpush2.msra.mxu0 0.0
    %2997 = vmatprep.subr.mxu0 0.0
    %2998 = vmatpush2.msra.mxu0 0.0
    %2999 = vmatprep.mubr.f32.mxu0 0.0
    %3000 = vmatmul.mubr.f32.gmra.mxu0 %v2776
    %v3001 = vpop.f32.mrf.mxu0
    %v3002 = vadd.f32 0.0, %v3001
    %v3003 = vpop.f32.mrf.mxu0
    %3004 = vmatprep.mubr.f32.mxu0 0.0
    %3005 = vmatmul.mubr.f32.gmra.mxu0 %v2779
    %v3006 = vpop.f32.mrf.mxu0
    %v3007 = vadd.f32 0.0, %v3006
    %v3008 = vpop.f32.mrf.mxu0
    %3009 = vdwg.mxu0
    %v3010 = vadd.f32 %v2769, %v3002
    %v3011 = vadd.f32 %v2770, %v3007
    %3012 = vmatprep.subr.mxu0 0.0
    %3013 = vmatpush1.msra.mxu0 0.0
    %3014 = vmatprep.subr.mxu0 0.0
    %3015 = vmatpush1.msra.mxu0 0.0
    %3016 = vmatprep.subr.mxu0 0.0
    %3017 = vmatpush1.msra.mxu0 0.0
    %3018 = vmatprep.subr.mxu0 0.0
    %3019 = vmatpush1.msra.mxu0 0.0
    %3020 = vmatprep.subr.mxu0 0.0
    %3021 = vmatpush1.msra.mxu0 0.0
    %3022 = vmatprep.subr.mxu0 0.0
    %3023 = vmatpush1.msra.mxu0 0.0
    %3024 = vmatprep.subr.mxu0 0.0
    %3025 = vmatpush1.msra.mxu0 0.0
    %3026 = vmatprep.subr.mxu0 0.0
    %3027 = vmatpush1.msra.mxu0 0.0
    %3028 = vmatprep.subr.mxu0 0.0
    %3029 = vmatpush1.msra.mxu0 0.0
    %3030 = vmatprep.subr.mxu0 0.0
    %3031 = vmatpush1.msra.mxu0 0.0
    %3032 = vmatprep.subr.mxu0 0.0
    %3033 = vmatpush1.msra.mxu0 0.0
    %3034 = vmatprep.subr.mxu0 0.0
    %3035 = vmatpush1.msra.mxu0 0.0
    %3036 = vmatprep.subr.mxu0 0.0
    %3037 = vmatpush1.msra.mxu0 %v2633
    %3038 = vmatprep.subr.mxu0 0.0
    %3039 = vmatpush1.msra.mxu0 %v2632
    %3040 = vmatprep.subr.mxu0 0.0
    %3041 = vmatpush1.msra.mxu0 %v2631
    %3042 = vmatprep.subr.mxu0 0.0
    %3043 = vmatpush1.msra.mxu0 %v2630
    %3044 = vmatprep.subr.mxu0 0.0
    %3045 = vmatpush2.msra.mxu0 0.0
    %3046 = vmatprep.subr.mxu0 0.0
    %3047 = vmatpush2.msra.mxu0 0.0
    %3048 = vmatprep.subr.mxu0 0.0
    %3049 = vmatpush2.msra.mxu0 0.0
    %3050 = vmatprep.subr.mxu0 0.0
    %3051 = vmatpush2.msra.mxu0 0.0
    %3052 = vmatprep.subr.mxu0 0.0
    %3053 = vmatpush2.msra.mxu0 0.0
    %3054 = vmatprep.subr.mxu0 0.0
    %3055 = vmatpush2.msra.mxu0 0.0
    %3056 = vmatprep.subr.mxu0 0.0
    %3057 = vmatpush2.msra.mxu0 0.0
    %3058 = vmatprep.subr.mxu0 0.0
    %3059 = vmatpush2.msra.mxu0 0.0
    %3060 = vmatprep.subr.mxu0 0.0
    %3061 = vmatpush2.msra.mxu0 0.0
    %3062 = vmatprep.subr.mxu0 0.0
    %3063 = vmatpush2.msra.mxu0 0.0
    %3064 = vmatprep.subr.mxu0 0.0
    %3065 = vmatpush2.msra.mxu0 0.0
    %3066 = vmatprep.subr.mxu0 0.0
    %3067 = vmatpush2.msra.mxu0 0.0
    %3068 = vmatprep.subr.mxu0 0.0
    %3069 = vmatpush2.msra.mxu0 0.0
    %3070 = vmatprep.subr.mxu0 0.0
    %3071 = vmatpush2.msra.mxu0 0.0
    %3072 = vmatprep.subr.mxu0 0.0
    %3073 = vmatpush2.msra.mxu0 0.0
    %3074 = vmatprep.subr.mxu0 0.0
    %3075 = vmatpush2.msra.mxu0 0.0
    %3076 = vmatprep.mubr.f32.mxu0 0.0
    %3077 = vmatmul.mubr.f32.gmra.mxu0 %v2776
    %v3078 = vpop.f32.mrf.mxu0
    %v3079 = vadd.f32 0.0, %v3078
    %v3080 = vpop.f32.mrf.mxu0
    %3081 = vmatprep.mubr.f32.mxu0 0.0
    %3082 = vmatmul.mubr.f32.gmra.mxu0 %v2779
    %v3083 = vpop.f32.mrf.mxu0
    %v3084 = vadd.f32 0.0, %v3083
    %v3085 = vpop.f32.mrf.mxu0
    %3086 = vdwg.mxu0
    %v3087 = vadd.f32 %v2773, %v3079
    %v3088 = vadd.f32 %v2774, %v3084
    %v3089 = vxor.u32 %v2856, 2147483648
    %v3090 = vxor.u32 %v2857, 2147483648
    %v3091 = vmul.f32 %v3089, 1.442695
    %v3092 = vpow.pop %v3091
    %v3093 = vmul.f32 %v3090, 1.442695
    %v3094 = vpow.pop %v3093
    %v3095 = vadd.f32 %v3092, 1.0
    %v3096 = vadd.f32 %v3094, 1.0
    %v3097 = vrcp.pop %v3095
    %v3098 = vmul.f32 1.0, %v3097
    %v3099 = vrcp.pop %v3096
    %v3100 = vmul.f32 1.0, %v3099
    %v3101 = vxor.u32 %v2933, 2147483648
    %v3102 = vxor.u32 %v2934, 2147483648
    %v3103 = vmul.f32 %v3101, 1.442695
    %v3104 = vpow.pop %v3103
    %v3105 = vmul.f32 %v3102, 1.442695
    %v3106 = vpow.pop %v3105
    %v3107 = vadd.f32 %v3104, 1.0
    %v3108 = vadd.f32 %v3106, 1.0
    %v3109 = vrcp.pop %v3107
    %v3110 = vmul.f32 1.0, %v3109
    %v3111 = vrcp.pop %v3108
    %v3112 = vmul.f32 1.0, %v3111
    %v3113 = vtanh.pop %v3010
    %v3114 = vtanh.pop %v3011
    %v3115 = vxor.u32 %v3087, 2147483648
    %v3116 = vxor.u32 %v3088, 2147483648
    %v3117 = vmul.f32 %v3115, 1.442695
    %v3118 = vpow.pop %v3117
    %v3119 = vmul.f32 %v3116, 1.442695
    %v3120 = vpow.pop %v3119
    %v3121 = vadd.f32 %v3118, 1.0
    %v3122 = vadd.f32 %v3120, 1.0
    %v3123 = vrcp.pop %v3121
    %v3124 = vmul.f32 1.0, %v3123
    %v3125 = vrcp.pop %v3122
    %v3126 = vmul.f32 1.0, %v3125
    %v3127 = vmul.f32 %v3110, %v2753
    %v3128 = vmul.f32 %v3112, %v2754
    %v3129 = vmul.f32 %v3098, %v3113
    %v3130 = vmul.f32 %v3100, %v3114
    %v3131 = vadd.f32 %v3127, %v3129
    %v3132 = vadd.f32 %v3128, %v3130
    %v3133 = vtanh.pop %v3131
    %v3134 = vtanh.pop %v3132
    %v3135 = vmul.f32 %v3124, %v3133
    %v3136 = vmul.f32 %v3126, %v3134
    %v3137 = vrot.slane %v2026, 4
    %v3138 = vrot.slane %v2031, 4
    %v3139 = vsel %vm1392, %v3137, %v3138
    %v3140 = vsel %vm1392, %v3138, %v3137
    %v3141 = vrot.slane %v2114, 4
    %v3142 = vrot.slane %v2119, 4
    %v3143 = vsel %vm1392, %v3141, %v3142
    %v3144 = vsel %vm1392, %v3142, %v3141
    %v3145 = vrot.slane %v2202, 4
    %v3146 = vrot.slane %v2207, 4
    %v3147 = vsel %vm1392, %v3145, %v3146
    %v3148 = vsel %vm1392, %v3146, %v3145
    %v3149 = vrot.slane %v2290, 4
    %v3150 = vrot.slane %v2295, 4
    %v3151 = vsel %vm1392, %v3149, %v3150
    %v3152 = vsel %vm1392, %v3150, %v3149
    %v3154 = vsel %vm200, %v3135, 0
    %v3157 = vsel %vm200, %v3136, 0
    %3159 = vmatprep.subr.mxu0 0.0
    %3160 = vmatpush1.msra.mxu0 0.0
    %3161 = vmatprep.subr.mxu0 0.0
    %3162 = vmatpush1.msra.mxu0 0.0
    %3163 = vmatprep.subr.mxu0 0.0
    %3164 = vmatpush1.msra.mxu0 0.0
    %3165 = vmatprep.subr.mxu0 0.0
    %3166 = vmatpush1.msra.mxu0 0.0
    %3167 = vmatprep.subr.mxu0 0.0
    %3168 = vmatpush1.msra.mxu0 0.0
    %3169 = vmatprep.subr.mxu0 0.0
    %3170 = vmatpush1.msra.mxu0 0.0
    %3171 = vmatprep.subr.mxu0 0.0
    %3172 = vmatpush1.msra.mxu0 0.0
    %3173 = vmatprep.subr.mxu0 0.0
    %3174 = vmatpush1.msra.mxu0 0.0
    %3175 = vmatprep.subr.mxu0 0.0
    %3176 = vmatpush1.msra.mxu0 0.0
    %3177 = vmatprep.subr.mxu0 0.0
    %3178 = vmatpush1.msra.mxu0 0.0
    %3179 = vmatprep.subr.mxu0 0.0
    %3180 = vmatpush1.msra.mxu0 0.0
    %3181 = vmatprep.subr.mxu0 0.0
    %3182 = vmatpush1.msra.mxu0 0.0
    %3183 = vmatprep.subr.mxu0 0.0
    %3184 = vmatpush1.msra.mxu0 %v2381
    %3185 = vmatprep.subr.mxu0 0.0
    %3186 = vmatpush1.msra.mxu0 %v2380
    %3187 = vmatprep.subr.mxu0 0.0
    %3188 = vmatpush1.msra.mxu0 %v2379
    %3189 = vmatprep.subr.mxu0 0.0
    %3190 = vmatpush1.msra.mxu0 %v2378
    %3191 = vmatprep.subr.mxu0 0.0
    %3192 = vmatpush2.msra.mxu0 0.0
    %3193 = vmatprep.subr.mxu0 0.0
    %3194 = vmatpush2.msra.mxu0 0.0
    %3195 = vmatprep.subr.mxu0 0.0
    %3196 = vmatpush2.msra.mxu0 0.0
    %3197 = vmatprep.subr.mxu0 0.0
    %3198 = vmatpush2.msra.mxu0 0.0
    %3199 = vmatprep.subr.mxu0 0.0
    %3200 = vmatpush2.msra.mxu0 0.0
    %3201 = vmatprep.subr.mxu0 0.0
    %3202 = vmatpush2.msra.mxu0 0.0
    %3203 = vmatprep.subr.mxu0 0.0
    %3204 = vmatpush2.msra.mxu0 0.0
    %3205 = vmatprep.subr.mxu0 0.0
    %3206 = vmatpush2.msra.mxu0 0.0
    %3207 = vmatprep.subr.mxu0 0.0
    %3208 = vmatpush2.msra.mxu0 0.0
    %3209 = vmatprep.subr.mxu0 0.0
    %3210 = vmatpush2.msra.mxu0 0.0
    %3211 = vmatprep.subr.mxu0 0.0
    %3212 = vmatpush2.msra.mxu0 0.0
    %3213 = vmatprep.subr.mxu0 0.0
    %3214 = vmatpush2.msra.mxu0 0.0
    %3215 = vmatprep.subr.mxu0 0.0
    %3216 = vmatpush2.msra.mxu0 0.0
    %3217 = vmatprep.subr.mxu0 0.0
    %3218 = vmatpush2.msra.mxu0 0.0
    %3219 = vmatprep.subr.mxu0 0.0
    %3220 = vmatpush2.msra.mxu0 0.0
    %3221 = vmatprep.subr.mxu0 0.0
    %3222 = vmatpush2.msra.mxu0 0.0
    %3223 = vmatprep.mubr.f32.mxu0 0.0
    %3224 = vmatmul.mubr.f32.gmra.mxu0 %v3154
    %v3225 = vpop.f32.mrf.mxu0
    %v3226 = vadd.f32 0.0, %v3225
    %v3227 = vpop.f32.mrf.mxu0
    %3228 = vmatprep.mubr.f32.mxu0 0.0
    %3229 = vmatmul.mubr.f32.gmra.mxu0 %v3157
    %v3230 = vpop.f32.mrf.mxu0
    %v3231 = vadd.f32 0.0, %v3230
    %v3232 = vpop.f32.mrf.mxu0
    %3233 = vdwg.mxu0
    %v3234 = vadd.f32 %v3139, %v3226
    %v3235 = vadd.f32 %v3140, %v3231
    %3236 = vmatprep.subr.mxu0 0.0
    %3237 = vmatpush1.msra.mxu0 0.0
    %3238 = vmatprep.subr.mxu0 0.0
    %3239 = vmatpush1.msra.mxu0 0.0
    %3240 = vmatprep.subr.mxu0 0.0
    %3241 = vmatpush1.msra.mxu0 0.0
    %3242 = vmatprep.subr.mxu0 0.0
    %3243 = vmatpush1.msra.mxu0 0.0
    %3244 = vmatprep.subr.mxu0 0.0
    %3245 = vmatpush1.msra.mxu0 0.0
    %3246 = vmatprep.subr.mxu0 0.0
    %3247 = vmatpush1.msra.mxu0 0.0
    %3248 = vmatprep.subr.mxu0 0.0
    %3249 = vmatpush1.msra.mxu0 0.0
    %3250 = vmatprep.subr.mxu0 0.0
    %3251 = vmatpush1.msra.mxu0 0.0
    %3252 = vmatprep.subr.mxu0 0.0
    %3253 = vmatpush1.msra.mxu0 0.0
    %3254 = vmatprep.subr.mxu0 0.0
    %3255 = vmatpush1.msra.mxu0 0.0
    %3256 = vmatprep.subr.mxu0 0.0
    %3257 = vmatpush1.msra.mxu0 0.0
    %3258 = vmatprep.subr.mxu0 0.0
    %3259 = vmatpush1.msra.mxu0 0.0
    %3260 = vmatprep.subr.mxu0 0.0
    %3261 = vmatpush1.msra.mxu0 %v2469
    %3262 = vmatprep.subr.mxu0 0.0
    %3263 = vmatpush1.msra.mxu0 %v2468
    %3264 = vmatprep.subr.mxu0 0.0
    %3265 = vmatpush1.msra.mxu0 %v2467
    %3266 = vmatprep.subr.mxu0 0.0
    %3267 = vmatpush1.msra.mxu0 %v2466
    %3268 = vmatprep.subr.mxu0 0.0
    %3269 = vmatpush2.msra.mxu0 0.0
    %3270 = vmatprep.subr.mxu0 0.0
    %3271 = vmatpush2.msra.mxu0 0.0
    %3272 = vmatprep.subr.mxu0 0.0
    %3273 = vmatpush2.msra.mxu0 0.0
    %3274 = vmatprep.subr.mxu0 0.0
    %3275 = vmatpush2.msra.mxu0 0.0
    %3276 = vmatprep.subr.mxu0 0.0
    %3277 = vmatpush2.msra.mxu0 0.0
    %3278 = vmatprep.subr.mxu0 0.0
    %3279 = vmatpush2.msra.mxu0 0.0
    %3280 = vmatprep.subr.mxu0 0.0
    %3281 = vmatpush2.msra.mxu0 0.0
    %3282 = vmatprep.subr.mxu0 0.0
    %3283 = vmatpush2.msra.mxu0 0.0
    %3284 = vmatprep.subr.mxu0 0.0
    %3285 = vmatpush2.msra.mxu0 0.0
    %3286 = vmatprep.subr.mxu0 0.0
    %3287 = vmatpush2.msra.mxu0 0.0
    %3288 = vmatprep.subr.mxu0 0.0
    %3289 = vmatpush2.msra.mxu0 0.0
    %3290 = vmatprep.subr.mxu0 0.0
    %3291 = vmatpush2.msra.mxu0 0.0
    %3292 = vmatprep.subr.mxu0 0.0
    %3293 = vmatpush2.msra.mxu0 0.0
    %3294 = vmatprep.subr.mxu0 0.0
    %3295 = vmatpush2.msra.mxu0 0.0
    %3296 = vmatprep.subr.mxu0 0.0
    %3297 = vmatpush2.msra.mxu0 0.0
    %3298 = vmatprep.subr.mxu0 0.0
    %3299 = vmatpush2.msra.mxu0 0.0
    %3300 = vmatprep.mubr.f32.mxu0 0.0
    %3301 = vmatmul.mubr.f32.gmra.mxu0 %v3154
    %v3302 = vpop.f32.mrf.mxu0
    %v3303 = vadd.f32 0.0, %v3302
    %v3304 = vpop.f32.mrf.mxu0
    %3305 = vmatprep.mubr.f32.mxu0 0.0
    %3306 = vmatmul.mubr.f32.gmra.mxu0 %v3157
    %v3307 = vpop.f32.mrf.mxu0
    %v3308 = vadd.f32 0.0, %v3307
    %v3309 = vpop.f32.mrf.mxu0
    %3310 = vdwg.mxu0
    %v3311 = vadd.f32 %v3143, %v3303
    %v3312 = vadd.f32 %v3144, %v3308
    %3313 = vmatprep.subr.mxu0 0.0
    %3314 = vmatpush1.msra.mxu0 0.0
    %3315 = vmatprep.subr.mxu0 0.0
    %3316 = vmatpush1.msra.mxu0 0.0
    %3317 = vmatprep.subr.mxu0 0.0
    %3318 = vmatpush1.msra.mxu0 0.0
    %3319 = vmatprep.subr.mxu0 0.0
    %3320 = vmatpush1.msra.mxu0 0.0
    %3321 = vmatprep.subr.mxu0 0.0
    %3322 = vmatpush1.msra.mxu0 0.0
    %3323 = vmatprep.subr.mxu0 0.0
    %3324 = vmatpush1.msra.mxu0 0.0
    %3325 = vmatprep.subr.mxu0 0.0
    %3326 = vmatpush1.msra.mxu0 0.0
    %3327 = vmatprep.subr.mxu0 0.0
    %3328 = vmatpush1.msra.mxu0 0.0
    %3329 = vmatprep.subr.mxu0 0.0
    %3330 = vmatpush1.msra.mxu0 0.0
    %3331 = vmatprep.subr.mxu0 0.0
    %3332 = vmatpush1.msra.mxu0 0.0
    %3333 = vmatprep.subr.mxu0 0.0
    %3334 = vmatpush1.msra.mxu0 0.0
    %3335 = vmatprep.subr.mxu0 0.0
    %3336 = vmatpush1.msra.mxu0 0.0
    %3337 = vmatprep.subr.mxu0 0.0
    %3338 = vmatpush1.msra.mxu0 %v2551
    %3339 = vmatprep.subr.mxu0 0.0
    %3340 = vmatpush1.msra.mxu0 %v2550
    %3341 = vmatprep.subr.mxu0 0.0
    %3342 = vmatpush1.msra.mxu0 %v2549
    %3343 = vmatprep.subr.mxu0 0.0
    %3344 = vmatpush1.msra.mxu0 %v2548
    %3345 = vmatprep.subr.mxu0 0.0
    %3346 = vmatpush2.msra.mxu0 0.0
    %3347 = vmatprep.subr.mxu0 0.0
    %3348 = vmatpush2.msra.mxu0 0.0
    %3349 = vmatprep.subr.mxu0 0.0
    %3350 = vmatpush2.msra.mxu0 0.0
    %3351 = vmatprep.subr.mxu0 0.0
    %3352 = vmatpush2.msra.mxu0 0.0
    %3353 = vmatprep.subr.mxu0 0.0
    %3354 = vmatpush2.msra.mxu0 0.0
    %3355 = vmatprep.subr.mxu0 0.0
    %3356 = vmatpush2.msra.mxu0 0.0
    %3357 = vmatprep.subr.mxu0 0.0
    %3358 = vmatpush2.msra.mxu0 0.0
    %3359 = vmatprep.subr.mxu0 0.0
    %3360 = vmatpush2.msra.mxu0 0.0
    %3361 = vmatprep.subr.mxu0 0.0
    %3362 = vmatpush2.msra.mxu0 0.0
    %3363 = vmatprep.subr.mxu0 0.0
    %3364 = vmatpush2.msra.mxu0 0.0
    %3365 = vmatprep.subr.mxu0 0.0
    %3366 = vmatpush2.msra.mxu0 0.0
    %3367 = vmatprep.subr.mxu0 0.0
    %3368 = vmatpush2.msra.mxu0 0.0
    %3369 = vmatprep.subr.mxu0 0.0
    %3370 = vmatpush2.msra.mxu0 0.0
    %3371 = vmatprep.subr.mxu0 0.0
    %3372 = vmatpush2.msra.mxu0 0.0
    %3373 = vmatprep.subr.mxu0 0.0
    %3374 = vmatpush2.msra.mxu0 0.0
    %3375 = vmatprep.subr.mxu0 0.0
    %3376 = vmatpush2.msra.mxu0 0.0
    %3377 = vmatprep.mubr.f32.mxu0 0.0
    %3378 = vmatmul.mubr.f32.gmra.mxu0 %v3154
    %v3379 = vpop.f32.mrf.mxu0
    %v3380 = vadd.f32 0.0, %v3379
    %v3381 = vpop.f32.mrf.mxu0
    %3382 = vmatprep.mubr.f32.mxu0 0.0
    %3383 = vmatmul.mubr.f32.gmra.mxu0 %v3157
    %v3384 = vpop.f32.mrf.mxu0
    %v3385 = vadd.f32 0.0, %v3384
    %v3386 = vpop.f32.mrf.mxu0
    %3387 = vdwg.mxu0
    %v3388 = vadd.f32 %v3147, %v3380
    %v3389 = vadd.f32 %v3148, %v3385
    %3390 = vmatprep.subr.mxu0 0.0
    %3391 = vmatpush1.msra.mxu0 0.0
    %3392 = vmatprep.subr.mxu0 0.0
    %3393 = vmatpush1.msra.mxu0 0.0
    %3394 = vmatprep.subr.mxu0 0.0
    %3395 = vmatpush1.msra.mxu0 0.0
    %3396 = vmatprep.subr.mxu0 0.0
    %3397 = vmatpush1.msra.mxu0 0.0
    %3398 = vmatprep.subr.mxu0 0.0
    %3399 = vmatpush1.msra.mxu0 0.0
    %3400 = vmatprep.subr.mxu0 0.0
    %3401 = vmatpush1.msra.mxu0 0.0
    %3402 = vmatprep.subr.mxu0 0.0
    %3403 = vmatpush1.msra.mxu0 0.0
    %3404 = vmatprep.subr.mxu0 0.0
    %3405 = vmatpush1.msra.mxu0 0.0
    %3406 = vmatprep.subr.mxu0 0.0
    %3407 = vmatpush1.msra.mxu0 0.0
    %3408 = vmatprep.subr.mxu0 0.0
    %3409 = vmatpush1.msra.mxu0 0.0
    %3410 = vmatprep.subr.mxu0 0.0
    %3411 = vmatpush1.msra.mxu0 0.0
    %3412 = vmatprep.subr.mxu0 0.0
    %3413 = vmatpush1.msra.mxu0 0.0
    %3414 = vmatprep.subr.mxu0 0.0
    %3415 = vmatpush1.msra.mxu0 %v2633
    %3416 = vmatprep.subr.mxu0 0.0
    %3417 = vmatpush1.msra.mxu0 %v2632
    %3418 = vmatprep.subr.mxu0 0.0
    %3419 = vmatpush1.msra.mxu0 %v2631
    %3420 = vmatprep.subr.mxu0 0.0
    %3421 = vmatpush1.msra.mxu0 %v2630
    %3422 = vmatprep.subr.mxu0 0.0
    %3423 = vmatpush2.msra.mxu0 0.0
    %3424 = vmatprep.subr.mxu0 0.0
    %3425 = vmatpush2.msra.mxu0 0.0
    %3426 = vmatprep.subr.mxu0 0.0
    %3427 = vmatpush2.msra.mxu0 0.0
    %3428 = vmatprep.subr.mxu0 0.0
    %3429 = vmatpush2.msra.mxu0 0.0
    %3430 = vmatprep.subr.mxu0 0.0
    %3431 = vmatpush2.msra.mxu0 0.0
    %3432 = vmatprep.subr.mxu0 0.0
    %3433 = vmatpush2.msra.mxu0 0.0
    %3434 = vmatprep.subr.mxu0 0.0
    %3435 = vmatpush2.msra.mxu0 0.0
    %3436 = vmatprep.subr.mxu0 0.0
    %3437 = vmatpush2.msra.mxu0 0.0
    %3438 = vmatprep.subr.mxu0 0.0
    %3439 = vmatpush2.msra.mxu0 0.0
    %3440 = vmatprep.subr.mxu0 0.0
    %3441 = vmatpush2.msra.mxu0 0.0
    %3442 = vmatprep.subr.mxu0 0.0
    %3443 = vmatpush2.msra.mxu0 0.0
    %3444 = vmatprep.subr.mxu0 0.0
    %3445 = vmatpush2.msra.mxu0 0.0
    %3446 = vmatprep.subr.mxu0 0.0
    %3447 = vmatpush2.msra.mxu0 0.0
    %3448 = vmatprep.subr.mxu0 0.0
    %3449 = vmatpush2.msra.mxu0 0.0
    %3450 = vmatprep.subr.mxu0 0.0
    %3451 = vmatpush2.msra.mxu0 0.0
    %3452 = vmatprep.subr.mxu0 0.0
    %3453 = vmatpush2.msra.mxu0 0.0
    %3454 = vmatprep.mubr.f32.mxu0 0.0
    %3455 = vmatmul.mubr.f32.gmra.mxu0 %v3154
    %v3456 = vpop.f32.mrf.mxu0
    %v3457 = vadd.f32 0.0, %v3456
    %v3458 = vpop.f32.mrf.mxu0
    %3459 = vmatprep.mubr.f32.mxu0 0.0
    %3460 = vmatmul.mubr.f32.gmra.mxu0 %v3157
    %v3461 = vpop.f32.mrf.mxu0
    %v3462 = vadd.f32 0.0, %v3461
    %v3463 = vpop.f32.mrf.mxu0
    %3464 = vdwg.mxu0
    %v3465 = vadd.f32 %v3151, %v3457
    %v3466 = vadd.f32 %v3152, %v3462
    %v3467 = vxor.u32 %v3234, 2147483648
    %v3468 = vxor.u32 %v3235, 2147483648
    %v3469 = vmul.f32 %v3467, 1.442695
    %v3470 = vpow.pop %v3469
    %v3471 = vmul.f32 %v3468, 1.442695
    %v3472 = vpow.pop %v3471
    %v3473 = vadd.f32 %v3470, 1.0
    %v3474 = vadd.f32 %v3472, 1.0
    %v3475 = vrcp.pop %v3473
    %v3476 = vmul.f32 1.0, %v3475
    %v3477 = vrcp.pop %v3474
    %v3478 = vmul.f32 1.0, %v3477
    %v3479 = vxor.u32 %v3311, 2147483648
    %v3480 = vxor.u32 %v3312, 2147483648
    %v3481 = vmul.f32 %v3479, 1.442695
    %v3482 = vpow.pop %v3481
    %v3483 = vmul.f32 %v3480, 1.442695
    %v3484 = vpow.pop %v3483
    %v3485 = vadd.f32 %v3482, 1.0
    %v3486 = vadd.f32 %v3484, 1.0
    %v3487 = vrcp.pop %v3485
    %v3488 = vmul.f32 1.0, %v3487
    %v3489 = vrcp.pop %v3486
    %v3490 = vmul.f32 1.0, %v3489
    %v3491 = vtanh.pop %v3388
    %v3492 = vtanh.pop %v3389
    %v3493 = vxor.u32 %v3465, 2147483648
    %v3494 = vxor.u32 %v3466, 2147483648
    %v3495 = vmul.f32 %v3493, 1.442695
    %v3496 = vpow.pop %v3495
    %v3497 = vmul.f32 %v3494, 1.442695
    %v3498 = vpow.pop %v3497
    %v3499 = vadd.f32 %v3496, 1.0
    %v3500 = vadd.f32 %v3498, 1.0
    %v3501 = vrcp.pop %v3499
    %v3502 = vmul.f32 1.0, %v3501
    %v3503 = vrcp.pop %v3500
    %v3504 = vmul.f32 1.0, %v3503
    %v3505 = vmul.f32 %v3488, %v3131
    %v3506 = vmul.f32 %v3490, %v3132
    %v3507 = vmul.f32 %v3476, %v3491
    %v3508 = vmul.f32 %v3478, %v3492
    %v3509 = vadd.f32 %v3505, %v3507
    %v3510 = vadd.f32 %v3506, %v3508
    %v3511 = vtanh.pop %v3509
    %v3512 = vtanh.pop %v3510
    %v3513 = vmul.f32 %v3502, %v3511
    %v3514 = vmul.f32 %v3504, %v3512
    %v3515 = vld [vmem:[#allocation14] sm:$0xff]
    %v3516 = vld [vmem:[#allocation14 + $0x8] sm:$0xff]
    %v3517 = vld [vmem:[#allocation14 + $0x10] sm:$0xff]
    %v3518 = vld [vmem:[#allocation14 + $0x18] sm:$0xff]
    %v3519 = vld [vmem:[#allocation16] sm:$0xff]
    %v3520 = vld [vmem:[#allocation16 + $0x8] sm:$0xff]
    %v3521 = vld [vmem:[#allocation16 + $0x10] sm:$0xff]
    %v3522 = vld [vmem:[#allocation16 + $0x18] sm:$0xff]
    %v3524 = vsel %vm200, %v3513, 0
    %v3527 = vsel %vm200, %v3514, 0
    %3529 = vmatprep.subr.mxu0 0.0
    %3530 = vmatpush1.msra.mxu0 0.0
    %3531 = vmatprep.subr.mxu0 0.0
    %3532 = vmatpush1.msra.mxu0 0.0
    %3533 = vmatprep.subr.mxu0 0.0
    %3534 = vmatpush1.msra.mxu0 0.0
    %3535 = vmatprep.subr.mxu0 0.0
    %3536 = vmatpush1.msra.mxu0 0.0
    %3537 = vmatprep.subr.mxu0 0.0
    %3538 = vmatpush1.msra.mxu0 0.0
    %3539 = vmatprep.subr.mxu0 0.0
    %3540 = vmatpush1.msra.mxu0 0.0
    %3541 = vmatprep.subr.mxu0 0.0
    %3542 = vmatpush1.msra.mxu0 0.0
    %3543 = vmatprep.subr.mxu0 0.0
    %3544 = vmatpush1.msra.mxu0 0.0
    %3545 = vmatprep.subr.mxu0 0.0
    %3546 = vmatpush1.msra.mxu0 0.0
    %3547 = vmatprep.subr.mxu0 0.0
    %3548 = vmatpush1.msra.mxu0 0.0
    %3549 = vmatprep.subr.mxu0 0.0
    %3550 = vmatpush1.msra.mxu0 0.0
    %3551 = vmatprep.subr.mxu0 0.0
    %3552 = vmatpush1.msra.mxu0 0.0
    %3553 = vmatprep.subr.mxu0 0.0
    %3554 = vmatpush1.msra.mxu0 %v3522
    %3555 = vmatprep.subr.mxu0 0.0
    %3556 = vmatpush1.msra.mxu0 %v3521
    %3557 = vmatprep.subr.mxu0 0.0
    %3558 = vmatpush1.msra.mxu0 %v3520
    %3559 = vmatprep.subr.mxu0 0.0
    %3560 = vmatpush1.msra.mxu0 %v3519
    %3561 = vmatprep.subr.mxu0 0.0
    %3562 = vmatpush2.msra.mxu0 0.0
    %3563 = vmatprep.subr.mxu0 0.0
    %3564 = vmatpush2.msra.mxu0 0.0
    %3565 = vmatprep.subr.mxu0 0.0
    %3566 = vmatpush2.msra.mxu0 0.0
    %3567 = vmatprep.subr.mxu0 0.0
    %3568 = vmatpush2.msra.mxu0 0.0
    %3569 = vmatprep.subr.mxu0 0.0
    %3570 = vmatpush2.msra.mxu0 0.0
    %3571 = vmatprep.subr.mxu0 0.0
    %3572 = vmatpush2.msra.mxu0 0.0
    %3573 = vmatprep.subr.mxu0 0.0
    %3574 = vmatpush2.msra.mxu0 0.0
    %3575 = vmatprep.subr.mxu0 0.0
    %3576 = vmatpush2.msra.mxu0 0.0
    %3577 = vmatprep.subr.mxu0 0.0
    %3578 = vmatpush2.msra.mxu0 0.0
    %3579 = vmatprep.subr.mxu0 0.0
    %3580 = vmatpush2.msra.mxu0 0.0
    %3581 = vmatprep.subr.mxu0 0.0
    %3582 = vmatpush2.msra.mxu0 0.0
    %3583 = vmatprep.subr.mxu0 0.0
    %3584 = vmatpush2.msra.mxu0 0.0
    %3585 = vmatprep.subr.mxu0 0.0
    %3586 = vmatpush2.msra.mxu0 0.0
    %3587 = vmatprep.subr.mxu0 0.0
    %3588 = vmatpush2.msra.mxu0 0.0
    %3589 = vmatprep.subr.mxu0 0.0
    %3590 = vmatpush2.msra.mxu0 0.0
    %3591 = vmatprep.subr.mxu0 0.0
    %3592 = vmatpush2.msra.mxu0 0.0
    %3593 = vmatprep.mubr.f32.mxu0 0.0
    %3594 = vmatmul.mubr.f32.gmra.mxu0 %v3524
    %v3595 = vpop.f32.mrf.mxu0
    %v3596 = vadd.f32 0.0, %v3595
    %v3597 = vpop.f32.mrf.mxu0
    %3598 = vmatprep.mubr.f32.mxu0 0.0
    %3599 = vmatmul.mubr.f32.gmra.mxu0 %v3527
    %v3600 = vpop.f32.mrf.mxu0
    %v3601 = vadd.f32 0.0, %v3600
    %v3602 = vpop.f32.mrf.mxu0
    %3603 = vdwg.mxu0
    %3604 = vmatprep.subr.mxu0 0.0
    %3605 = vmatpush1.msra.mxu0 0.0
    %3606 = vmatprep.subr.mxu0 0.0
    %3607 = vmatpush1.msra.mxu0 0.0
    %3608 = vmatprep.subr.mxu0 0.0
    %3609 = vmatpush1.msra.mxu0 0.0
    %3610 = vmatprep.subr.mxu0 0.0
    %3611 = vmatpush1.msra.mxu0 0.0
    %3612 = vmatprep.subr.mxu0 0.0
    %3613 = vmatpush1.msra.mxu0 0.0
    %3614 = vmatprep.subr.mxu0 0.0
    %3615 = vmatpush1.msra.mxu0 0.0
    %3616 = vmatprep.subr.mxu0 0.0
    %3617 = vmatpush1.msra.mxu0 0.0
    %3618 = vmatprep.subr.mxu0 0.0
    %3619 = vmatpush1.msra.mxu0 0.0
    %3620 = vmatprep.subr.mxu0 0.0
    %3621 = vmatpush1.msra.mxu0 0.0
    %3622 = vmatprep.subr.mxu0 0.0
    %3623 = vmatpush1.msra.mxu0 0.0
    %3624 = vmatprep.subr.mxu0 0.0
    %3625 = vmatpush1.msra.mxu0 0.0
    %3626 = vmatprep.subr.mxu0 0.0
    %3627 = vmatpush1.msra.mxu0 0.0
    %3628 = vmatprep.subr.mxu0 0.0
    %3629 = vmatpush1.msra.mxu0 %v3518
    %3630 = vmatprep.subr.mxu0 0.0
    %3631 = vmatpush1.msra.mxu0 %v3517
    %3632 = vmatprep.subr.mxu0 0.0
    %3633 = vmatpush1.msra.mxu0 %v3516
    %3634 = vmatprep.subr.mxu0 0.0
    %3635 = vmatpush1.msra.mxu0 %v3515
    %3636 = vmatprep.subr.mxu0 0.0
    %3637 = vmatpush2.msra.mxu0 0.0
    %3638 = vmatprep.subr.mxu0 0.0
    %3639 = vmatpush2.msra.mxu0 0.0
    %3640 = vmatprep.subr.mxu0 0.0
    %3641 = vmatpush2.msra.mxu0 0.0
    %3642 = vmatprep.subr.mxu0 0.0
    %3643 = vmatpush2.msra.mxu0 0.0
    %3644 = vmatprep.subr.mxu0 0.0
    %3645 = vmatpush2.msra.mxu0 0.0
    %3646 = vmatprep.subr.mxu0 0.0
    %3647 = vmatpush2.msra.mxu0 0.0
    %3648 = vmatprep.subr.mxu0 0.0
    %3649 = vmatpush2.msra.mxu0 0.0
    %3650 = vmatprep.subr.mxu0 0.0
    %3651 = vmatpush2.msra.mxu0 0.0
    %3652 = vmatprep.subr.mxu0 0.0
    %3653 = vmatpush2.msra.mxu0 0.0
    %3654 = vmatprep.subr.mxu0 0.0
    %3655 = vmatpush2.msra.mxu0 0.0
    %3656 = vmatprep.subr.mxu0 0.0
    %3657 = vmatpush2.msra.mxu0 0.0
    %3658 = vmatprep.subr.mxu0 0.0
    %3659 = vmatpush2.msra.mxu0 0.0
    %3660 = vmatprep.subr.mxu0 0.0
    %3661 = vmatpush2.msra.mxu0 0.0
    %3662 = vmatprep.subr.mxu0 0.0
    %3663 = vmatpush2.msra.mxu0 0.0
    %3664 = vmatprep.subr.mxu0 0.0
    %3665 = vmatpush2.msra.mxu0 0.0
    %3666 = vmatprep.subr.mxu0 0.0
    %3667 = vmatpush2.msra.mxu0 0.0
    %3668 = vmatprep.mubr.f32.mxu0 0.0
    %3669 = vmatmul.mubr.f32.gmra.mxu0 %v1954
    %v3670 = vpop.f32.mrf.mxu0
    %v3671 = vadd.f32 %v3596, %v3670
    %v3672 = vpop.f32.mrf.mxu0
    %3673 = vmatprep.mubr.f32.mxu0 0.0
    %3674 = vmatmul.mubr.f32.gmra.mxu0 %v1957
    %v3675 = vpop.f32.mrf.mxu0
    %v3676 = vadd.f32 %v3601, %v3675
    %v3677 = vpop.f32.mrf.mxu0
    %3678 = vdwg.mxu0
    %v3679 = vld [vmem:[%s12] sm:$0x1]
    %v3681 = vlaneseq
    %v3682 = vshrl.u32 %v3681, 7
    %v3683 = vsub.s32 0, %v3682
    %v3684 = vrot.slane %v3679, %v3683
    %v3686 = vadd.f32 %v3671, %v3684
    %v3687 = vadd.f32 %v3676, %v3684
    %v3688 = vld [vmem:[#allocation17] sm:$0xff]
    %v3689 = vld [vmem:[#allocation17 + $0x8] sm:$0xff]
    %v3690 = vld [vmem:[#allocation17 + $0x10] sm:$0xff]
    %v3691 = vld [vmem:[#allocation17 + $0x18] sm:$0xff]
    %v3692 = vld [vmem:[%s14] sm:$0x1]
    %v3694 = vlaneseq
    %v3695 = vshrl.u32 %v3694, 7
    %v3696 = vsub.s32 0, %v3695
    %v3697 = vrot.slane %v3692, %v3696
    %v3700 = vsel %vm200, %v3686, 0
    %v3703 = vsel %vm200, %v3687, 0
    %3705 = vmatprep.subr.mxu0 0.0
    %3706 = vmatpush1.msra.mxu0 0.0
    %3707 = vmatprep.subr.mxu0 0.0
    %3708 = vmatpush1.msra.mxu0 0.0
    %3709 = vmatprep.subr.mxu0 0.0
    %3710 = vmatpush1.msra.mxu0 0.0
    %3711 = vmatprep.subr.mxu0 0.0
    %3712 = vmatpush1.msra.mxu0 0.0
    %3713 = vmatprep.subr.mxu0 0.0
    %3714 = vmatpush1.msra.mxu0 0.0
    %3715 = vmatprep.subr.mxu0 0.0
    %3716 = vmatpush1.msra.mxu0 0.0
    %3717 = vmatprep.subr.mxu0 0.0
    %3718 = vmatpush1.msra.mxu0 0.0
    %3719 = vmatprep.subr.mxu0 0.0
    %3720 = vmatpush1.msra.mxu0 0.0
    %3721 = vmatprep.subr.mxu0 0.0
    %3722 = vmatpush1.msra.mxu0 0.0
    %3723 = vmatprep.subr.mxu0 0.0
    %3724 = vmatpush1.msra.mxu0 0.0
    %3725 = vmatprep.subr.mxu0 0.0
    %3726 = vmatpush1.msra.mxu0 0.0
    %3727 = vmatprep.subr.mxu0 0.0
    %3728 = vmatpush1.msra.mxu0 0.0
    %3729 = vmatprep.subr.mxu0 0.0
    %3730 = vmatpush1.msra.mxu0 %v3691
    %3731 = vmatprep.subr.mxu0 0.0
    %3732 = vmatpush1.msra.mxu0 %v3690
    %3733 = vmatprep.subr.mxu0 0.0
    %3734 = vmatpush1.msra.mxu0 %v3689
    %3735 = vmatprep.subr.mxu0 0.0
    %3736 = vmatpush1.msra.mxu0 %v3688
    %3737 = vmatprep.subr.mxu0 0.0
    %3738 = vmatpush2.msra.mxu0 0.0
    %3739 = vmatprep.subr.mxu0 0.0
    %3740 = vmatpush2.msra.mxu0 0.0
    %3741 = vmatprep.subr.mxu0 0.0
    %3742 = vmatpush2.msra.mxu0 0.0
    %3743 = vmatprep.subr.mxu0 0.0
    %3744 = vmatpush2.msra.mxu0 0.0
    %3745 = vmatprep.subr.mxu0 0.0
    %3746 = vmatpush2.msra.mxu0 0.0
    %3747 = vmatprep.subr.mxu0 0.0
    %3748 = vmatpush2.msra.mxu0 0.0
    %3749 = vmatprep.subr.mxu0 0.0
    %3750 = vmatpush2.msra.mxu0 0.0
    %3751 = vmatprep.subr.mxu0 0.0
    %3752 = vmatpush2.msra.mxu0 0.0
    %3753 = vmatprep.subr.mxu0 0.0
    %3754 = vmatpush2.msra.mxu0 0.0
    %3755 = vmatprep.subr.mxu0 0.0
    %3756 = vmatpush2.msra.mxu0 0.0
    %3757 = vmatprep.subr.mxu0 0.0
    %3758 = vmatpush2.msra.mxu0 0.0
    %3759 = vmatprep.subr.mxu0 0.0
    %3760 = vmatpush2.msra.mxu0 0.0
    %3761 = vmatprep.subr.mxu0 0.0
    %3762 = vmatpush2.msra.mxu0 0.0
    %3763 = vmatprep.subr.mxu0 0.0
    %3764 = vmatpush2.msra.mxu0 0.0
    %3765 = vmatprep.subr.mxu0 0.0
    %3766 = vmatpush2.msra.mxu0 0.0
    %3767 = vmatprep.subr.mxu0 0.0
    %3768 = vmatpush2.msra.mxu0 0.0
    %3769 = vmatprep.mubr.f32.mxu0 0.0
    %3770 = vmatmul.mubr.f32.gmra.mxu0 %v3700
    %v3771 = vpop.f32.mrf.mxu0
    %v3772 = vadd.f32 %v3697, %v3771
    %v3773 = vpop.f32.mrf.mxu0
    %3774 = vmatprep.mubr.f32.mxu0 0.0
    %3775 = vmatmul.mubr.f32.gmra.mxu0 %v3703
    %v3776 = vpop.f32.mrf.mxu0
    %v3777 = vadd.f32 %v3697, %v3776
    %v3778 = vpop.f32.mrf.mxu0
    %3779 = vdwg.mxu0
    %3780 = vst [vmem:[#allocation19] sm:$0xff] %v3772
    %3781 = vst [vmem:[#allocation19 + $0x8] sm:$0xff] %v3777
    // Predicated region
    $region102: #{tpu_custom_call.1} parent=1 // pred_check
      _
    $region103: #{tpu_custom_call.1} parent=1 // pred_check_branch
      %3783 = sbr.rel (0) target = $region105
    $region104: #{tpu_custom_call.1} parent=1 // pred_region
      %s3785 = ssub.s32 256, 256
      %3786 = vsyncadd [#allocation4], %s3785
      %s3787 = sshll.u32 [#allocation19], 4
      %s3788 = int_to_ptr.vmem [resolvable:$true] %s3787
      %3793 = dma.vmem_to_hbm [thread:$0]  %s3788, 256, %s15, [#allocation4], 128, 128, 8
    $region105: #{tpu_custom_call.1} parent=1 // pred_fallthru
      _
    // Predicated region
    $region106: #{tpu_custom_call.1} parent=1 // pred_check
      _
    $region107: #{tpu_custom_call.1} parent=1 // pred_check_branch
      %3795 = sbr.rel (0) target = $region109
    $region108: #{tpu_custom_call.1} parent=1 // pred_region
      %3796 = dma.done [#allocation4], 256
    $region109: #{tpu_custom_call.1} parent=1 // pred_fallthru
      _
    %3797 = vsyncpa [#allocation3], 1
    %3798 = vsyncpa [#allocation6], 1
    %3799 = vsyncpa [#allocation9], 1
    %3800 = vsyncpa [#allocation12], 1
    %3801 = vsyncpa [#allocation15], 1
    %3802 = vsyncpa [#allocation18], 1
    %3803 = vsyncpa [#allocation4], 1

</llo_original>
